<compile_context>
chip_gen: v5e
topology: v5e:2x2
jax: 0.10.0
libtpu: 0.0.40
codegen_flags: <defaults>
</compile_context>

<pallas_src>
import functools

import numpy as np
import jax
import jax.numpy as jnp
from jax.experimental import pallas as pl
from jax.experimental.pallas import tpu as pltpu


# ----------------------------------------------------------------------------
# Model config / constants
# ----------------------------------------------------------------------------
class Config:
    vocab_size = 50
    max_position = 32
    type_vocab_size = 2
    hidden_size = 32
    num_heads = 4
    num_layers = 2
    intermediate_size = 64
    dropout = 0.1  # eval-mode identity here


N_OP = 4
N_DOMAIN = 5
UPDATE_ID = 1
LN_EPS = 1e-12


# ----------------------------------------------------------------------------
# Fused encoder kernel: one grid step = one batch item, ALL layers unrolled.
# ----------------------------------------------------------------------------
def _encoder_kernel(x_emb_ref, mask_ref, emb_g_ref, emb_b_ref,
                    wqkv_ref, bqkv_ref, wo_ref, bo_ref,
                    ln1_g_ref, ln1_b_ref,
                    w1_ref, b1_ref, w2_ref, b2_ref,
                    ln2_g_ref, ln2_b_ref,
                    seq_ref,
                    *, num_layers, num_heads, scale, eps):

    def _ln(v, g, b):
        mu = jnp.mean(v, axis=-1, keepdims=True)
        vc = v - mu
        var = jnp.mean(vc * vc, axis=-1, keepdims=True)
        return vc * jax.lax.rsqrt(var + eps) * g + b

    # Embeddings for this batch item + embedding LayerNorm.
    x = _ln(x_emb_ref[0].astype(jnp.float32), emb_g_ref[...], emb_b_ref[...])
    S, H = x.shape
    Dh = H // num_heads

    # Additive attention bias from the (1, S) padding mask; built once,
    # reused by every layer (broadcasts over query rows).
    bias = (1.0 - mask_ref[0].astype(jnp.float32)) * -10000.0        # (1, S)

    for li in range(num_layers):                                     # static unroll
        # ---- Multi-head self-attention -------------------------------------
        # One lane-dense (S,H)@(H,3H) projection for Q|K|V.
        qkv = (jnp.dot(x, wqkv_ref[li], preferred_element_type=jnp.float32)
               + bqkv_ref[li])                                       # (S, 3H)

        ctx_heads = []
        for h in range(num_heads):                                   # static unroll
            qh = qkv[:, h * Dh:(h + 1) * Dh]                         # (S, Dh)
            kh = qkv[:, H + h * Dh:H + (h + 1) * Dh]                 # (S, Dh)
            vh = qkv[:, 2 * H + h * Dh:2 * H + (h + 1) * Dh]         # (S, Dh)
            s = jax.lax.dot_general(qh, kh, (((1,), (1,)), ((), ())),
                                    preferred_element_type=jnp.float32)
            s = s * scale + bias                                     # (S, S)
            s = s - jnp.max(s, axis=-1, keepdims=True)
            p = jnp.exp(s)
            p = p * pl.reciprocal(jnp.sum(p, axis=-1, keepdims=True), approx=True)
            ctx_heads.append(jnp.dot(p, vh, preferred_element_type=jnp.float32))

        ctx = jnp.concatenate(ctx_heads, axis=-1)                    # (S, H) lane-dense
        attn = (jnp.dot(ctx, wo_ref[li], preferred_element_type=jnp.float32)
                + bo_ref[li])                                        # (S, H)

        x = _ln(x + attn, ln1_g_ref[li], ln1_b_ref[li])

        # ---- Feed-forward (erf-GELU, matching PyTorch default) -------------
        ff = jnp.dot(x, w1_ref[li], preferred_element_type=jnp.float32) + b1_ref[li]
        ff = 0.5 * ff * (1.0 + jax.lax.erf(ff * 0.7071067811865475))
        ff = jnp.dot(ff, w2_ref[li], preferred_element_type=jnp.float32) + b2_ref[li]
        x = _ln(x + ff, ln2_g_ref[li], ln2_b_ref[li])

    # Single output store, only the final hidden state is consumed.
    seq_ref[0] = x.astype(seq_ref.dtype)


# ----------------------------------------------------------------------------
# Parameters (deterministic synthetic init) + host-side weight re-layout
# ----------------------------------------------------------------------------
def _stack_layer_params(layers, cfg):
    H, I = cfg.hidden_size, cfg.intermediate_size
    return {
        # Wq | Wk | Wv concatenated along the output (lane) axis -> (L, H, 3H)
        "wqkv": jnp.stack(
            [jnp.concatenate([l["wq"], l["wk"], l["wv"]], axis=1) for l in layers]),
        "bqkv": jnp.stack(
            [jnp.concatenate([l["bq"], l["bk"], l["bv"]]).reshape(1, 3 * H)
             for l in layers]),                                          # (L, 1, 3H)
        "wo": jnp.stack([l["wo"] for l in layers]),                      # (L, H, H)
        "bo": jnp.stack([l["bo"].reshape(1, H) for l in layers]),        # (L, 1, H)
        "ln1_g": jnp.stack([l["ln1_g"].reshape(1, H) for l in layers]),
        "ln1_b": jnp.stack([l["ln1_b"].reshape(1, H) for l in layers]),
        "w1": jnp.stack([l["w1"] for l in layers]),                      # (L, H, I)
        "b1": jnp.stack([l["b1"].reshape(1, I) for l in layers]),        # (L, 1, I)
        "w2": jnp.stack([l["w2"] for l in layers]),                      # (L, I, H)
        "b2": jnp.stack([l["b2"].reshape(1, H) for l in layers]),        # (L, 1, H)
        "ln2_g": jnp.stack([l["ln2_g"].reshape(1, H) for l in layers]),
        "ln2_b": jnp.stack([l["ln2_b"].reshape(1, H) for l in layers]),
    }


def init_params(key, cfg):
    H, I = cfg.hidden_size, cfg.intermediate_size
    std = 0.02

    def nrm(k, shape):
        return (jax.random.normal(k, shape, jnp.float32) * std).astype(jnp.float32)

    keys = jax.random.split(key, 8 + cfg.num_layers)
    p = {
        "word_emb": nrm(keys[0], (cfg.vocab_size, H)),
        "pos_emb": nrm(keys[1], (cfg.max_position, H)),
        "type_emb": nrm(keys[2], (cfg.type_vocab_size, H)),
        "emb_ln_g": jnp.ones((H,), jnp.float32),
        "emb_ln_b": jnp.zeros((H,), jnp.float32),
        "pool_w": nrm(keys[3], (H, H)),
        "pool_b": jnp.zeros((H,), jnp.float32),
        "action_w": nrm(keys[4], (H, N_OP)),
        "action_b": jnp.zeros((N_OP,), jnp.float32),
        "domain_w": nrm(keys[5], (H, N_DOMAIN)),
        "domain_b": jnp.zeros((N_DOMAIN,), jnp.float32),
    }
    layers = []
    for li in range(cfg.num_layers):
        lk = jax.random.split(keys[8 + li], 6)
        layers.append({
            "wq": nrm(lk[0], (H, H)), "bq": jnp.zeros((H,), jnp.float32),
            "wk": nrm(lk[1], (H, H)), "bk": jnp.zeros((H,), jnp.float32),
            "wv": nrm(lk[2], (H, H)), "bv": jnp.zeros((H,), jnp.float32),
            "wo": nrm(lk[3], (H, H)), "bo": jnp.zeros((H,), jnp.float32),
            "ln1_g": jnp.ones((H,), jnp.float32), "ln1_b": jnp.zeros((H,), jnp.float32),
            "w1": nrm(lk[4], (H, I)), "b1": jnp.zeros((I,), jnp.float32),
            "w2": nrm(lk[5], (I, H)), "b2": jnp.zeros((H,), jnp.float32),
            "ln2_g": jnp.ones((H,), jnp.float32), "ln2_b": jnp.zeros((H,), jnp.float32),
        })
    p["stacked"] = _stack_layer_params(layers, cfg)
    return p


# ----------------------------------------------------------------------------
# Forward pass
# ----------------------------------------------------------------------------
def bert_forward(params, cfg, input_ids, token_type_ids, attention_mask):
    B, S = input_ids.shape
    H, nh, L = cfg.hidden_size, cfg.num_heads, cfg.num_layers
    Dh = H // nh
    I = cfg.intermediate_size
    st = params["stacked"]

    # Embedding lookups in plain XLA (gathers); LN + all encoder layers fused
    # in ONE Pallas kernel with grid=(B,) (batch axis "parallel" for v7x).
    emb = (params["word_emb"][input_ids]
           + params["pos_emb"][:S][None, :, :]
           + params["type_emb"][token_type_ids]).astype(jnp.float32)   # (B, S, H)
    mask3 = attention_mask.astype(jnp.float32).reshape(B, 1, S)

    kernel = functools.partial(_encoder_kernel, num_layers=L, num_heads=nh,
                               scale=1.0 / float(np.sqrt(Dh)), eps=LN_EPS)

    # All stacked weights are fully VMEM-resident (constant index_map over L):
    # total ~64 KiB f32 — negligible on v5e/v6e (128 MiB) and v7x (64 MiB).
    resident = lambda shape: pl.BlockSpec(shape, lambda b: (0,) * len(shape))

    sequence_output = pl.pallas_call(
        kernel,
        out_shape=jax.ShapeDtypeStruct((B, S, H), jnp.float32),
        grid_spec=pltpu.PrefetchScalarGridSpec(
            num_scalar_prefetch=0,
            grid=(B,),
            in_specs=[
                pl.BlockSpec((1, S, H), lambda b: (b, 0, 0)),    # embeddings
                pl.BlockSpec((1, 1, S), lambda b: (b, 0, 0)),    # padding mask
                resident((1, H)),                                # emb LN gamma
                resident((1, H)),                                # emb LN beta
                resident((L, H, 3 * H)),                         # Wq|Wk|Wv fused
                resident((L, 1, 3 * H)),                         # bq|bk|bv fused
                resident((L, H, H)),                             # Wo
                resident((L, 1, H)),                             # bo
                resident((L, 1, H)),                             # ln1 gamma
                resident((L, 1, H)),                             # ln1 beta
                resident((L, H, I)),                             # W1
                resident((L, 1, I)),                             # b1
                resident((L, I, H)),                             # W2
                resident((L, 1, H)),                             # b2
                resident((L, 1, H)),                             # ln2 gamma
                resident((L, 1, H)),                             # ln2 beta
            ],
            out_specs=pl.BlockSpec((1, S, H), lambda b: (b, 0, 0)),
        ),
        compiler_params=pltpu.CompilerParams(
            dimension_semantics=("parallel",)),
    )(emb, mask3,
      params["emb_ln_g"].reshape(1, H), params["emb_ln_b"].reshape(1, H),
      st["wqkv"], st["bqkv"], st["wo"], st["bo"],
      st["ln1_g"], st["ln1_b"], st["w1"], st["b1"],
      st["w2"], st["b2"], st["ln2_g"], st["ln2_b"])

    # Pooler head (32x32 + tanh) in plain XLA: lane-sparse output, a
    # pallas_call here would be pure launch overhead.
    cls = sequence_output[:, 0, :]                                     # (B, H)
    pooled_output = jnp.tanh(cls @ params["pool_w"] + params["pool_b"])
    return sequence_output, pooled_output


def encoder_forward(params, cfg, input_ids, token_type_ids, state_positions,
                    attention_mask, op_ids=None, max_update=None,
                    exclude_domain=False):
    B, S = input_ids.shape
    H = cfg.hidden_size
    J = state_positions.shape[1]

    sequence_output, pooled_output = bert_forward(
        params, cfg, input_ids, token_type_ids, attention_mask)

    # state_output = gather(sequence_output, 1, state_pos)
    state_pos = jnp.broadcast_to(state_positions[:, :, None], (B, J, H))
    state_output = jnp.take_along_axis(sequence_output, state_pos, axis=1)   # (B, J, H)

    # Dropout == identity (eval mode). Tiny heads (32x4, 32x5) in plain XLA.
    state_scores = state_output @ params["action_w"] + params["action_b"]    # (B, J, n_op)

    if exclude_domain:
        domain_scores = jnp.zeros((1,), jnp.float32)
    else:
        domain_scores = pooled_output @ params["domain_w"] + params["domain_b"]

    if op_ids is None:
        op_ids = jnp.argmax(state_scores, axis=-1)                           # (B, J)

    upd = (op_ids == UPDATE_ID)                                              # (B, J) bool
    if max_update is None:
        # TODO(synk): the PyTorch reference uses .item() here -> output shape is
        # data-dependent; this single device->host sync is unavoidable. Pass
        # max_update explicitly to keep encoder_forward fully jittable.
        max_update = int(jnp.max(jnp.sum(upd.astype(jnp.int32), axis=-1)))

    # On-device masked-select + zero-pad via one-hot scatter (order-preserving).
    if max_update > 0:
        rank = jnp.cumsum(upd.astype(jnp.int32), axis=-1) - 1                # (B, J)
        onehot = rank[:, :, None] == jnp.arange(max_update)[None, None, :]   # (B, J, M)
        onehot = jnp.where(upd[:, :, None], onehot, False).astype(jnp.float32)
        decoder_inputs = jnp.einsum('bjm,bjh->bmh', onehot, state_output)    # (B, M, H)
    else:
        decoder_inputs = jnp.zeros((B, 0, H), jnp.float32)

    return (domain_scores, state_scores, decoder_inputs,
            sequence_output, pooled_output[None])


# ----------------------------------------------------------------------------
# Demo
# ----------------------------------------------------------------------------
if __name__ == "__main__":
    cfg = Config()
    B, S, J = 2, 16, 8

    key = jax.random.PRNGKey(0)
    kp, k1, k2, k3 = jax.random.split(key, 4)

    params = init_params(kp, cfg)

    input_ids = jax.random.randint(k1, (B, S), 0, cfg.vocab_size, dtype=jnp.int32)
    token_type_ids = jnp.concatenate(
        [jnp.zeros((B, S // 2), jnp.int32), jnp.ones((B, S // 2), jnp.int32)], axis=1)
    state_positions = jax.random.randint(k2, (B, J), 0, S, dtype=jnp.int32)
    attention_mask = jnp.ones((B, S), jnp.float32).at[1, S - 3:].set(0.0)

    outs = encoder_forward(params, cfg, input_ids, token_type_ids,
                           state_positions, attention_mask)

    for o in outs:
        jax.block_until_ready(o)

    domain_scores, state_scores, decoder_inputs, seq_out, pooled = outs
    assert domain_scores.shape == (B, N_DOMAIN)
    assert state_scores.shape == (B, J, N_OP)
    assert seq_out.shape == (B, S, cfg.hidden_size)
    assert pooled.shape == (1, B, cfg.hidden_size)
    assert decoder_inputs.shape[0] == B and decoder_inputs.shape[2] == cfg.hidden_size
    assert bool(jnp.all(jnp.isfinite(seq_out)))

    print("KERNEL_OK")
</pallas_src>

<mosaic_0001>
module attributes {stable_mosaic.version = 11 : i64} {
  func.func @_encoder_kernel(%arg0: i32, %arg1: memref<1x16x32xf32, #tpu.memory_space<vmem>>, %arg2: memref<1x1x16xf32, #tpu.memory_space<vmem>>, %arg3: memref<1x32xf32, #tpu.memory_space<vmem>>, %arg4: memref<1x32xf32, #tpu.memory_space<vmem>>, %arg5: memref<2x32x96xf32, #tpu.memory_space<vmem>>, %arg6: memref<2x1x96xf32, #tpu.memory_space<vmem>>, %arg7: memref<2x32x32xf32, #tpu.memory_space<vmem>>, %arg8: memref<2x1x32xf32, #tpu.memory_space<vmem>>, %arg9: memref<2x1x32xf32, #tpu.memory_space<vmem>>, %arg10: memref<2x1x32xf32, #tpu.memory_space<vmem>>, %arg11: memref<2x32x64xf32, #tpu.memory_space<vmem>>, %arg12: memref<2x1x64xf32, #tpu.memory_space<vmem>>, %arg13: memref<2x64x32xf32, #tpu.memory_space<vmem>>, %arg14: memref<2x1x32xf32, #tpu.memory_space<vmem>>, %arg15: memref<2x1x32xf32, #tpu.memory_space<vmem>>, %arg16: memref<2x1x32xf32, #tpu.memory_space<vmem>>, %arg17: memref<1x16x32xf32, #tpu.memory_space<vmem>>) attributes {dimension_semantics = [#tpu.dimension_semantics<parallel>], iteration_bounds = array<i64: 2>, scalar_prefetch = 0 : i64, scratch_operands = 0 : i64, tpu.core_type = #tpu.core_type<tc>, window_params = [{transform_indices = @transform_0, window_bounds = array<i64: 1, 16, 32>}, {transform_indices = @transform_1, window_bounds = array<i64: 1, 1, 16>}, {pipeline_mode = #tpu.pipeline_mode<synchronous>, transform_indices = @transform_2, window_bounds = array<i64: 1, 32>}, {pipeline_mode = #tpu.pipeline_mode<synchronous>, transform_indices = @transform_3, window_bounds = array<i64: 1, 32>}, {pipeline_mode = #tpu.pipeline_mode<synchronous>, transform_indices = @transform_4, window_bounds = array<i64: 2, 32, 96>}, {pipeline_mode = #tpu.pipeline_mode<synchronous>, transform_indices = @transform_5, window_bounds = array<i64: 2, 1, 96>}, {pipeline_mode = #tpu.pipeline_mode<synchronous>, transform_indices = @transform_6, window_bounds = array<i64: 2, 32, 32>}, {pipeline_mode = #tpu.pipeline_mode<synchronous>, transform_indices = @transform_7, window_bounds = array<i64: 2, 1, 32>}, {pipeline_mode = #tpu.pipeline_mode<synchronous>, transform_indices = @transform_8, window_bounds = array<i64: 2, 1, 32>}, {pipeline_mode = #tpu.pipeline_mode<synchronous>, transform_indices = @transform_9, window_bounds = array<i64: 2, 1, 32>}, {pipeline_mode = #tpu.pipeline_mode<synchronous>, transform_indices = @transform_10, window_bounds = array<i64: 2, 32, 64>}, {pipeline_mode = #tpu.pipeline_mode<synchronous>, transform_indices = @transform_11, window_bounds = array<i64: 2, 1, 64>}, {pipeline_mode = #tpu.pipeline_mode<synchronous>, transform_indices = @transform_12, window_bounds = array<i64: 2, 64, 32>}, {pipeline_mode = #tpu.pipeline_mode<synchronous>, transform_indices = @transform_13, window_bounds = array<i64: 2, 1, 32>}, {pipeline_mode = #tpu.pipeline_mode<synchronous>, transform_indices = @transform_14, window_bounds = array<i64: 2, 1, 32>}, {pipeline_mode = #tpu.pipeline_mode<synchronous>, transform_indices = @transform_15, window_bounds = array<i64: 2, 1, 32>}, {transform_indices = @transform_16, window_bounds = array<i64: 1, 16, 32>}]} {
    %c0 = arith.constant 0 : index
    %c0_0 = arith.constant 0 : index
    %c0_1 = arith.constant 0 : index
    %0 = vector.load %arg1[%c0, %c0_0, %c0_1] : memref<1x16x32xf32, #tpu.memory_space<vmem>>, vector<1x16x32xf32>
    %1 = vector.shape_cast %0 : vector<1x16x32xf32> to vector<16x32xf32>
    %c0_2 = arith.constant 0 : index
    %c0_3 = arith.constant 0 : index
    %2 = vector.load %arg3[%c0_2, %c0_3] : memref<1x32xf32, #tpu.memory_space<vmem>>, vector<1x32xf32>
    %c0_4 = arith.constant 0 : index
    %c0_5 = arith.constant 0 : index
    %3 = vector.load %arg4[%c0_4, %c0_5] : memref<1x32xf32, #tpu.memory_space<vmem>>, vector<1x32xf32>
    %cst = arith.constant dense<0.000000e+00> : vector<16xf32>
    %4 = vector.multi_reduction <add>, %1, %cst [1] : vector<16x32xf32> to vector<16xf32>
    %5 = vector.shape_cast %4 : vector<16xf32> to vector<16x1xf32>
    %cst_6 = arith.constant 3.200000e+01 : f32
    %6 = vector.broadcast %cst_6 : f32 to vector<16x1xf32>
    %7 = arith.divf %5, %6 : vector<16x1xf32>
    %8 = vector.broadcast %7 : vector<16x1xf32> to vector<16x32xf32>
    %9 = arith.subf %1, %8 : vector<16x32xf32>
    %10 = arith.mulf %9, %9 : vector<16x32xf32>
    %cst_7 = arith.constant dense<0.000000e+00> : vector<16xf32>
    %11 = vector.multi_reduction <add>, %10, %cst_7 [1] : vector<16x32xf32> to vector<16xf32>
    %12 = vector.shape_cast %11 : vector<16xf32> to vector<16x1xf32>
    %cst_8 = arith.constant 3.200000e+01 : f32
    %13 = vector.broadcast %cst_8 : f32 to vector<16x1xf32>
    %14 = arith.divf %12, %13 : vector<16x1xf32>
    %cst_9 = arith.constant 9.99999996E-13 : f32
    %15 = vector.broadcast %cst_9 : f32 to vector<16x1xf32>
    %16 = arith.addf %14, %15 : vector<16x1xf32>
    %17 = math.rsqrt %16 : vector<16x1xf32>
    %18 = vector.broadcast %17 : vector<16x1xf32> to vector<16x32xf32>
    %19 = arith.mulf %9, %18 : vector<16x32xf32>
    %20 = vector.broadcast %2 : vector<1x32xf32> to vector<16x32xf32>
    %21 = arith.mulf %19, %20 : vector<16x32xf32>
    %22 = vector.broadcast %3 : vector<1x32xf32> to vector<16x32xf32>
    %23 = arith.addf %21, %22 : vector<16x32xf32>
    %c0_10 = arith.constant 0 : index
    %c0_11 = arith.constant 0 : index
    %c0_12 = arith.constant 0 : index
    %24 = vector.load %arg2[%c0_10, %c0_11, %c0_12] : memref<1x1x16xf32, #tpu.memory_space<vmem>>, vector<1x1x16xf32>
    %25 = vector.shape_cast %24 : vector<1x1x16xf32> to vector<1x16xf32>
    %cst_13 = arith.constant 1.000000e+00 : f32
    %26 = vector.broadcast %cst_13 : f32 to vector<1x16xf32>
    %27 = arith.subf %26, %25 : vector<1x16xf32>
    %cst_14 = arith.constant -1.000000e+04 : f32
    %28 = vector.broadcast %cst_14 : f32 to vector<1x16xf32>
    %29 = arith.mulf %27, %28 : vector<1x16xf32>
    %c0_15 = arith.constant 0 : index
    %c0_16 = arith.constant 0 : index
    %c0_17 = arith.constant 0 : index
    %30 = vector.load %arg5[%c0_15, %c0_16, %c0_17] : memref<2x32x96xf32, #tpu.memory_space<vmem>>, vector<1x32x96xf32>
    %31 = vector.shape_cast %30 : vector<1x32x96xf32> to vector<32x96xf32>
    %cst_18 = arith.constant dense<0.000000e+00> : vector<16x96xf32>
    %32 = tpu.matmul %23, %31, %cst_18 {dimension_numbers = #tpu.dot_dimension_numbers<[1], [0], [0], [1], [0, 0, 1, 1], [], []>} : vector<16x32xf32>, vector<32x96xf32>, vector<16x96xf32> -> vector<16x96xf32>
    %c0_19 = arith.constant 0 : index
    %c0_20 = arith.constant 0 : index
    %c0_21 = arith.constant 0 : index
    %33 = vector.load %arg6[%c0_19, %c0_20, %c0_21] : memref<2x1x96xf32, #tpu.memory_space<vmem>>, vector<1x1x96xf32>
    %34 = vector.shape_cast %33 : vector<1x1x96xf32> to vector<1x96xf32>
    %35 = vector.broadcast %34 : vector<1x96xf32> to vector<16x96xf32>
    %36 = arith.addf %32, %35 : vector<16x96xf32>
    %37 = vector.extract_strided_slice %36 {offsets = [0, 0], sizes = [16, 8], strides = [1, 1]} : vector<16x96xf32> to vector<16x8xf32>
    %38 = vector.extract_strided_slice %36 {offsets = [0, 32], sizes = [16, 8], strides = [1, 1]} : vector<16x96xf32> to vector<16x8xf32>
    %39 = vector.extract_strided_slice %36 {offsets = [0, 64], sizes = [16, 8], strides = [1, 1]} : vector<16x96xf32> to vector<16x8xf32>
    %cst_22 = arith.constant dense<0.000000e+00> : vector<16x16xf32>
    %40 = tpu.matmul %37, %38, %cst_22 {dimension_numbers = #tpu.dot_dimension_numbers<[1], [1], [0], [0], [0, 0, 1, 0], [], []>} : vector<16x8xf32>, vector<16x8xf32>, vector<16x16xf32> -> vector<16x16xf32>
    %cst_23 = arith.constant 0.353553385 : f32
    %41 = vector.broadcast %cst_23 : f32 to vector<16x16xf32>
    %42 = arith.mulf %40, %41 : vector<16x16xf32>
    %43 = vector.broadcast %29 : vector<1x16xf32> to vector<16x16xf32>
    %44 = arith.addf %42, %43 : vector<16x16xf32>
    %cst_24 = arith.constant dense<0xFF800000> : vector<16xf32>
    %45 = vector.multi_reduction <maximumf>, %44, %cst_24 [1] : vector<16x16xf32> to vector<16xf32>
    %46 = vector.shape_cast %45 : vector<16xf32> to vector<16x1xf32>
    %47 = vector.broadcast %46 : vector<16x1xf32> to vector<16x16xf32>
    %48 = arith.subf %44, %47 : vector<16x16xf32>
    %49 = math.exp %48 : vector<16x16xf32>
    %cst_25 = arith.constant dense<0.000000e+00> : vector<16xf32>
    %50 = vector.multi_reduction <add>, %49, %cst_25 [1] : vector<16x16xf32> to vector<16xf32>
    %51 = vector.shape_cast %50 : vector<16xf32> to vector<16x1xf32>
    %52 = tpu.reciprocal %51 {approx = true} : vector<16x1xf32> -> vector<16x1xf32>
    %53 = vector.broadcast %52 : vector<16x1xf32> to vector<16x16xf32>
    %54 = arith.mulf %49, %53 : vector<16x16xf32>
    %cst_26 = arith.constant dense<0.000000e+00> : vector<16x8xf32>
    %55 = tpu.matmul %54, %39, %cst_26 {dimension_numbers = #tpu.dot_dimension_numbers<[1], [0], [0], [1], [0, 0, 1, 1], [], []>} : vector<16x16xf32>, vector<16x8xf32>, vector<16x8xf32> -> vector<16x8xf32>
    %56 = vector.extract_strided_slice %36 {offsets = [0, 8], sizes = [16, 8], strides = [1, 1]} : vector<16x96xf32> to vector<16x8xf32>
    %57 = vector.extract_strided_slice %36 {offsets = [0, 40], sizes = [16, 8], strides = [1, 1]} : vector<16x96xf32> to vector<16x8xf32>
    %58 = vector.extract_strided_slice %36 {offsets = [0, 72], sizes = [16, 8], strides = [1, 1]} : vector<16x96xf32> to vector<16x8xf32>
    %cst_27 = arith.constant dense<0.000000e+00> : vector<16x16xf32>
    %59 = tpu.matmul %56, %57, %cst_27 {dimension_numbers = #tpu.dot_dimension_numbers<[1], [1], [0], [0], [0, 0, 1, 0], [], []>} : vector<16x8xf32>, vector<16x8xf32>, vector<16x16xf32> -> vector<16x16xf32>
    %cst_28 = arith.constant 0.353553385 : f32
    %60 = vector.broadcast %cst_28 : f32 to vector<16x16xf32>
    %61 = arith.mulf %59, %60 : vector<16x16xf32>
    %62 = vector.broadcast %29 : vector<1x16xf32> to vector<16x16xf32>
    %63 = arith.addf %61, %62 : vector<16x16xf32>
    %cst_29 = arith.constant dense<0xFF800000> : vector<16xf32>
    %64 = vector.multi_reduction <maximumf>, %63, %cst_29 [1] : vector<16x16xf32> to vector<16xf32>
    %65 = vector.shape_cast %64 : vector<16xf32> to vector<16x1xf32>
    %66 = vector.broadcast %65 : vector<16x1xf32> to vector<16x16xf32>
    %67 = arith.subf %63, %66 : vector<16x16xf32>
    %68 = math.exp %67 : vector<16x16xf32>
    %cst_30 = arith.constant dense<0.000000e+00> : vector<16xf32>
    %69 = vector.multi_reduction <add>, %68, %cst_30 [1] : vector<16x16xf32> to vector<16xf32>
    %70 = vector.shape_cast %69 : vector<16xf32> to vector<16x1xf32>
    %71 = tpu.reciprocal %70 {approx = true} : vector<16x1xf32> -> vector<16x1xf32>
    %72 = vector.broadcast %71 : vector<16x1xf32> to vector<16x16xf32>
    %73 = arith.mulf %68, %72 : vector<16x16xf32>
    %cst_31 = arith.constant dense<0.000000e+00> : vector<16x8xf32>
    %74 = tpu.matmul %73, %58, %cst_31 {dimension_numbers = #tpu.dot_dimension_numbers<[1], [0], [0], [1], [0, 0, 1, 1], [], []>} : vector<16x16xf32>, vector<16x8xf32>, vector<16x8xf32> -> vector<16x8xf32>
    %75 = vector.extract_strided_slice %36 {offsets = [0, 16], sizes = [16, 8], strides = [1, 1]} : vector<16x96xf32> to vector<16x8xf32>
    %76 = vector.extract_strided_slice %36 {offsets = [0, 48], sizes = [16, 8], strides = [1, 1]} : vector<16x96xf32> to vector<16x8xf32>
    %77 = vector.extract_strided_slice %36 {offsets = [0, 80], sizes = [16, 8], strides = [1, 1]} : vector<16x96xf32> to vector<16x8xf32>
    %cst_32 = arith.constant dense<0.000000e+00> : vector<16x16xf32>
    %78 = tpu.matmul %75, %76, %cst_32 {dimension_numbers = #tpu.dot_dimension_numbers<[1], [1], [0], [0], [0, 0, 1, 0], [], []>} : vector<16x8xf32>, vector<16x8xf32>, vector<16x16xf32> -> vector<16x16xf32>
    %cst_33 = arith.constant 0.353553385 : f32
    %79 = vector.broadcast %cst_33 : f32 to vector<16x16xf32>
    %80 = arith.mulf %78, %79 : vector<16x16xf32>
    %81 = vector.broadcast %29 : vector<1x16xf32> to vector<16x16xf32>
    %82 = arith.addf %80, %81 : vector<16x16xf32>
    %cst_34 = arith.constant dense<0xFF800000> : vector<16xf32>
    %83 = vector.multi_reduction <maximumf>, %82, %cst_34 [1] : vector<16x16xf32> to vector<16xf32>
    %84 = vector.shape_cast %83 : vector<16xf32> to vector<16x1xf32>
    %85 = vector.broadcast %84 : vector<16x1xf32> to vector<16x16xf32>
    %86 = arith.subf %82, %85 : vector<16x16xf32>
    %87 = math.exp %86 : vector<16x16xf32>
    %cst_35 = arith.constant dense<0.000000e+00> : vector<16xf32>
    %88 = vector.multi_reduction <add>, %87, %cst_35 [1] : vector<16x16xf32> to vector<16xf32>
    %89 = vector.shape_cast %88 : vector<16xf32> to vector<16x1xf32>
    %90 = tpu.reciprocal %89 {approx = true} : vector<16x1xf32> -> vector<16x1xf32>
    %91 = vector.broadcast %90 : vector<16x1xf32> to vector<16x16xf32>
    %92 = arith.mulf %87, %91 : vector<16x16xf32>
    %cst_36 = arith.constant dense<0.000000e+00> : vector<16x8xf32>
    %93 = tpu.matmul %92, %77, %cst_36 {dimension_numbers = #tpu.dot_dimension_numbers<[1], [0], [0], [1], [0, 0, 1, 1], [], []>} : vector<16x16xf32>, vector<16x8xf32>, vector<16x8xf32> -> vector<16x8xf32>
    %94 = vector.extract_strided_slice %36 {offsets = [0, 24], sizes = [16, 8], strides = [1, 1]} : vector<16x96xf32> to vector<16x8xf32>
    %95 = vector.extract_strided_slice %36 {offsets = [0, 56], sizes = [16, 8], strides = [1, 1]} : vector<16x96xf32> to vector<16x8xf32>
    %96 = vector.extract_strided_slice %36 {offsets = [0, 88], sizes = [16, 8], strides = [1, 1]} : vector<16x96xf32> to vector<16x8xf32>
    %cst_37 = arith.constant dense<0.000000e+00> : vector<16x16xf32>
    %97 = tpu.matmul %94, %95, %cst_37 {dimension_numbers = #tpu.dot_dimension_numbers<[1], [1], [0], [0], [0, 0, 1, 0], [], []>} : vector<16x8xf32>, vector<16x8xf32>, vector<16x16xf32> -> vector<16x16xf32>
    %cst_38 = arith.constant 0.353553385 : f32
    %98 = vector.broadcast %cst_38 : f32 to vector<16x16xf32>
    %99 = arith.mulf %97, %98 : vector<16x16xf32>
    %100 = vector.broadcast %29 : vector<1x16xf32> to vector<16x16xf32>
    %101 = arith.addf %99, %100 : vector<16x16xf32>
    %cst_39 = arith.constant dense<0xFF800000> : vector<16xf32>
    %102 = vector.multi_reduction <maximumf>, %101, %cst_39 [1] : vector<16x16xf32> to vector<16xf32>
    %103 = vector.shape_cast %102 : vector<16xf32> to vector<16x1xf32>
    %104 = vector.broadcast %103 : vector<16x1xf32> to vector<16x16xf32>
    %105 = arith.subf %101, %104 : vector<16x16xf32>
    %106 = math.exp %105 : vector<16x16xf32>
    %cst_40 = arith.constant dense<0.000000e+00> : vector<16xf32>
    %107 = vector.multi_reduction <add>, %106, %cst_40 [1] : vector<16x16xf32> to vector<16xf32>
    %108 = vector.shape_cast %107 : vector<16xf32> to vector<16x1xf32>
    %109 = tpu.reciprocal %108 {approx = true} : vector<16x1xf32> -> vector<16x1xf32>
    %110 = vector.broadcast %109 : vector<16x1xf32> to vector<16x16xf32>
    %111 = arith.mulf %106, %110 : vector<16x16xf32>
    %cst_41 = arith.constant dense<0.000000e+00> : vector<16x8xf32>
    %112 = tpu.matmul %111, %96, %cst_41 {dimension_numbers = #tpu.dot_dimension_numbers<[1], [0], [0], [1], [0, 0, 1, 1], [], []>} : vector<16x16xf32>, vector<16x8xf32>, vector<16x8xf32> -> vector<16x8xf32>
    %113 = tpu.concatenate %55, %74, %93, %112 in 1 : vector<16x8xf32>, vector<16x8xf32>, vector<16x8xf32>, vector<16x8xf32> -> vector<16x32xf32>
    %c0_42 = arith.constant 0 : index
    %c0_43 = arith.constant 0 : index
    %c0_44 = arith.constant 0 : index
    %114 = vector.load %arg7[%c0_42, %c0_43, %c0_44] : memref<2x32x32xf32, #tpu.memory_space<vmem>>, vector<1x32x32xf32>
    %115 = vector.shape_cast %114 : vector<1x32x32xf32> to vector<32x32xf32>
    %cst_45 = arith.constant dense<0.000000e+00> : vector<16x32xf32>
    %116 = tpu.matmul %113, %115, %cst_45 {dimension_numbers = #tpu.dot_dimension_numbers<[1], [0], [0], [1], [0, 0, 1, 1], [], []>} : vector<16x32xf32>, vector<32x32xf32>, vector<16x32xf32> -> vector<16x32xf32>
    %c0_46 = arith.constant 0 : index
    %c0_47 = arith.constant 0 : index
    %c0_48 = arith.constant 0 : index
    %117 = vector.load %arg8[%c0_46, %c0_47, %c0_48] : memref<2x1x32xf32, #tpu.memory_space<vmem>>, vector<1x1x32xf32>
    %118 = vector.shape_cast %117 : vector<1x1x32xf32> to vector<1x32xf32>
    %119 = vector.broadcast %118 : vector<1x32xf32> to vector<16x32xf32>
    %120 = arith.addf %116, %119 : vector<16x32xf32>
    %121 = arith.addf %23, %120 : vector<16x32xf32>
    %c0_49 = arith.constant 0 : index
    %c0_50 = arith.constant 0 : index
    %c0_51 = arith.constant 0 : index
    %122 = vector.load %arg9[%c0_49, %c0_50, %c0_51] : memref<2x1x32xf32, #tpu.memory_space<vmem>>, vector<1x1x32xf32>
    %123 = vector.shape_cast %122 : vector<1x1x32xf32> to vector<1x32xf32>
    %c0_52 = arith.constant 0 : index
    %c0_53 = arith.constant 0 : index
    %c0_54 = arith.constant 0 : index
    %124 = vector.load %arg10[%c0_52, %c0_53, %c0_54] : memref<2x1x32xf32, #tpu.memory_space<vmem>>, vector<1x1x32xf32>
    %125 = vector.shape_cast %124 : vector<1x1x32xf32> to vector<1x32xf32>
    %cst_55 = arith.constant dense<0.000000e+00> : vector<16xf32>
    %126 = vector.multi_reduction <add>, %121, %cst_55 [1] : vector<16x32xf32> to vector<16xf32>
    %127 = vector.shape_cast %126 : vector<16xf32> to vector<16x1xf32>
    %cst_56 = arith.constant 3.200000e+01 : f32
    %128 = vector.broadcast %cst_56 : f32 to vector<16x1xf32>
    %129 = arith.divf %127, %128 : vector<16x1xf32>
    %130 = vector.broadcast %129 : vector<16x1xf32> to vector<16x32xf32>
    %131 = arith.subf %121, %130 : vector<16x32xf32>
    %132 = arith.mulf %131, %131 : vector<16x32xf32>
    %cst_57 = arith.constant dense<0.000000e+00> : vector<16xf32>
    %133 = vector.multi_reduction <add>, %132, %cst_57 [1] : vector<16x32xf32> to vector<16xf32>
    %134 = vector.shape_cast %133 : vector<16xf32> to vector<16x1xf32>
    %cst_58 = arith.constant 3.200000e+01 : f32
    %135 = vector.broadcast %cst_58 : f32 to vector<16x1xf32>
    %136 = arith.divf %134, %135 : vector<16x1xf32>
    %cst_59 = arith.constant 9.99999996E-13 : f32
    %137 = vector.broadcast %cst_59 : f32 to vector<16x1xf32>
    %138 = arith.addf %136, %137 : vector<16x1xf32>
    %139 = math.rsqrt %138 : vector<16x1xf32>
    %140 = vector.broadcast %139 : vector<16x1xf32> to vector<16x32xf32>
    %141 = arith.mulf %131, %140 : vector<16x32xf32>
    %142 = vector.broadcast %123 : vector<1x32xf32> to vector<16x32xf32>
    %143 = arith.mulf %141, %142 : vector<16x32xf32>
    %144 = vector.broadcast %125 : vector<1x32xf32> to vector<16x32xf32>
    %145 = arith.addf %143, %144 : vector<16x32xf32>
    %c0_60 = arith.constant 0 : index
    %c0_61 = arith.constant 0 : index
    %c0_62 = arith.constant 0 : index
    %146 = vector.load %arg11[%c0_60, %c0_61, %c0_62] : memref<2x32x64xf32, #tpu.memory_space<vmem>>, vector<1x32x64xf32>
    %147 = vector.shape_cast %146 : vector<1x32x64xf32> to vector<32x64xf32>
    %cst_63 = arith.constant dense<0.000000e+00> : vector<16x64xf32>
    %148 = tpu.matmul %145, %147, %cst_63 {dimension_numbers = #tpu.dot_dimension_numbers<[1], [0], [0], [1], [0, 0, 1, 1], [], []>} : vector<16x32xf32>, vector<32x64xf32>, vector<16x64xf32> -> vector<16x64xf32>
    %c0_64 = arith.constant 0 : index
    %c0_65 = arith.constant 0 : index
    %c0_66 = arith.constant 0 : index
    %149 = vector.load %arg12[%c0_64, %c0_65, %c0_66] : memref<2x1x64xf32, #tpu.memory_space<vmem>>, vector<1x1x64xf32>
    %150 = vector.shape_cast %149 : vector<1x1x64xf32> to vector<1x64xf32>
    %151 = vector.broadcast %150 : vector<1x64xf32> to vector<16x64xf32>
    %152 = arith.addf %148, %151 : vector<16x64xf32>
    %cst_67 = arith.constant 5.000000e-01 : f32
    %153 = vector.broadcast %cst_67 : f32 to vector<16x64xf32>
    %154 = arith.mulf %153, %152 : vector<16x64xf32>
    %cst_68 = arith.constant 0.707106769 : f32
    %155 = vector.broadcast %cst_68 : f32 to vector<16x64xf32>
    %156 = arith.mulf %152, %155 : vector<16x64xf32>
    %157 = math.erf %156 : vector<16x64xf32>
    %cst_69 = arith.constant 1.000000e+00 : f32
    %158 = vector.broadcast %cst_69 : f32 to vector<16x64xf32>
    %159 = arith.addf %158, %157 : vector<16x64xf32>
    %160 = arith.mulf %154, %159 : vector<16x64xf32>
    %c0_70 = arith.constant 0 : index
    %c0_71 = arith.constant 0 : index
    %c0_72 = arith.constant 0 : index
    %161 = vector.load %arg13[%c0_70, %c0_71, %c0_72] : memref<2x64x32xf32, #tpu.memory_space<vmem>>, vector<1x64x32xf32>
    %162 = vector.shape_cast %161 : vector<1x64x32xf32> to vector<64x32xf32>
    %cst_73 = arith.constant dense<0.000000e+00> : vector<16x32xf32>
    %163 = tpu.matmul %160, %162, %cst_73 {dimension_numbers = #tpu.dot_dimension_numbers<[1], [0], [0], [1], [0, 0, 1, 1], [], []>} : vector<16x64xf32>, vector<64x32xf32>, vector<16x32xf32> -> vector<16x32xf32>
    %c0_74 = arith.constant 0 : index
    %c0_75 = arith.constant 0 : index
    %c0_76 = arith.constant 0 : index
    %164 = vector.load %arg14[%c0_74, %c0_75, %c0_76] : memref<2x1x32xf32, #tpu.memory_space<vmem>>, vector<1x1x32xf32>
    %165 = vector.shape_cast %164 : vector<1x1x32xf32> to vector<1x32xf32>
    %166 = vector.broadcast %165 : vector<1x32xf32> to vector<16x32xf32>
    %167 = arith.addf %163, %166 : vector<16x32xf32>
    %168 = arith.addf %145, %167 : vector<16x32xf32>
    %c0_77 = arith.constant 0 : index
    %c0_78 = arith.constant 0 : index
    %c0_79 = arith.constant 0 : index
    %169 = vector.load %arg15[%c0_77, %c0_78, %c0_79] : memref<2x1x32xf32, #tpu.memory_space<vmem>>, vector<1x1x32xf32>
    %170 = vector.shape_cast %169 : vector<1x1x32xf32> to vector<1x32xf32>
    %c0_80 = arith.constant 0 : index
    %c0_81 = arith.constant 0 : index
    %c0_82 = arith.constant 0 : index
    %171 = vector.load %arg16[%c0_80, %c0_81, %c0_82] : memref<2x1x32xf32, #tpu.memory_space<vmem>>, vector<1x1x32xf32>
    %172 = vector.shape_cast %171 : vector<1x1x32xf32> to vector<1x32xf32>
    %cst_83 = arith.constant dense<0.000000e+00> : vector<16xf32>
    %173 = vector.multi_reduction <add>, %168, %cst_83 [1] : vector<16x32xf32> to vector<16xf32>
    %174 = vector.shape_cast %173 : vector<16xf32> to vector<16x1xf32>
    %cst_84 = arith.constant 3.200000e+01 : f32
    %175 = vector.broadcast %cst_84 : f32 to vector<16x1xf32>
    %176 = arith.divf %174, %175 : vector<16x1xf32>
    %177 = vector.broadcast %176 : vector<16x1xf32> to vector<16x32xf32>
    %178 = arith.subf %168, %177 : vector<16x32xf32>
    %179 = arith.mulf %178, %178 : vector<16x32xf32>
    %cst_85 = arith.constant dense<0.000000e+00> : vector<16xf32>
    %180 = vector.multi_reduction <add>, %179, %cst_85 [1] : vector<16x32xf32> to vector<16xf32>
    %181 = vector.shape_cast %180 : vector<16xf32> to vector<16x1xf32>
    %cst_86 = arith.constant 3.200000e+01 : f32
    %182 = vector.broadcast %cst_86 : f32 to vector<16x1xf32>
    %183 = arith.divf %181, %182 : vector<16x1xf32>
    %cst_87 = arith.constant 9.99999996E-13 : f32
    %184 = vector.broadcast %cst_87 : f32 to vector<16x1xf32>
    %185 = arith.addf %183, %184 : vector<16x1xf32>
    %186 = math.rsqrt %185 : vector<16x1xf32>
    %187 = vector.broadcast %186 : vector<16x1xf32> to vector<16x32xf32>
    %188 = arith.mulf %178, %187 : vector<16x32xf32>
    %189 = vector.broadcast %170 : vector<1x32xf32> to vector<16x32xf32>
    %190 = arith.mulf %188, %189 : vector<16x32xf32>
    %191 = vector.broadcast %172 : vector<1x32xf32> to vector<16x32xf32>
    %192 = arith.addf %190, %191 : vector<16x32xf32>
    %c1 = arith.constant 1 : index
    %c0_88 = arith.constant 0 : index
    %c0_89 = arith.constant 0 : index
    %193 = vector.load %arg5[%c1, %c0_88, %c0_89] : memref<2x32x96xf32, #tpu.memory_space<vmem>>, vector<1x32x96xf32>
    %194 = vector.shape_cast %193 : vector<1x32x96xf32> to vector<32x96xf32>
    %cst_90 = arith.constant dense<0.000000e+00> : vector<16x96xf32>
    %195 = tpu.matmul %192, %194, %cst_90 {dimension_numbers = #tpu.dot_dimension_numbers<[1], [0], [0], [1], [0, 0, 1, 1], [], []>} : vector<16x32xf32>, vector<32x96xf32>, vector<16x96xf32> -> vector<16x96xf32>
    %c1_91 = arith.constant 1 : index
    %c0_92 = arith.constant 0 : index
    %c0_93 = arith.constant 0 : index
    %196 = vector.load %arg6[%c1_91, %c0_92, %c0_93] : memref<2x1x96xf32, #tpu.memory_space<vmem>>, vector<1x1x96xf32>
    %197 = vector.shape_cast %196 : vector<1x1x96xf32> to vector<1x96xf32>
    %198 = vector.broadcast %197 : vector<1x96xf32> to vector<16x96xf32>
    %199 = arith.addf %195, %198 : vector<16x96xf32>
    %200 = vector.extract_strided_slice %199 {offsets = [0, 0], sizes = [16, 8], strides = [1, 1]} : vector<16x96xf32> to vector<16x8xf32>
    %201 = vector.extract_strided_slice %199 {offsets = [0, 32], sizes = [16, 8], strides = [1, 1]} : vector<16x96xf32> to vector<16x8xf32>
    %202 = vector.extract_strided_slice %199 {offsets = [0, 64], sizes = [16, 8], strides = [1, 1]} : vector<16x96xf32> to vector<16x8xf32>
    %cst_94 = arith.constant dense<0.000000e+00> : vector<16x16xf32>
    %203 = tpu.matmul %200, %201, %cst_94 {dimension_numbers = #tpu.dot_dimension_numbers<[1], [1], [0], [0], [0, 0, 1, 0], [], []>} : vector<16x8xf32>, vector<16x8xf32>, vector<16x16xf32> -> vector<16x16xf32>
    %cst_95 = arith.constant 0.353553385 : f32
    %204 = vector.broadcast %cst_95 : f32 to vector<16x16xf32>
    %205 = arith.mulf %203, %204 : vector<16x16xf32>
    %206 = vector.broadcast %29 : vector<1x16xf32> to vector<16x16xf32>
    %207 = arith.addf %205, %206 : vector<16x16xf32>
    %cst_96 = arith.constant dense<0xFF800000> : vector<16xf32>
    %208 = vector.multi_reduction <maximumf>, %207, %cst_96 [1] : vector<16x16xf32> to vector<16xf32>
    %209 = vector.shape_cast %208 : vector<16xf32> to vector<16x1xf32>
    %210 = vector.broadcast %209 : vector<16x1xf32> to vector<16x16xf32>
    %211 = arith.subf %207, %210 : vector<16x16xf32>
    %212 = math.exp %211 : vector<16x16xf32>
    %cst_97 = arith.constant dense<0.000000e+00> : vector<16xf32>
    %213 = vector.multi_reduction <add>, %212, %cst_97 [1] : vector<16x16xf32> to vector<16xf32>
    %214 = vector.shape_cast %213 : vector<16xf32> to vector<16x1xf32>
    %215 = tpu.reciprocal %214 {approx = true} : vector<16x1xf32> -> vector<16x1xf32>
    %216 = vector.broadcast %215 : vector<16x1xf32> to vector<16x16xf32>
    %217 = arith.mulf %212, %216 : vector<16x16xf32>
    %cst_98 = arith.constant dense<0.000000e+00> : vector<16x8xf32>
    %218 = tpu.matmul %217, %202, %cst_98 {dimension_numbers = #tpu.dot_dimension_numbers<[1], [0], [0], [1], [0, 0, 1, 1], [], []>} : vector<16x16xf32>, vector<16x8xf32>, vector<16x8xf32> -> vector<16x8xf32>
    %219 = vector.extract_strided_slice %199 {offsets = [0, 8], sizes = [16, 8], strides = [1, 1]} : vector<16x96xf32> to vector<16x8xf32>
    %220 = vector.extract_strided_slice %199 {offsets = [0, 40], sizes = [16, 8], strides = [1, 1]} : vector<16x96xf32> to vector<16x8xf32>
    %221 = vector.extract_strided_slice %199 {offsets = [0, 72], sizes = [16, 8], strides = [1, 1]} : vector<16x96xf32> to vector<16x8xf32>
    %cst_99 = arith.constant dense<0.000000e+00> : vector<16x16xf32>
    %222 = tpu.matmul %219, %220, %cst_99 {dimension_numbers = #tpu.dot_dimension_numbers<[1], [1], [0], [0], [0, 0, 1, 0], [], []>} : vector<16x8xf32>, vector<16x8xf32>, vector<16x16xf32> -> vector<16x16xf32>
    %cst_100 = arith.constant 0.353553385 : f32
    %223 = vector.broadcast %cst_100 : f32 to vector<16x16xf32>
    %224 = arith.mulf %222, %223 : vector<16x16xf32>
    %225 = vector.broadcast %29 : vector<1x16xf32> to vector<16x16xf32>
    %226 = arith.addf %224, %225 : vector<16x16xf32>
    %cst_101 = arith.constant dense<0xFF800000> : vector<16xf32>
    %227 = vector.multi_reduction <maximumf>, %226, %cst_101 [1] : vector<16x16xf32> to vector<16xf32>
    %228 = vector.shape_cast %227 : vector<16xf32> to vector<16x1xf32>
    %229 = vector.broadcast %228 : vector<16x1xf32> to vector<16x16xf32>
    %230 = arith.subf %226, %229 : vector<16x16xf32>
    %231 = math.exp %230 : vector<16x16xf32>
    %cst_102 = arith.constant dense<0.000000e+00> : vector<16xf32>
    %232 = vector.multi_reduction <add>, %231, %cst_102 [1] : vector<16x16xf32> to vector<16xf32>
    %233 = vector.shape_cast %232 : vector<16xf32> to vector<16x1xf32>
    %234 = tpu.reciprocal %233 {approx = true} : vector<16x1xf32> -> vector<16x1xf32>
    %235 = vector.broadcast %234 : vector<16x1xf32> to vector<16x16xf32>
    %236 = arith.mulf %231, %235 : vector<16x16xf32>
    %cst_103 = arith.constant dense<0.000000e+00> : vector<16x8xf32>
    %237 = tpu.matmul %236, %221, %cst_103 {dimension_numbers = #tpu.dot_dimension_numbers<[1], [0], [0], [1], [0, 0, 1, 1], [], []>} : vector<16x16xf32>, vector<16x8xf32>, vector<16x8xf32> -> vector<16x8xf32>
    %238 = vector.extract_strided_slice %199 {offsets = [0, 16], sizes = [16, 8], strides = [1, 1]} : vector<16x96xf32> to vector<16x8xf32>
    %239 = vector.extract_strided_slice %199 {offsets = [0, 48], sizes = [16, 8], strides = [1, 1]} : vector<16x96xf32> to vector<16x8xf32>
    %240 = vector.extract_strided_slice %199 {offsets = [0, 80], sizes = [16, 8], strides = [1, 1]} : vector<16x96xf32> to vector<16x8xf32>
    %cst_104 = arith.constant dense<0.000000e+00> : vector<16x16xf32>
    %241 = tpu.matmul %238, %239, %cst_104 {dimension_numbers = #tpu.dot_dimension_numbers<[1], [1], [0], [0], [0, 0, 1, 0], [], []>} : vector<16x8xf32>, vector<16x8xf32>, vector<16x16xf32> -> vector<16x16xf32>
    %cst_105 = arith.constant 0.353553385 : f32
    %242 = vector.broadcast %cst_105 : f32 to vector<16x16xf32>
    %243 = arith.mulf %241, %242 : vector<16x16xf32>
    %244 = vector.broadcast %29 : vector<1x16xf32> to vector<16x16xf32>
    %245 = arith.addf %243, %244 : vector<16x16xf32>
    %cst_106 = arith.constant dense<0xFF800000> : vector<16xf32>
    %246 = vector.multi_reduction <maximumf>, %245, %cst_106 [1] : vector<16x16xf32> to vector<16xf32>
    %247 = vector.shape_cast %246 : vector<16xf32> to vector<16x1xf32>
    %248 = vector.broadcast %247 : vector<16x1xf32> to vector<16x16xf32>
    %249 = arith.subf %245, %248 : vector<16x16xf32>
    %250 = math.exp %249 : vector<16x16xf32>
    %cst_107 = arith.constant dense<0.000000e+00> : vector<16xf32>
    %251 = vector.multi_reduction <add>, %250, %cst_107 [1] : vector<16x16xf32> to vector<16xf32>
    %252 = vector.shape_cast %251 : vector<16xf32> to vector<16x1xf32>
    %253 = tpu.reciprocal %252 {approx = true} : vector<16x1xf32> -> vector<16x1xf32>
    %254 = vector.broadcast %253 : vector<16x1xf32> to vector<16x16xf32>
    %255 = arith.mulf %250, %254 : vector<16x16xf32>
    %cst_108 = arith.constant dense<0.000000e+00> : vector<16x8xf32>
    %256 = tpu.matmul %255, %240, %cst_108 {dimension_numbers = #tpu.dot_dimension_numbers<[1], [0], [0], [1], [0, 0, 1, 1], [], []>} : vector<16x16xf32>, vector<16x8xf32>, vector<16x8xf32> -> vector<16x8xf32>
    %257 = vector.extract_strided_slice %199 {offsets = [0, 24], sizes = [16, 8], strides = [1, 1]} : vector<16x96xf32> to vector<16x8xf32>
    %258 = vector.extract_strided_slice %199 {offsets = [0, 56], sizes = [16, 8], strides = [1, 1]} : vector<16x96xf32> to vector<16x8xf32>
    %259 = vector.extract_strided_slice %199 {offsets = [0, 88], sizes = [16, 8], strides = [1, 1]} : vector<16x96xf32> to vector<16x8xf32>
    %cst_109 = arith.constant dense<0.000000e+00> : vector<16x16xf32>
    %260 = tpu.matmul %257, %258, %cst_109 {dimension_numbers = #tpu.dot_dimension_numbers<[1], [1], [0], [0], [0, 0, 1, 0], [], []>} : vector<16x8xf32>, vector<16x8xf32>, vector<16x16xf32> -> vector<16x16xf32>
    %cst_110 = arith.constant 0.353553385 : f32
    %261 = vector.broadcast %cst_110 : f32 to vector<16x16xf32>
    %262 = arith.mulf %260, %261 : vector<16x16xf32>
    %263 = vector.broadcast %29 : vector<1x16xf32> to vector<16x16xf32>
    %264 = arith.addf %262, %263 : vector<16x16xf32>
    %cst_111 = arith.constant dense<0xFF800000> : vector<16xf32>
    %265 = vector.multi_reduction <maximumf>, %264, %cst_111 [1] : vector<16x16xf32> to vector<16xf32>
    %266 = vector.shape_cast %265 : vector<16xf32> to vector<16x1xf32>
    %267 = vector.broadcast %266 : vector<16x1xf32> to vector<16x16xf32>
    %268 = arith.subf %264, %267 : vector<16x16xf32>
    %269 = math.exp %268 : vector<16x16xf32>
    %cst_112 = arith.constant dense<0.000000e+00> : vector<16xf32>
    %270 = vector.multi_reduction <add>, %269, %cst_112 [1] : vector<16x16xf32> to vector<16xf32>
    %271 = vector.shape_cast %270 : vector<16xf32> to vector<16x1xf32>
    %272 = tpu.reciprocal %271 {approx = true} : vector<16x1xf32> -> vector<16x1xf32>
    %273 = vector.broadcast %272 : vector<16x1xf32> to vector<16x16xf32>
    %274 = arith.mulf %269, %273 : vector<16x16xf32>
    %cst_113 = arith.constant dense<0.000000e+00> : vector<16x8xf32>
    %275 = tpu.matmul %274, %259, %cst_113 {dimension_numbers = #tpu.dot_dimension_numbers<[1], [0], [0], [1], [0, 0, 1, 1], [], []>} : vector<16x16xf32>, vector<16x8xf32>, vector<16x8xf32> -> vector<16x8xf32>
    %276 = tpu.concatenate %218, %237, %256, %275 in 1 : vector<16x8xf32>, vector<16x8xf32>, vector<16x8xf32>, vector<16x8xf32> -> vector<16x32xf32>
    %c1_114 = arith.constant 1 : index
    %c0_115 = arith.constant 0 : index
    %c0_116 = arith.constant 0 : index
    %277 = vector.load %arg7[%c1_114, %c0_115, %c0_116] : memref<2x32x32xf32, #tpu.memory_space<vmem>>, vector<1x32x32xf32>
    %278 = vector.shape_cast %277 : vector<1x32x32xf32> to vector<32x32xf32>
    %cst_117 = arith.constant dense<0.000000e+00> : vector<16x32xf32>
    %279 = tpu.matmul %276, %278, %cst_117 {dimension_numbers = #tpu.dot_dimension_numbers<[1], [0], [0], [1], [0, 0, 1, 1], [], []>} : vector<16x32xf32>, vector<32x32xf32>, vector<16x32xf32> -> vector<16x32xf32>
    %c1_118 = arith.constant 1 : index
    %c0_119 = arith.constant 0 : index
    %c0_120 = arith.constant 0 : index
    %280 = vector.load %arg8[%c1_118, %c0_119, %c0_120] : memref<2x1x32xf32, #tpu.memory_space<vmem>>, vector<1x1x32xf32>
    %281 = vector.shape_cast %280 : vector<1x1x32xf32> to vector<1x32xf32>
    %282 = vector.broadcast %281 : vector<1x32xf32> to vector<16x32xf32>
    %283 = arith.addf %279, %282 : vector<16x32xf32>
    %284 = arith.addf %192, %283 : vector<16x32xf32>
    %c1_121 = arith.constant 1 : index
    %c0_122 = arith.constant 0 : index
    %c0_123 = arith.constant 0 : index
    %285 = vector.load %arg9[%c1_121, %c0_122, %c0_123] : memref<2x1x32xf32, #tpu.memory_space<vmem>>, vector<1x1x32xf32>
    %286 = vector.shape_cast %285 : vector<1x1x32xf32> to vector<1x32xf32>
    %c1_124 = arith.constant 1 : index
    %c0_125 = arith.constant 0 : index
    %c0_126 = arith.constant 0 : index
    %287 = vector.load %arg10[%c1_124, %c0_125, %c0_126] : memref<2x1x32xf32, #tpu.memory_space<vmem>>, vector<1x1x32xf32>
    %288 = vector.shape_cast %287 : vector<1x1x32xf32> to vector<1x32xf32>
    %cst_127 = arith.constant dense<0.000000e+00> : vector<16xf32>
    %289 = vector.multi_reduction <add>, %284, %cst_127 [1] : vector<16x32xf32> to vector<16xf32>
    %290 = vector.shape_cast %289 : vector<16xf32> to vector<16x1xf32>
    %cst_128 = arith.constant 3.200000e+01 : f32
    %291 = vector.broadcast %cst_128 : f32 to vector<16x1xf32>
    %292 = arith.divf %290, %291 : vector<16x1xf32>
    %293 = vector.broadcast %292 : vector<16x1xf32> to vector<16x32xf32>
    %294 = arith.subf %284, %293 : vector<16x32xf32>
    %295 = arith.mulf %294, %294 : vector<16x32xf32>
    %cst_129 = arith.constant dense<0.000000e+00> : vector<16xf32>
    %296 = vector.multi_reduction <add>, %295, %cst_129 [1] : vector<16x32xf32> to vector<16xf32>
    %297 = vector.shape_cast %296 : vector<16xf32> to vector<16x1xf32>
    %cst_130 = arith.constant 3.200000e+01 : f32
    %298 = vector.broadcast %cst_130 : f32 to vector<16x1xf32>
    %299 = arith.divf %297, %298 : vector<16x1xf32>
    %cst_131 = arith.constant 9.99999996E-13 : f32
    %300 = vector.broadcast %cst_131 : f32 to vector<16x1xf32>
    %301 = arith.addf %299, %300 : vector<16x1xf32>
    %302 = math.rsqrt %301 : vector<16x1xf32>
    %303 = vector.broadcast %302 : vector<16x1xf32> to vector<16x32xf32>
    %304 = arith.mulf %294, %303 : vector<16x32xf32>
    %305 = vector.broadcast %286 : vector<1x32xf32> to vector<16x32xf32>
    %306 = arith.mulf %304, %305 : vector<16x32xf32>
    %307 = vector.broadcast %288 : vector<1x32xf32> to vector<16x32xf32>
    %308 = arith.addf %306, %307 : vector<16x32xf32>
    %c1_132 = arith.constant 1 : index
    %c0_133 = arith.constant 0 : index
    %c0_134 = arith.constant 0 : index
    %309 = vector.load %arg11[%c1_132, %c0_133, %c0_134] : memref<2x32x64xf32, #tpu.memory_space<vmem>>, vector<1x32x64xf32>
    %310 = vector.shape_cast %309 : vector<1x32x64xf32> to vector<32x64xf32>
    %cst_135 = arith.constant dense<0.000000e+00> : vector<16x64xf32>
    %311 = tpu.matmul %308, %310, %cst_135 {dimension_numbers = #tpu.dot_dimension_numbers<[1], [0], [0], [1], [0, 0, 1, 1], [], []>} : vector<16x32xf32>, vector<32x64xf32>, vector<16x64xf32> -> vector<16x64xf32>
    %c1_136 = arith.constant 1 : index
    %c0_137 = arith.constant 0 : index
    %c0_138 = arith.constant 0 : index
    %312 = vector.load %arg12[%c1_136, %c0_137, %c0_138] : memref<2x1x64xf32, #tpu.memory_space<vmem>>, vector<1x1x64xf32>
    %313 = vector.shape_cast %312 : vector<1x1x64xf32> to vector<1x64xf32>
    %314 = vector.broadcast %313 : vector<1x64xf32> to vector<16x64xf32>
    %315 = arith.addf %311, %314 : vector<16x64xf32>
    %cst_139 = arith.constant 5.000000e-01 : f32
    %316 = vector.broadcast %cst_139 : f32 to vector<16x64xf32>
    %317 = arith.mulf %316, %315 : vector<16x64xf32>
    %cst_140 = arith.constant 0.707106769 : f32
    %318 = vector.broadcast %cst_140 : f32 to vector<16x64xf32>
    %319 = arith.mulf %315, %318 : vector<16x64xf32>
    %320 = math.erf %319 : vector<16x64xf32>
    %cst_141 = arith.constant 1.000000e+00 : f32
    %321 = vector.broadcast %cst_141 : f32 to vector<16x64xf32>
    %322 = arith.addf %321, %320 : vector<16x64xf32>
    %323 = arith.mulf %317, %322 : vector<16x64xf32>
    %c1_142 = arith.constant 1 : index
    %c0_143 = arith.constant 0 : index
    %c0_144 = arith.constant 0 : index
    %324 = vector.load %arg13[%c1_142, %c0_143, %c0_144] : memref<2x64x32xf32, #tpu.memory_space<vmem>>, vector<1x64x32xf32>
    %325 = vector.shape_cast %324 : vector<1x64x32xf32> to vector<64x32xf32>
    %cst_145 = arith.constant dense<0.000000e+00> : vector<16x32xf32>
    %326 = tpu.matmul %323, %325, %cst_145 {dimension_numbers = #tpu.dot_dimension_numbers<[1], [0], [0], [1], [0, 0, 1, 1], [], []>} : vector<16x64xf32>, vector<64x32xf32>, vector<16x32xf32> -> vector<16x32xf32>
    %c1_146 = arith.constant 1 : index
    %c0_147 = arith.constant 0 : index
    %c0_148 = arith.constant 0 : index
    %327 = vector.load %arg14[%c1_146, %c0_147, %c0_148] : memref<2x1x32xf32, #tpu.memory_space<vmem>>, vector<1x1x32xf32>
    %328 = vector.shape_cast %327 : vector<1x1x32xf32> to vector<1x32xf32>
    %329 = vector.broadcast %328 : vector<1x32xf32> to vector<16x32xf32>
    %330 = arith.addf %326, %329 : vector<16x32xf32>
    %331 = arith.addf %308, %330 : vector<16x32xf32>
    %c1_149 = arith.constant 1 : index
    %c0_150 = arith.constant 0 : index
    %c0_151 = arith.constant 0 : index
    %332 = vector.load %arg15[%c1_149, %c0_150, %c0_151] : memref<2x1x32xf32, #tpu.memory_space<vmem>>, vector<1x1x32xf32>
    %333 = vector.shape_cast %332 : vector<1x1x32xf32> to vector<1x32xf32>
    %c1_152 = arith.constant 1 : index
    %c0_153 = arith.constant 0 : index
    %c0_154 = arith.constant 0 : index
    %334 = vector.load %arg16[%c1_152, %c0_153, %c0_154] : memref<2x1x32xf32, #tpu.memory_space<vmem>>, vector<1x1x32xf32>
    %335 = vector.shape_cast %334 : vector<1x1x32xf32> to vector<1x32xf32>
    %cst_155 = arith.constant dense<0.000000e+00> : vector<16xf32>
    %336 = vector.multi_reduction <add>, %331, %cst_155 [1] : vector<16x32xf32> to vector<16xf32>
    %337 = vector.shape_cast %336 : vector<16xf32> to vector<16x1xf32>
    %cst_156 = arith.constant 3.200000e+01 : f32
    %338 = vector.broadcast %cst_156 : f32 to vector<16x1xf32>
    %339 = arith.divf %337, %338 : vector<16x1xf32>
    %340 = vector.broadcast %339 : vector<16x1xf32> to vector<16x32xf32>
    %341 = arith.subf %331, %340 : vector<16x32xf32>
    %342 = arith.mulf %341, %341 : vector<16x32xf32>
    %cst_157 = arith.constant dense<0.000000e+00> : vector<16xf32>
    %343 = vector.multi_reduction <add>, %342, %cst_157 [1] : vector<16x32xf32> to vector<16xf32>
    %344 = vector.shape_cast %343 : vector<16xf32> to vector<16x1xf32>
    %cst_158 = arith.constant 3.200000e+01 : f32
    %345 = vector.broadcast %cst_158 : f32 to vector<16x1xf32>
    %346 = arith.divf %344, %345 : vector<16x1xf32>
    %cst_159 = arith.constant 9.99999996E-13 : f32
    %347 = vector.broadcast %cst_159 : f32 to vector<16x1xf32>
    %348 = arith.addf %346, %347 : vector<16x1xf32>
    %349 = math.rsqrt %348 : vector<16x1xf32>
    %350 = vector.broadcast %349 : vector<16x1xf32> to vector<16x32xf32>
    %351 = arith.mulf %341, %350 : vector<16x32xf32>
    %352 = vector.broadcast %333 : vector<1x32xf32> to vector<16x32xf32>
    %353 = arith.mulf %351, %352 : vector<16x32xf32>
    %354 = vector.broadcast %335 : vector<1x32xf32> to vector<16x32xf32>
    %355 = arith.addf %353, %354 : vector<16x32xf32>
    %c0_160 = arith.constant 0 : index
    %c0_161 = arith.constant 0 : index
    %c0_162 = arith.constant 0 : index
    %356 = vector.load %arg17[%c0_160, %c0_161, %c0_162] : memref<1x16x32xf32, #tpu.memory_space<vmem>>, vector<1x16x32xf32>
    %357 = vector.shape_cast %356 : vector<1x16x32xf32> to vector<16x32xf32>
    %358 = vector.shape_cast %355 : vector<16x32xf32> to vector<1x16x32xf32>
    tpu.vector_store %arg17[%c0_160, %c0_161, %c0_162], %358 {strides = array<i32>} : memref<1x16x32xf32, #tpu.memory_space<vmem>>, vector<1x16x32xf32>,
    return
  }
  func.func @transform_0(%arg0: i32) -> (i32, i32, i32) {
    %c0_i32 = arith.constant 0 : i32
    %c0_i32_0 = arith.constant 0 : i32
    %c0_i32_1 = arith.constant 0 : i32
    return %arg0, %c0_i32, %c0_i32_0 : i32, i32, i32
  }
  func.func @transform_1(%arg0: i32) -> (i32, i32, i32) {
    %c0_i32 = arith.constant 0 : i32
    %c0_i32_0 = arith.constant 0 : i32
    %c0_i32_1 = arith.constant 0 : i32
    return %arg0, %c0_i32, %c0_i32_0 : i32, i32, i32
  }
  func.func @transform_2(%arg0: i32) -> (i32, i32) {
    %c0_i32 = arith.constant 0 : i32
    %c0_i32_0 = arith.constant 0 : i32
    %c0_i32_1 = arith.constant 0 : i32
    return %c0_i32, %c0_i32_0 : i32, i32
  }
  func.func @transform_3(%arg0: i32) -> (i32, i32) {
    %c0_i32 = arith.constant 0 : i32
    %c0_i32_0 = arith.constant 0 : i32
    %c0_i32_1 = arith.constant 0 : i32
    return %c0_i32, %c0_i32_0 : i32, i32
  }
  func.func @transform_4(%arg0: i32) -> (i32, i32, i32) {
    %c0_i32 = arith.constant 0 : i32
    %c0_i32_0 = arith.constant 0 : i32
    %c0_i32_1 = arith.constant 0 : i32
    %c0_i32_2 = arith.constant 0 : i32
    return %c0_i32, %c0_i32_0, %c0_i32_1 : i32, i32, i32
  }
  func.func @transform_5(%arg0: i32) -> (i32, i32, i32) {
    %c0_i32 = arith.constant 0 : i32
    %c0_i32_0 = arith.constant 0 : i32
    %c0_i32_1 = arith.constant 0 : i32
    %c0_i32_2 = arith.constant 0 : i32
    return %c0_i32, %c0_i32_0, %c0_i32_1 : i32, i32, i32
  }
  func.func @transform_6(%arg0: i32) -> (i32, i32, i32) {
    %c0_i32 = arith.constant 0 : i32
    %c0_i32_0 = arith.constant 0 : i32
    %c0_i32_1 = arith.constant 0 : i32
    %c0_i32_2 = arith.constant 0 : i32
    return %c0_i32, %c0_i32_0, %c0_i32_1 : i32, i32, i32
  }
  func.func @transform_7(%arg0: i32) -> (i32, i32, i32) {
    %c0_i32 = arith.constant 0 : i32
    %c0_i32_0 = arith.constant 0 : i32
    %c0_i32_1 = arith.constant 0 : i32
    %c0_i32_2 = arith.constant 0 : i32
    return %c0_i32, %c0_i32_0, %c0_i32_1 : i32, i32, i32
  }
  func.func @transform_8(%arg0: i32) -> (i32, i32, i32) {
    %c0_i32 = arith.constant 0 : i32
    %c0_i32_0 = arith.constant 0 : i32
    %c0_i32_1 = arith.constant 0 : i32
    %c0_i32_2 = arith.constant 0 : i32
    return %c0_i32, %c0_i32_0, %c0_i32_1 : i32, i32, i32
  }
  func.func @transform_9(%arg0: i32) -> (i32, i32, i32) {
    %c0_i32 = arith.constant 0 : i32
    %c0_i32_0 = arith.constant 0 : i32
    %c0_i32_1 = arith.constant 0 : i32
    %c0_i32_2 = arith.constant 0 : i32
    return %c0_i32, %c0_i32_0, %c0_i32_1 : i32, i32, i32
  }
  func.func @transform_10(%arg0: i32) -> (i32, i32, i32) {
    %c0_i32 = arith.constant 0 : i32
    %c0_i32_0 = arith.constant 0 : i32
    %c0_i32_1 = arith.constant 0 : i32
    %c0_i32_2 = arith.constant 0 : i32
    return %c0_i32, %c0_i32_0, %c0_i32_1 : i32, i32, i32
  }
  func.func @transform_11(%arg0: i32) -> (i32, i32, i32) {
    %c0_i32 = arith.constant 0 : i32
    %c0_i32_0 = arith.constant 0 : i32
    %c0_i32_1 = arith.constant 0 : i32
    %c0_i32_2 = arith.constant 0 : i32
    return %c0_i32, %c0_i32_0, %c0_i32_1 : i32, i32, i32
  }
  func.func @transform_12(%arg0: i32) -> (i32, i32, i32) {
    %c0_i32 = arith.constant 0 : i32
    %c0_i32_0 = arith.constant 0 : i32
    %c0_i32_1 = arith.constant 0 : i32
    %c0_i32_2 = arith.constant 0 : i32
    return %c0_i32, %c0_i32_0, %c0_i32_1 : i32, i32, i32
  }
  func.func @transform_13(%arg0: i32) -> (i32, i32, i32) {
    %c0_i32 = arith.constant 0 : i32
    %c0_i32_0 = arith.constant 0 : i32
    %c0_i32_1 = arith.constant 0 : i32
    %c0_i32_2 = arith.constant 0 : i32
    return %c0_i32, %c0_i32_0, %c0_i32_1 : i32, i32, i32
  }
  func.func @transform_14(%arg0: i32) -> (i32, i32, i32) {
    %c0_i32 = arith.constant 0 : i32
    %c0_i32_0 = arith.constant 0 : i32
    %c0_i32_1 = arith.constant 0 : i32
    %c0_i32_2 = arith.constant 0 : i32
    return %c0_i32, %c0_i32_0, %c0_i32_1 : i32, i32, i32
  }
  func.func @transform_15(%arg0: i32) -> (i32, i32, i32) {
    %c0_i32 = arith.constant 0 : i32
    %c0_i32_0 = arith.constant 0 : i32
    %c0_i32_1 = arith.constant 0 : i32
    %c0_i32_2 = arith.constant 0 : i32
    return %c0_i32, %c0_i32_0, %c0_i32_1 : i32, i32, i32
  }
  func.func @transform_16(%arg0: i32) -> (i32, i32, i32) {
    %c0_i32 = arith.constant 0 : i32
    %c0_i32_0 = arith.constant 0 : i32
    %c0_i32_1 = arith.constant 0 : i32
    return %arg0, %c0_i32, %c0_i32_0 : i32, i32, i32
  }
}

</mosaic_0001>

<llo_original>
// kernel: tpu_custom_call.1
$region0: #{tpu_custom_call.1}
  #allocation0 [shape = 'u32[]', space=smem, size = 0x4, offset = 0x4, fixed_abs, tag = 'smem constant byte address 0x4 - core index']
  #allocation1 [shape = 'u32[72,128]{1,0:T(1,128)}', space=vmem, size = 0x9000, scoped, tag = 'internal scratch']
  %s0 = inlined_call_operand.hbm [shape: f32[2,16,32], index: 0, kind: input, shape index: {}]
  %s1 = inlined_call_operand.hbm [shape: f32[2,1,16], index: 1, kind: input, shape index: {}]
  %s2 = inlined_call_operand.hbm [shape: f32[1,32], index: 2, kind: input, shape index: {}]
  %s3 = inlined_call_operand.hbm [shape: f32[1,32], index: 3, kind: input, shape index: {}]
  %s4 = inlined_call_operand.vmem [shape: f32[2,32,96], index: 4, kind: input, shape index: {}]
  %s5 = inlined_call_operand.vmem [shape: f32[2,1,96], index: 5, kind: input, shape index: {}]
  %s6 = inlined_call_operand.vmem [shape: f32[2,32,32], index: 6, kind: input, shape index: {}]
  %s7 = inlined_call_operand.vmem [shape: f32[2,1,32], index: 7, kind: input, shape index: {}]
  %s8 = inlined_call_operand.hbm [shape: f32[2,1,32], index: 8, kind: input, shape index: {}]
  %s9 = inlined_call_operand.vmem [shape: f32[2,1,32], index: 9, kind: input, shape index: {}]
  %s10 = inlined_call_operand.vmem [shape: f32[2,32,64], index: 10, kind: input, shape index: {}]
  %s11 = inlined_call_operand.vmem [shape: f32[2,1,64], index: 11, kind: input, shape index: {}]
  %s12 = inlined_call_operand.vmem [shape: f32[2,64,32], index: 12, kind: input, shape index: {}]
  %s13 = inlined_call_operand.vmem [shape: f32[2,1,32], index: 13, kind: input, shape index: {}]
  %s14 = inlined_call_operand.hbm [shape: f32[2,1,32], index: 14, kind: input, shape index: {}]
  %s15 = inlined_call_operand.vmem [shape: f32[2,1,32], index: 15, kind: input, shape index: {}]
  %s16 = inlined_call_operand.hbm [shape: f32[2,16,32], index: 16, kind: output, shape index: {}]
  %s17 = sld [smem:[#allocation0]]
  $region121: #{tpu_custom_call.1} parent=0
    _
  %s19 = ssub.s32 1, %s17
  %s20 = scalar_select 0, %s19, %s17
  $region1: #{tpu_custom_call.1} parent=0
    #allocation2 [shape = 'u8[16384]{0}', space=vmem, size = 0x4000, scoped, tag = 'input window, operand 0']
    #allocation3 [shape = 's32[2]{0}', space=sflag, size = 0x8, scoped, tag = 'scoped memory for tpu_custom_call.1']
    #allocation4 [shape = 's32[2]{0}', space=sflag, size = 0x8, scoped, tag = 'scoped memory for tpu_custom_call.1']
    #allocation5 [shape = 'u8[1024]{0}', space=vmem, size = 0x400, scoped, tag = 'input window, operand 1']
    #allocation6 [shape = 's32[2]{0}', space=sflag, size = 0x8, scoped, tag = 'scoped memory for tpu_custom_call.1']
    #allocation7 [shape = 'u8[512]{0}', space=vmem, size = 0x400, scoped, tag = 'input window, operand 2, single buffered']
    #allocation8 [shape = 'u8[512]{0}', space=vmem, size = 0x400, scoped, tag = 'input window, operand 3, single buffered']
    #allocation9 [shape = 's32[1]{0}', space=sflag, size = 0x4, scoped, tag = 'scoped memory for tpu_custom_call.1']
    #allocation10 [shape = 'u8[1024]{0}', space=vmem, size = 0x400, scoped, tag = 'input window, operand 8, single buffered']
    #allocation11 [shape = 'u8[1024]{0}', space=vmem, size = 0x400, scoped, tag = 'input window, operand 14, single buffered']
    #allocation12 [shape = 's32[1]{0}', space=sflag, size = 0x4, scoped, tag = 'scoped memory for tpu_custom_call.1']
    #allocation13 [shape = 'u8[16384]{0}', space=vmem, size = 0x4000, scoped, tag = 'output window, operand 0']
    %21 = vsyncpa [#allocation3], 0
    %s22 = scalar_lea.sflag [#allocation3], 1
    %23 = vsyncpa %s22, 0
    %24 = vsyncpa [#allocation6], 0
    %s25 = scalar_lea.sflag [#allocation6], 1
    %26 = vsyncpa %s25, 0
    %27 = vsyncpa [#allocation9], 0
    %28 = vsyncpa [#allocation12], 0
    %29 = vsyncpa [#allocation4], 0
    %s30 = scalar_lea.sflag [#allocation4], 1
    %31 = vsyncpa %s30, 0
    loop: start=0, step=1, limit=4
    $region2: #{tpu_custom_call.1} parent=1 // loop_pre_header
      _
    $region3: #{tpu_custom_call.1} parent=1 // loop_header
      %s33 = sphi 0, %s37
      %p34 = scmp.ge.s32.totalorder %s33, 4
      %s43 = sphi 0, %s45
      %s46 = sphi 0, %s43
      %s47 = sphi 0, %s46
      %s63 = sphi 0, %s47
      %s69 = sphi 0, %s71
      %s72 = sphi 0, %s69
      %s73 = sphi 0, %s72
      %s89 = sphi 0, %s73
      %s93 = sphi 0, %s93
      %s95 = sphi 0, %s93
      %s96 = sphi 0, %s95
      %s110 = sphi 0, %s96
      %s114 = sphi 0, %s114
      %s116 = sphi 0, %s114
      %s117 = sphi 0, %s116
      %s131 = sphi 0, %s117
      %s135 = sphi 0, %s135
      %s137 = sphi 0, %s135
      %s138 = sphi 0, %s137
      %s152 = sphi 0, %s138
      %s156 = sphi 0, %s156
      %s158 = sphi 0, %s156
      %s159 = sphi 0, %s158
      %s173 = sphi 0, %s159
      %s177 = sphi 0, %s177
      %s179 = sphi 0, %s177
      %s180 = sphi 0, %s179
      %s194 = sphi 0, %s180
      %s198 = sphi 0, %s198
      %s200 = sphi 0, %s198
      %s201 = sphi 0, %s200
      %s215 = sphi 0, %s201
      %s219 = sphi 0, %s219
      %s221 = sphi 0, %s219
      %s222 = sphi 0, %s221
      %s236 = sphi 0, %s222
      %s240 = sphi 0, %s240
      %s242 = sphi 0, %s240
      %s243 = sphi 0, %s242
      %s257 = sphi 0, %s243
      %s261 = sphi 0, %s261
      %s263 = sphi 0, %s261
      %s264 = sphi 0, %s263
      %s278 = sphi 0, %s264
      %s282 = sphi 0, %s282
      %s284 = sphi 0, %s282
      %s285 = sphi 0, %s284
      %s299 = sphi 0, %s285
      %s303 = sphi 0, %s303
      %s305 = sphi 0, %s303
      %s306 = sphi 0, %s305
      %s320 = sphi 0, %s306
      %s324 = sphi 0, %s324
      %s326 = sphi 0, %s324
      %s327 = sphi 0, %s326
      %s341 = sphi 0, %s327
      %s345 = sphi 0, %s345
      %s347 = sphi 0, %s345
      %s348 = sphi 0, %s347
      %s362 = sphi 0, %s348
      %s366 = sphi 0, %s366
      %s368 = sphi 0, %s366
      %s369 = sphi 0, %s368
      %s383 = sphi 0, %s369
      %s389 = sphi 0, %s391
      %s392 = sphi 0, %s389
      %s393 = sphi 0, %s392
      %s409 = sphi 0, %s393
    $region4: #{tpu_custom_call.1} parent=1 // loop_header_branch
      %36 = sbr.rel (%p34) target = $region8
    $region5: #{tpu_custom_call.1} parent=1 // loop_body
      %s38 = ssub.s32 %s33, 1
      %s39 = ssub.s32 %s33, 2
      %s40 = sadd.s32 %s33, 1
      %s41 = ssub.s32 %s33, %s40
      %p42 = scmp.eq.s32.totalorder %s41, 0
      %s44 = sadd.s32 %s43, 1
      %s45 = scalar_select %p42, %s43, %s44
      %p48 = pneg %p42
      %p49 = scmp.eq.s32.totalorder %s33, 1
      %p50 = por %p48, %p49
      %p51 = scmp.ne.s32.totalorder %s43, %s46
      %p52 = scmp.eq.s32.totalorder %s33, 0
      %p53 = por %p51, %p52
      %p54 = scmp.ne.s32.totalorder %s43, %s46
      %p55 = scmp.eq.s32.totalorder %s38, 1
      %p56 = por %p54, %p55
      %p57 = scmp.ne.s32.totalorder %s46, %s47
      %p58 = scmp.eq.s32.totalorder %s38, 0
      %p59 = por %p57, %p58
      %p60 = scmp.ne.s32.totalorder %s46, %s47
      %p61 = scmp.eq.s32.totalorder %s39, 1
      %p62 = por %p60, %p61
      %p64 = scmp.ne.s32.totalorder %s47, %s63
      %p65 = scmp.eq.s32.totalorder %s39, 0
      %p66 = por %p64, %p65
      %s67 = ssub.s32 %s33, %s40
      %p68 = scmp.eq.s32.totalorder %s67, 0
      %s70 = sadd.s32 %s69, 1
      %s71 = scalar_select %p68, %s69, %s70
      %p74 = pneg %p68
      %p75 = scmp.eq.s32.totalorder %s33, 1
      %p76 = por %p74, %p75
      %p77 = scmp.ne.s32.totalorder %s69, %s72
      %p78 = scmp.eq.s32.totalorder %s33, 0
      %p79 = por %p77, %p78
      %p80 = scmp.ne.s32.totalorder %s69, %s72
      %p81 = scmp.eq.s32.totalorder %s38, 1
      %p82 = por %p80, %p81
      %p83 = scmp.ne.s32.totalorder %s72, %s73
      %p84 = scmp.eq.s32.totalorder %s38, 0
      %p85 = por %p83, %p84
      %p86 = scmp.ne.s32.totalorder %s72, %s73
      %p87 = scmp.eq.s32.totalorder %s39, 1
      %p88 = por %p86, %p87
      %p90 = scmp.ne.s32.totalorder %s73, %s89
      %p91 = scmp.eq.s32.totalorder %s39, 0
      %p92 = por %p90, %p91
      %s94 = sadd.s32 %s93, 1
      %p97 = scmp.eq.s32.totalorder %s33, 1
      %p98 = scmp.ne.s32.totalorder %s93, %s95
      %p99 = scmp.eq.s32.totalorder %s33, 0
      %p100 = por %p98, %p99
      %p101 = scmp.ne.s32.totalorder %s93, %s95
      %p102 = scmp.eq.s32.totalorder %s38, 1
      %p103 = por %p101, %p102
      %p104 = scmp.ne.s32.totalorder %s95, %s96
      %p105 = scmp.eq.s32.totalorder %s38, 0
      %p106 = por %p104, %p105
      %p107 = scmp.ne.s32.totalorder %s95, %s96
      %p108 = scmp.eq.s32.totalorder %s39, 1
      %p109 = por %p107, %p108
      %p111 = scmp.ne.s32.totalorder %s96, %s110
      %p112 = scmp.eq.s32.totalorder %s39, 0
      %p113 = por %p111, %p112
      %s115 = sadd.s32 %s114, 1
      %p118 = scmp.eq.s32.totalorder %s33, 1
      %p119 = scmp.ne.s32.totalorder %s114, %s116
      %p120 = scmp.eq.s32.totalorder %s33, 0
      %p121 = por %p119, %p120
      %p122 = scmp.ne.s32.totalorder %s114, %s116
      %p123 = scmp.eq.s32.totalorder %s38, 1
      %p124 = por %p122, %p123
      %p125 = scmp.ne.s32.totalorder %s116, %s117
      %p126 = scmp.eq.s32.totalorder %s38, 0
      %p127 = por %p125, %p126
      %p128 = scmp.ne.s32.totalorder %s116, %s117
      %p129 = scmp.eq.s32.totalorder %s39, 1
      %p130 = por %p128, %p129
      %p132 = scmp.ne.s32.totalorder %s117, %s131
      %p133 = scmp.eq.s32.totalorder %s39, 0
      %p134 = por %p132, %p133
      %s136 = sadd.s32 %s135, 1
      %p139 = scmp.eq.s32.totalorder %s33, 1
      %p140 = scmp.ne.s32.totalorder %s135, %s137
      %p141 = scmp.eq.s32.totalorder %s33, 0
      %p142 = por %p140, %p141
      %p143 = scmp.ne.s32.totalorder %s135, %s137
      %p144 = scmp.eq.s32.totalorder %s38, 1
      %p145 = por %p143, %p144
      %p146 = scmp.ne.s32.totalorder %s137, %s138
      %p147 = scmp.eq.s32.totalorder %s38, 0
      %p148 = por %p146, %p147
      %p149 = scmp.ne.s32.totalorder %s137, %s138
      %p150 = scmp.eq.s32.totalorder %s39, 1
      %p151 = por %p149, %p150
      %p153 = scmp.ne.s32.totalorder %s138, %s152
      %p154 = scmp.eq.s32.totalorder %s39, 0
      %p155 = por %p153, %p154
      %s157 = sadd.s32 %s156, 1
      %p160 = scmp.eq.s32.totalorder %s33, 1
      %p161 = scmp.ne.s32.totalorder %s156, %s158
      %p162 = scmp.eq.s32.totalorder %s33, 0
      %p163 = por %p161, %p162
      %p164 = scmp.ne.s32.totalorder %s156, %s158
      %p165 = scmp.eq.s32.totalorder %s38, 1
      %p166 = por %p164, %p165
      %p167 = scmp.ne.s32.totalorder %s158, %s159
      %p168 = scmp.eq.s32.totalorder %s38, 0
      %p169 = por %p167, %p168
      %p170 = scmp.ne.s32.totalorder %s158, %s159
      %p171 = scmp.eq.s32.totalorder %s39, 1
      %p172 = por %p170, %p171
      %p174 = scmp.ne.s32.totalorder %s159, %s173
      %p175 = scmp.eq.s32.totalorder %s39, 0
      %p176 = por %p174, %p175
      %s178 = sadd.s32 %s177, 1
      %p181 = scmp.eq.s32.totalorder %s33, 1
      %p182 = scmp.ne.s32.totalorder %s177, %s179
      %p183 = scmp.eq.s32.totalorder %s33, 0
      %p184 = por %p182, %p183
      %p185 = scmp.ne.s32.totalorder %s177, %s179
      %p186 = scmp.eq.s32.totalorder %s38, 1
      %p187 = por %p185, %p186
      %p188 = scmp.ne.s32.totalorder %s179, %s180
      %p189 = scmp.eq.s32.totalorder %s38, 0
      %p190 = por %p188, %p189
      %p191 = scmp.ne.s32.totalorder %s179, %s180
      %p192 = scmp.eq.s32.totalorder %s39, 1
      %p193 = por %p191, %p192
      %p195 = scmp.ne.s32.totalorder %s180, %s194
      %p196 = scmp.eq.s32.totalorder %s39, 0
      %p197 = por %p195, %p196
      %s199 = sadd.s32 %s198, 1
      %p202 = scmp.eq.s32.totalorder %s33, 1
      %p203 = scmp.ne.s32.totalorder %s198, %s200
      %p204 = scmp.eq.s32.totalorder %s33, 0
      %p205 = por %p203, %p204
      %p206 = scmp.ne.s32.totalorder %s198, %s200
      %p207 = scmp.eq.s32.totalorder %s38, 1
      %p208 = por %p206, %p207
      %p209 = scmp.ne.s32.totalorder %s200, %s201
      %p210 = scmp.eq.s32.totalorder %s38, 0
      %p211 = por %p209, %p210
      %p212 = scmp.ne.s32.totalorder %s200, %s201
      %p213 = scmp.eq.s32.totalorder %s39, 1
      %p214 = por %p212, %p213
      %p216 = scmp.ne.s32.totalorder %s201, %s215
      %p217 = scmp.eq.s32.totalorder %s39, 0
      %p218 = por %p216, %p217
      %s220 = sadd.s32 %s219, 1
      %p223 = scmp.eq.s32.totalorder %s33, 1
      %p224 = scmp.ne.s32.totalorder %s219, %s221
      %p225 = scmp.eq.s32.totalorder %s33, 0
      %p226 = por %p224, %p225
      %p227 = scmp.ne.s32.totalorder %s219, %s221
      %p228 = scmp.eq.s32.totalorder %s38, 1
      %p229 = por %p227, %p228
      %p230 = scmp.ne.s32.totalorder %s221, %s222
      %p231 = scmp.eq.s32.totalorder %s38, 0
      %p232 = por %p230, %p231
      %p233 = scmp.ne.s32.totalorder %s221, %s222
      %p234 = scmp.eq.s32.totalorder %s39, 1
      %p235 = por %p233, %p234
      %p237 = scmp.ne.s32.totalorder %s222, %s236
      %p238 = scmp.eq.s32.totalorder %s39, 0
      %p239 = por %p237, %p238
      %s241 = sadd.s32 %s240, 1
      %p244 = scmp.eq.s32.totalorder %s33, 1
      %p245 = scmp.ne.s32.totalorder %s240, %s242
      %p246 = scmp.eq.s32.totalorder %s33, 0
      %p247 = por %p245, %p246
      %p248 = scmp.ne.s32.totalorder %s240, %s242
      %p249 = scmp.eq.s32.totalorder %s38, 1
      %p250 = por %p248, %p249
      %p251 = scmp.ne.s32.totalorder %s242, %s243
      %p252 = scmp.eq.s32.totalorder %s38, 0
      %p253 = por %p251, %p252
      %p254 = scmp.ne.s32.totalorder %s242, %s243
      %p255 = scmp.eq.s32.totalorder %s39, 1
      %p256 = por %p254, %p255
      %p258 = scmp.ne.s32.totalorder %s243, %s257
      %p259 = scmp.eq.s32.totalorder %s39, 0
      %p260 = por %p258, %p259
      %s262 = sadd.s32 %s261, 1
      %p265 = scmp.eq.s32.totalorder %s33, 1
      %p266 = scmp.ne.s32.totalorder %s261, %s263
      %p267 = scmp.eq.s32.totalorder %s33, 0
      %p268 = por %p266, %p267
      %p269 = scmp.ne.s32.totalorder %s261, %s263
      %p270 = scmp.eq.s32.totalorder %s38, 1
      %p271 = por %p269, %p270
      %p272 = scmp.ne.s32.totalorder %s263, %s264
      %p273 = scmp.eq.s32.totalorder %s38, 0
      %p274 = por %p272, %p273
      %p275 = scmp.ne.s32.totalorder %s263, %s264
      %p276 = scmp.eq.s32.totalorder %s39, 1
      %p277 = por %p275, %p276
      %p279 = scmp.ne.s32.totalorder %s264, %s278
      %p280 = scmp.eq.s32.totalorder %s39, 0
      %p281 = por %p279, %p280
      %s283 = sadd.s32 %s282, 1
      %p286 = scmp.eq.s32.totalorder %s33, 1
      %p287 = scmp.ne.s32.totalorder %s282, %s284
      %p288 = scmp.eq.s32.totalorder %s33, 0
      %p289 = por %p287, %p288
      %p290 = scmp.ne.s32.totalorder %s282, %s284
      %p291 = scmp.eq.s32.totalorder %s38, 1
      %p292 = por %p290, %p291
      %p293 = scmp.ne.s32.totalorder %s284, %s285
      %p294 = scmp.eq.s32.totalorder %s38, 0
      %p295 = por %p293, %p294
      %p296 = scmp.ne.s32.totalorder %s284, %s285
      %p297 = scmp.eq.s32.totalorder %s39, 1
      %p298 = por %p296, %p297
      %p300 = scmp.ne.s32.totalorder %s285, %s299
      %p301 = scmp.eq.s32.totalorder %s39, 0
      %p302 = por %p300, %p301
      %s304 = sadd.s32 %s303, 1
      %p307 = scmp.eq.s32.totalorder %s33, 1
      %p308 = scmp.ne.s32.totalorder %s303, %s305
      %p309 = scmp.eq.s32.totalorder %s33, 0
      %p310 = por %p308, %p309
      %p311 = scmp.ne.s32.totalorder %s303, %s305
      %p312 = scmp.eq.s32.totalorder %s38, 1
      %p313 = por %p311, %p312
      %p314 = scmp.ne.s32.totalorder %s305, %s306
      %p315 = scmp.eq.s32.totalorder %s38, 0
      %p316 = por %p314, %p315
      %p317 = scmp.ne.s32.totalorder %s305, %s306
      %p318 = scmp.eq.s32.totalorder %s39, 1
      %p319 = por %p317, %p318
      %p321 = scmp.ne.s32.totalorder %s306, %s320
      %p322 = scmp.eq.s32.totalorder %s39, 0
      %p323 = por %p321, %p322
      %s325 = sadd.s32 %s324, 1
      %p328 = scmp.eq.s32.totalorder %s33, 1
      %p329 = scmp.ne.s32.totalorder %s324, %s326
      %p330 = scmp.eq.s32.totalorder %s33, 0
      %p331 = por %p329, %p330
      %p332 = scmp.ne.s32.totalorder %s324, %s326
      %p333 = scmp.eq.s32.totalorder %s38, 1
      %p334 = por %p332, %p333
      %p335 = scmp.ne.s32.totalorder %s326, %s327
      %p336 = scmp.eq.s32.totalorder %s38, 0
      %p337 = por %p335, %p336
      %p338 = scmp.ne.s32.totalorder %s326, %s327
      %p339 = scmp.eq.s32.totalorder %s39, 1
      %p340 = por %p338, %p339
      %p342 = scmp.ne.s32.totalorder %s327, %s341
      %p343 = scmp.eq.s32.totalorder %s39, 0
      %p344 = por %p342, %p343
      %s346 = sadd.s32 %s345, 1
      %p349 = scmp.eq.s32.totalorder %s33, 1
      %p350 = scmp.ne.s32.totalorder %s345, %s347
      %p351 = scmp.eq.s32.totalorder %s33, 0
      %p352 = por %p350, %p351
      %p353 = scmp.ne.s32.totalorder %s345, %s347
      %p354 = scmp.eq.s32.totalorder %s38, 1
      %p355 = por %p353, %p354
      %p356 = scmp.ne.s32.totalorder %s347, %s348
      %p357 = scmp.eq.s32.totalorder %s38, 0
      %p358 = por %p356, %p357
      %p359 = scmp.ne.s32.totalorder %s347, %s348
      %p360 = scmp.eq.s32.totalorder %s39, 1
      %p361 = por %p359, %p360
      %p363 = scmp.ne.s32.totalorder %s348, %s362
      %p364 = scmp.eq.s32.totalorder %s39, 0
      %p365 = por %p363, %p364
      %s367 = sadd.s32 %s366, 1
      %p370 = scmp.eq.s32.totalorder %s33, 1
      %p371 = scmp.ne.s32.totalorder %s366, %s368
      %p372 = scmp.eq.s32.totalorder %s33, 0
      %p373 = por %p371, %p372
      %p374 = scmp.ne.s32.totalorder %s366, %s368
      %p375 = scmp.eq.s32.totalorder %s38, 1
      %p376 = por %p374, %p375
      %p377 = scmp.ne.s32.totalorder %s368, %s369
      %p378 = scmp.eq.s32.totalorder %s38, 0
      %p379 = por %p377, %p378
      %p380 = scmp.ne.s32.totalorder %s368, %s369
      %p381 = scmp.eq.s32.totalorder %s39, 1
      %p382 = por %p380, %p381
      %p384 = scmp.ne.s32.totalorder %s369, %s383
      %p385 = scmp.eq.s32.totalorder %s39, 0
      %p386 = por %p384, %p385
      %s387 = ssub.s32 %s33, %s40
      %p388 = scmp.eq.s32.totalorder %s387, 0
      %s390 = sadd.s32 %s389, 1
      %s391 = scalar_select %p388, %s389, %s390
      %p394 = pneg %p388
      %p395 = scmp.eq.s32.totalorder %s33, 1
      %p396 = por %p394, %p395
      %p397 = scmp.ne.s32.totalorder %s389, %s392
      %p398 = scmp.eq.s32.totalorder %s33, 0
      %p399 = por %p397, %p398
      %p400 = scmp.ne.s32.totalorder %s389, %s392
      %p401 = scmp.eq.s32.totalorder %s38, 1
      %p402 = por %p400, %p401
      %p403 = scmp.ne.s32.totalorder %s392, %s393
      %p404 = scmp.eq.s32.totalorder %s38, 0
      %p405 = por %p403, %p404
      %p406 = scmp.ne.s32.totalorder %s392, %s393
      %p407 = scmp.eq.s32.totalorder %s39, 1
      %p408 = por %p406, %p407
      %p410 = scmp.ne.s32.totalorder %s393, %s409
      %p411 = scmp.eq.s32.totalorder %s39, 0
      %p412 = por %p410, %p411
      %p413 = scmp.le.s32.totalorder 1, %s33
      %p414 = scmp.lt.s32.totalorder %s33, 3
      %p415 = pnand %p413, %p414
      %p416 = pneg %p415
      // Predicated region
      $region9: #{tpu_custom_call.1} parent=5 // pred_check
        _
      $region10: #{tpu_custom_call.1} parent=5 // pred_check_branch
        %418 = sbr.rel (%p415) target = $region12
      $region11: #{tpu_custom_call.1} parent=5 // pred_region
        %s419 = ssub.s32 %s33, 1
        // Predicated region
        $region13: #{tpu_custom_call.1} parent=11 // pred_check
          %p420 = pneg %p106
        $region14: #{tpu_custom_call.1} parent=11 // pred_check_branch
          %422 = sbr.rel (%p420) target = $region16
        $region15: #{tpu_custom_call.1} parent=11 // pred_region
          %424 = vsyncadd [#allocation6], 0
          %s426 = sshll.u32 %s2, 4
          %s427 = int_to_ptr.hbm [resolvable:$true] %s426
          %s428 = sshll.u32 [#allocation7], 4
          %s429 = int_to_ptr.vmem [resolvable:$true] %s428
          %431 = dma.hbm_to_vmem [thread:$0]  %s427, 16, %s429, [#allocation6]
        $region16: #{tpu_custom_call.1} parent=11 // pred_fallthru
          _
        // Predicated region
        $region17: #{tpu_custom_call.1} parent=11 // pred_check
          %p432 = pneg %p127
        $region18: #{tpu_custom_call.1} parent=11 // pred_check_branch
          %434 = sbr.rel (%p432) target = $region20
        $region19: #{tpu_custom_call.1} parent=11 // pred_region
          %436 = vsyncadd [#allocation9], 0
          %s438 = sshll.u32 %s3, 4
          %s439 = int_to_ptr.hbm [resolvable:$true] %s438
          %s440 = sshll.u32 [#allocation8], 4
          %s441 = int_to_ptr.vmem [resolvable:$true] %s440
          %443 = dma.hbm_to_vmem [thread:$0]  %s439, 16, %s441, [#allocation9]
        $region20: #{tpu_custom_call.1} parent=11 // pred_fallthru
          _
        // Predicated region
        $region21: #{tpu_custom_call.1} parent=11 // pred_check
          %p444 = pneg %p148
        $region22: #{tpu_custom_call.1} parent=11 // pred_check_branch
          %446 = sbr.rel (%p444) target = $region24
        $region23: #{tpu_custom_call.1} parent=11 // pred_region
          _
        $region24: #{tpu_custom_call.1} parent=11 // pred_fallthru
          _
        // Predicated region
        $region25: #{tpu_custom_call.1} parent=11 // pred_check
          %p447 = pneg %p169
        $region26: #{tpu_custom_call.1} parent=11 // pred_check_branch
          %449 = sbr.rel (%p447) target = $region28
        $region27: #{tpu_custom_call.1} parent=11 // pred_region
          _
        $region28: #{tpu_custom_call.1} parent=11 // pred_fallthru
          _
        // Predicated region
        $region29: #{tpu_custom_call.1} parent=11 // pred_check
          %p450 = pneg %p190
        $region30: #{tpu_custom_call.1} parent=11 // pred_check_branch
          %452 = sbr.rel (%p450) target = $region32
        $region31: #{tpu_custom_call.1} parent=11 // pred_region
          _
        $region32: #{tpu_custom_call.1} parent=11 // pred_fallthru
          _
        // Predicated region
        $region33: #{tpu_custom_call.1} parent=11 // pred_check
          %p453 = pneg %p211
        $region34: #{tpu_custom_call.1} parent=11 // pred_check_branch
          %455 = sbr.rel (%p453) target = $region36
        $region35: #{tpu_custom_call.1} parent=11 // pred_region
          _
        $region36: #{tpu_custom_call.1} parent=11 // pred_fallthru
          _
        // Predicated region
        $region37: #{tpu_custom_call.1} parent=11 // pred_check
          %p456 = pneg %p232
        $region38: #{tpu_custom_call.1} parent=11 // pred_check_branch
          %458 = sbr.rel (%p456) target = $region40
        $region39: #{tpu_custom_call.1} parent=11 // pred_region
          %460 = vsyncadd [#allocation9], 0
          %s461 = sshll.u32 %s8, 4
          %s462 = int_to_ptr.hbm [resolvable:$true] %s461
          %s463 = sshll.u32 [#allocation10], 4
          %s464 = int_to_ptr.vmem [resolvable:$true] %s463
          %469 = dma.hbm_to_vmem [thread:$0]  %s462, 32, %s464, [#allocation9], 16, 16, 1
        $region40: #{tpu_custom_call.1} parent=11 // pred_fallthru
          _
        // Predicated region
        $region41: #{tpu_custom_call.1} parent=11 // pred_check
          %p470 = pneg %p253
        $region42: #{tpu_custom_call.1} parent=11 // pred_check_branch
          %472 = sbr.rel (%p470) target = $region44
        $region43: #{tpu_custom_call.1} parent=11 // pred_region
          _
        $region44: #{tpu_custom_call.1} parent=11 // pred_fallthru
          _
        // Predicated region
        $region45: #{tpu_custom_call.1} parent=11 // pred_check
          %p473 = pneg %p274
        $region46: #{tpu_custom_call.1} parent=11 // pred_check_branch
          %475 = sbr.rel (%p473) target = $region48
        $region47: #{tpu_custom_call.1} parent=11 // pred_region
          _
        $region48: #{tpu_custom_call.1} parent=11 // pred_fallthru
          _
        // Predicated region
        $region49: #{tpu_custom_call.1} parent=11 // pred_check
          %p476 = pneg %p295
        $region50: #{tpu_custom_call.1} parent=11 // pred_check_branch
          %478 = sbr.rel (%p476) target = $region52
        $region51: #{tpu_custom_call.1} parent=11 // pred_region
          _
        $region52: #{tpu_custom_call.1} parent=11 // pred_fallthru
          _
        // Predicated region
        $region53: #{tpu_custom_call.1} parent=11 // pred_check
          %p479 = pneg %p316
        $region54: #{tpu_custom_call.1} parent=11 // pred_check_branch
          %481 = sbr.rel (%p479) target = $region56
        $region55: #{tpu_custom_call.1} parent=11 // pred_region
          _
        $region56: #{tpu_custom_call.1} parent=11 // pred_fallthru
          _
        // Predicated region
        $region57: #{tpu_custom_call.1} parent=11 // pred_check
          %p482 = pneg %p337
        $region58: #{tpu_custom_call.1} parent=11 // pred_check_branch
          %484 = sbr.rel (%p482) target = $region60
        $region59: #{tpu_custom_call.1} parent=11 // pred_region
          _
        $region60: #{tpu_custom_call.1} parent=11 // pred_fallthru
          _
        // Predicated region
        $region61: #{tpu_custom_call.1} parent=11 // pred_check
          %p485 = pneg %p358
        $region62: #{tpu_custom_call.1} parent=11 // pred_check_branch
          %487 = sbr.rel (%p485) target = $region64
        $region63: #{tpu_custom_call.1} parent=11 // pred_region
          %489 = vsyncadd [#allocation12], 0
          %s490 = sshll.u32 %s14, 4
          %s491 = int_to_ptr.hbm [resolvable:$true] %s490
          %s492 = sshll.u32 [#allocation11], 4
          %s493 = int_to_ptr.vmem [resolvable:$true] %s492
          %498 = dma.hbm_to_vmem [thread:$0]  %s491, 32, %s493, [#allocation12], 16, 16, 1
        $region64: #{tpu_custom_call.1} parent=11 // pred_fallthru
          _
        // Predicated region
        $region65: #{tpu_custom_call.1} parent=11 // pred_check
          %p499 = pneg %p379
        $region66: #{tpu_custom_call.1} parent=11 // pred_check_branch
          %501 = sbr.rel (%p499) target = $region68
        $region67: #{tpu_custom_call.1} parent=11 // pred_region
          _
        $region68: #{tpu_custom_call.1} parent=11 // pred_fallthru
          _
      $region12: #{tpu_custom_call.1} parent=5 // pred_fallthru
        _
      %p502 = scmp.lt.s32.totalorder %s33, 2
      // Predicated region
      $region69: #{tpu_custom_call.1} parent=5 // pred_check
        %p503 = pneg %p502
      $region70: #{tpu_custom_call.1} parent=5 // pred_check_branch
        %505 = sbr.rel (%p503) target = $region72
      $region71: #{tpu_custom_call.1} parent=5 // pred_region
        // Predicated region
        $region73: #{tpu_custom_call.1} parent=71 // pred_check
          %p506 = pneg %p53
        $region74: #{tpu_custom_call.1} parent=71 // pred_check_branch
          %508 = sbr.rel (%p506) target = $region76
        $region75: #{tpu_custom_call.1} parent=71 // pred_region
          %s509 = sand.u32 %s43, 1
          %s510 = scalar_lea.sflag [#allocation3], %s509
          %s511 = sand.u32 %s43, 1
          %s512 = smul.addr %s511, 16
          %s513 = scalar_lea.vmem [#allocation2], %s512
          %515 = vsyncadd %s510, 0
          %s516 = smul.addr %s33, 2
          %s517 = smul.addr %s516, 8
          %s518 = scalar_lea.hbm %s0, %s517
          %s519 = sshll.u32 %s518, 4
          %s520 = int_to_ptr.hbm [resolvable:$true] %s519
          %s521 = sshll.u32 %s513, 4
          %s522 = int_to_ptr.vmem [resolvable:$true] %s521
          %527 = dma.hbm_to_vmem [thread:$0]  %s520, 256, %s522, %s510, 128, 128, 8
        $region76: #{tpu_custom_call.1} parent=71 // pred_fallthru
          _
        // Predicated region
        $region77: #{tpu_custom_call.1} parent=71 // pred_check
          %p528 = pneg %p79
        $region78: #{tpu_custom_call.1} parent=71 // pred_check_branch
          %530 = sbr.rel (%p528) target = $region80
        $region79: #{tpu_custom_call.1} parent=71 // pred_region
          %s531 = sand.u32 %s33, 1
          %s532 = scalar_lea.sflag [#allocation6], %s531
          %s533 = sand.u32 %s69, 1
          %s534 = scalar_lea.vmem [#allocation5], %s533
          %536 = vsyncadd %s532, 0
          %s537 = scalar_lea.hbm %s1, %s33
          %s539 = sshll.u32 %s537, 4
          %s540 = int_to_ptr.hbm [resolvable:$true] %s539
          %s541 = sshll.u32 %s534, 4
          %s542 = int_to_ptr.vmem [resolvable:$true] %s541
          %544 = dma.hbm_to_vmem [thread:$0]  %s540, 16, %s542, %s532
        $region80: #{tpu_custom_call.1} parent=71 // pred_fallthru
          _
      $region72: #{tpu_custom_call.1} parent=5 // pred_fallthru
        _
      %p545 = scmp.le.s32.totalorder 1, %s33
      %p546 = scmp.lt.s32.totalorder %s33, 3
      %p547 = pnand %p545, %p546
      %p548 = pneg %p547
      // Predicated region
      $region81: #{tpu_custom_call.1} parent=5 // pred_check
        _
      $region82: #{tpu_custom_call.1} parent=5 // pred_check_branch
        %550 = sbr.rel (%p547) target = $region84
      $region83: #{tpu_custom_call.1} parent=5 // pred_region
        %s551 = ssub.s32 %s33, 1
        %s552 = sand.u32 %s46, 1
        %s553 = scalar_lea.sflag [#allocation3], %s552
        %s554 = sand.u32 %s46, 1
        %s555 = smul.addr %s554, 16
        %s556 = scalar_lea.vmem [#allocation2], %s555
        // Predicated region
        $region85: #{tpu_custom_call.1} parent=83 // pred_check
          %p557 = pneg %p59
        $region86: #{tpu_custom_call.1} parent=83 // pred_check_branch
          %559 = sbr.rel (%p557) target = $region88
        $region87: #{tpu_custom_call.1} parent=83 // pred_region
          %561 = dma.done %s553, 256
        $region88: #{tpu_custom_call.1} parent=83 // pred_fallthru
          _
        %s562 = sand.u32 %s38, 1
        %s563 = scalar_lea.sflag [#allocation6], %s562
        %s564 = sand.u32 %s72, 1
        %s565 = scalar_lea.vmem [#allocation5], %s564
        // Predicated region
        $region89: #{tpu_custom_call.1} parent=83 // pred_check
          %p566 = pneg %p85
        $region90: #{tpu_custom_call.1} parent=83 // pred_check_branch
          %568 = sbr.rel (%p566) target = $region92
        $region91: #{tpu_custom_call.1} parent=83 // pred_region
          %570 = dma.done %s563, 16
        $region92: #{tpu_custom_call.1} parent=83 // pred_fallthru
          _
        // Predicated region
        $region93: #{tpu_custom_call.1} parent=83 // pred_check
          %p571 = pneg %p106
        $region94: #{tpu_custom_call.1} parent=83 // pred_check_branch
          %573 = sbr.rel (%p571) target = $region96
        $region95: #{tpu_custom_call.1} parent=83 // pred_region
          %575 = dma.done [#allocation6], 16
        $region96: #{tpu_custom_call.1} parent=83 // pred_fallthru
          _
        // Predicated region
        $region97: #{tpu_custom_call.1} parent=83 // pred_check
          %p576 = pneg %p127
        $region98: #{tpu_custom_call.1} parent=83 // pred_check_branch
          %578 = sbr.rel (%p576) target = $region100
        $region99: #{tpu_custom_call.1} parent=83 // pred_region
          %580 = dma.done [#allocation9], 16
        $region100: #{tpu_custom_call.1} parent=83 // pred_fallthru
          _
        // Predicated region
        $region101: #{tpu_custom_call.1} parent=83 // pred_check
          %p581 = pneg %p232
        $region102: #{tpu_custom_call.1} parent=83 // pred_check_branch
          %583 = sbr.rel (%p581) target = $region104
        $region103: #{tpu_custom_call.1} parent=83 // pred_region
          %585 = dma.done [#allocation9], 32
        $region104: #{tpu_custom_call.1} parent=83 // pred_fallthru
          _
        // Predicated region
        $region105: #{tpu_custom_call.1} parent=83 // pred_check
          %p586 = pneg %p358
        $region106: #{tpu_custom_call.1} parent=83 // pred_check_branch
          %588 = sbr.rel (%p586) target = $region108
        $region107: #{tpu_custom_call.1} parent=83 // pred_region
          %590 = dma.done [#allocation12], 32
        $region108: #{tpu_custom_call.1} parent=83 // pred_fallthru
          _
        %s591 = sand.u32 %s46, 1
        %s592 = scalar_lea.sflag [#allocation3], %s591
        %s593 = sand.u32 %s46, 1
        %s594 = smul.addr %s593, 16
        %s595 = scalar_lea.vmem [#allocation2], %s594
        %p596 = pneg %p59
        %p597 = pneg %p56
        %s598 = sand.u32 %s38, 1
        %s599 = scalar_lea.sflag [#allocation6], %s598
        %s600 = sand.u32 %s72, 1
        %s601 = scalar_lea.vmem [#allocation5], %s600
        %p602 = pneg %p85
        %p603 = pneg %p82
        %p604 = pneg %p106
        %p605 = pneg %p103
        %p606 = pneg %p127
        %p607 = pneg %p124
        %p608 = pneg %p148
        %p609 = pneg %p145
        %p610 = pneg %p169
        %p611 = pneg %p166
        %p612 = pneg %p190
        %p613 = pneg %p187
        %p614 = pneg %p211
        %p615 = pneg %p208
        %p616 = pneg %p232
        %p617 = pneg %p229
        %p618 = pneg %p253
        %p619 = pneg %p250
        %p620 = pneg %p274
        %p621 = pneg %p271
        %p622 = pneg %p295
        %p623 = pneg %p292
        %p624 = pneg %p316
        %p625 = pneg %p313
        %p626 = pneg %p337
        %p627 = pneg %p334
        %p628 = pneg %p358
        %p629 = pneg %p355
        %p630 = pneg %p379
        %p631 = pneg %p376
        %p632 = pneg %p405
        %p633 = pneg %p402
        %s634 = sand.u32 %s392, 1
        %s635 = scalar_lea.sflag [#allocation4], %s634
        %s636 = sand.u32 %s392, 1
        %s637 = smul.addr %s636, 16
        %s638 = scalar_lea.vmem [#allocation13], %s637
        %v639 = vld [vmem:[%s556] sm:$0xff]
        %v640 = vld [vmem:[%s556 + $0x8] sm:$0xff]
        %v641 = vld [vmem:[#allocation7] sm:$0x1]
        %v642 = vld [vmem:[#allocation8] sm:$0x1]
        %vm643 = vcmask 261120
        %v644 = vsel %vm643, %v639, 0.0
        %645 = vadd.xlane.f32.xlu0 %v644
        %v646 = vpop.xlane.xlu0 %645
        %v647 = vsel %vm643, %v640, 0.0
        %648 = vadd.xlane.f32.xlu0 %v647
        %v649 = vpop.xlane.xlu0 %648
        %v650 = vrcp.pop 32.0
        %v651 = vmul.f32 32.0, %v650
        %v652 = vsub.f32 1.0, %v651
        %v653 = vmul.f32 %v650, %v652
        %v654 = vadd.f32 %v650, %v653
        %vm655 = vweird.f32 %v650
        %v656 = vsel %vm655, %v650, %v654
        %v657 = vmul.f32 %v646, %v656
        %v658 = vmul.f32 %v649, %v656
        %v659 = vsub.f32 %v639, %v657
        %v660 = vsub.f32 %v640, %v658
        %v661 = vmul.f32 %v659, %v659
        %v662 = vmul.f32 %v660, %v660
        %v663 = vsel %vm643, %v661, 0.0
        %664 = vadd.xlane.f32.xlu0 %v663
        %v665 = vpop.xlane.xlu0 %664
        %v666 = vsel %vm643, %v662, 0.0
        %667 = vadd.xlane.f32.xlu0 %v666
        %v668 = vpop.xlane.xlu0 %667
        %v669 = vmul.f32 %v665, %v656
        %v670 = vmul.f32 %v668, %v656
        %v671 = vadd.f32 %v669, 1e-12
        %v672 = vadd.f32 %v670, 1e-12
        %v673 = vrsqrt.pop %v671
        %v674 = vmul.f32 %v673, %v671
        %v675 = vmul.f32 %v674, %v673
        %v676 = vmul.f32 0.5, %v675
        %v677 = vsub.f32 1.5, %v676
        %v678 = vmul.f32 %v673, %v677
        %vm679 = vweird.f32 %v671
        %vm680 = vweird.f32 %v673
        %vm681 = vmor %vm679, %vm680
        %v682 = vsel %vm681, %v673, %v678
        %v683 = vrsqrt.pop %v672
        %v684 = vmul.f32 %v683, %v672
        %v685 = vmul.f32 %v684, %v683
        %v686 = vmul.f32 0.5, %v685
        %v687 = vsub.f32 1.5, %v686
        %v688 = vmul.f32 %v683, %v687
        %vm689 = vweird.f32 %v672
        %vm690 = vweird.f32 %v683
        %vm691 = vmor %vm689, %vm690
        %v692 = vsel %vm691, %v683, %v688
        %v693 = vmul.f32 %v659, %v682
        %v694 = vmul.f32 %v660, %v692
        %v696 = vperm.slane %v641, 0
        %v698 = vmul.f32 %v693, %v696
        %v699 = vmul.f32 %v694, %v696
        %v701 = vperm.slane %v642, 0
        %v703 = vadd.f32 %v698, %v701
        %v704 = vadd.f32 %v699, %v701
        %v705 = vld [vmem:[%s565] sm:$0x1]
        %v706 = vsub.f32 1.0, %v705
        %v707 = vmul.f32 %v706, -10000.0
        %v708 = vld [vmem:[%s4] sm:$0xff]
        %v709 = vld [vmem:[%s4 + $0x8] sm:$0xff]
        %v710 = vld [vmem:[%s4 + $0x10] sm:$0xff]
        %v711 = vld [vmem:[%s4 + $0x18] sm:$0xff]
        %v712 = vld [vmem:[%s5] sm:$0x1]
        %v714 = vperm.slane %v712, 0
        %v717 = vsel %vm643, %v703, 0
        %v720 = vsel %vm643, %v704, 0
        %722 = vmatpush.msra.mxu0 0.0
        %723 = vmatpush.msra.mxu0 0.0
        %724 = vmatpush.msra.mxu0 0.0
        %725 = vmatpush.msra.mxu0 0.0
        %726 = vmatpush.msra.mxu0 0.0
        %727 = vmatpush.msra.mxu0 0.0
        %728 = vmatpush.msra.mxu0 0.0
        %729 = vmatpush.msra.mxu0 0.0
        %730 = vmatpush.msra.mxu0 0.0
        %731 = vmatpush.msra.mxu0 0.0
        %732 = vmatpush.msra.mxu0 0.0
        %733 = vmatpush.msra.mxu0 0.0
        %734 = vmatpush.msra.mxu0 %v711
        %735 = vmatpush.msra.mxu0 %v710
        %736 = vmatpush.msra.mxu0 %v709
        %737 = vmatpush.msra.mxu0 %v708
        %738 = vmatmul.f32.gmra.mxu0 %v717
        %v739 = vpop.f32.mrf.mxu0
        %v740 = vadd.f32 %v714, %v739
        %741 = vmatmul.f32.gmra.mxu0 %v720
        %v742 = vpop.f32.mrf.mxu0
        %v743 = vadd.f32 %v714, %v742
        %744 = vdwg.mxu0
        %747 = vrot.lane.b32.xlu0 %v740, 96
        %v748 = vpop.permute.xlu0 %747
        %749 = vrot.lane.b32.xlu0 %v743, 96
        %v750 = vpop.permute.xlu0 %749
        %vm751 = vcmask 64512
        %v752 = vsel %vm751, %v740, 0
        %v754 = vsel %vm751, %v743, 0
        %v756 = vsel %vm751, %v748, 0
        %v758 = vsel %vm751, %v750, 0
        %760 = vmatpush.xpose.msra.mxu0 0.0
        %761 = vmatpush.xpose.msra.mxu0 0.0
        %762 = vmatpush.xpose.msra.mxu0 0.0
        %763 = vmatpush.xpose.msra.mxu0 0.0
        %764 = vmatpush.xpose.msra.mxu0 0.0
        %765 = vmatpush.xpose.msra.mxu0 0.0
        %766 = vmatpush.xpose.msra.mxu0 0.0
        %767 = vmatpush.xpose.msra.mxu0 0.0
        %768 = vmatpush.xpose.msra.mxu0 0.0
        %769 = vmatpush.xpose.msra.mxu0 0.0
        %770 = vmatpush.xpose.msra.mxu0 0.0
        %771 = vmatpush.xpose.msra.mxu0 0.0
        %772 = vmatpush.xpose.msra.mxu0 0.0
        %773 = vmatpush.xpose.msra.mxu0 0.0
        %774 = vmatpush.xpose.msra.mxu0 %v758
        %775 = vmatpush.xpose.msra.mxu0 %v756
        %776 = vmatmul.f32.gmra.mxu0 %v752
        %v777 = vpop.f32.mrf.mxu0
        %v778 = vadd.f32 0.0, %v777
        %779 = vmatmul.f32.gmra.mxu0 %v754
        %v780 = vpop.f32.mrf.mxu0
        %v781 = vadd.f32 0.0, %v780
        %782 = vdwg.mxu0
        %v783 = vmul.f32 %v778, 0.35355338
        %v784 = vmul.f32 %v781, 0.35355338
        %v786 = vperm.slane %v707, 0
        %v788 = vadd.f32 %v783, %v786
        %v789 = vadd.f32 %v784, %v786
        %vm790 = vcmask 130048
        %v791 = vsel %vm790, %v788, -inf
        %792 = vmax.xlane.f32.xlu0 %v791
        %v793 = vpop.xlane.xlu0 %792
        %v794 = vsel %vm790, %v789, -inf
        %795 = vmax.xlane.f32.xlu0 %v794
        %v796 = vpop.xlane.xlu0 %795
        %v797 = vsub.f32 %v788, %v793
        %v798 = vsub.f32 %v789, %v796
        %v799 = vmul.f32 %v797, 1.442695
        %v800 = vpow.pop %v799
        %v801 = vmul.f32 %v798, 1.442695
        %v802 = vpow.pop %v801
        %v803 = vsel %vm790, %v800, 0.0
        %804 = vadd.xlane.f32.xlu0 %v803
        %v805 = vpop.xlane.xlu0 %804
        %v806 = vsel %vm790, %v802, 0.0
        %807 = vadd.xlane.f32.xlu0 %v806
        %v808 = vpop.xlane.xlu0 %807
        %v809 = vrcp.pop %v805
        %v810 = vrcp.pop %v808
        %v811 = vmul.f32 %v800, %v809
        %v812 = vmul.f32 %v802, %v810
        %813 = vrot.lane.b32.xlu0 %v740, 64
        %v814 = vpop.permute.xlu0 %813
        %815 = vrot.lane.b32.xlu0 %v743, 64
        %v816 = vpop.permute.xlu0 %815
        %v820 = vsel %vm790, %v811, 0
        %v823 = vsel %vm790, %v812, 0
        %825 = vmatpush.msra.mxu0 0.0
        %826 = vmatpush.msra.mxu0 0.0
        %827 = vmatpush.msra.mxu0 0.0
        %828 = vmatpush.msra.mxu0 0.0
        %829 = vmatpush.msra.mxu0 0.0
        %830 = vmatpush.msra.mxu0 0.0
        %831 = vmatpush.msra.mxu0 0.0
        %832 = vmatpush.msra.mxu0 0.0
        %833 = vmatpush.msra.mxu0 0.0
        %834 = vmatpush.msra.mxu0 0.0
        %835 = vmatpush.msra.mxu0 0.0
        %836 = vmatpush.msra.mxu0 0.0
        %837 = vmatpush.msra.mxu0 0.0
        %838 = vmatpush.msra.mxu0 0.0
        %839 = vmatpush.msra.mxu0 %v816
        %840 = vmatpush.msra.mxu0 %v814
        %841 = vmatmul.f32.gmra.mxu0 %v820
        %v842 = vpop.f32.mrf.mxu0
        %v843 = vadd.f32 0.0, %v842
        %844 = vmatmul.f32.gmra.mxu0 %v823
        %v845 = vpop.f32.mrf.mxu0
        %v846 = vadd.f32 0.0, %v845
        %847 = vdwg.mxu0
        %848 = vrot.lane.b32.xlu0 %v740, 120
        %v849 = vpop.permute.xlu0 %848
        %850 = vrot.lane.b32.xlu0 %v743, 120
        %v851 = vpop.permute.xlu0 %850
        %852 = vrot.lane.b32.xlu0 %v740, 88
        %v853 = vpop.permute.xlu0 %852
        %854 = vrot.lane.b32.xlu0 %v743, 88
        %v855 = vpop.permute.xlu0 %854
        %v856 = vsel %vm751, %v849, 0
        %v858 = vsel %vm751, %v851, 0
        %v860 = vsel %vm751, %v853, 0
        %v862 = vsel %vm751, %v855, 0
        %864 = vmatpush.xpose.msra.mxu0 0.0
        %865 = vmatpush.xpose.msra.mxu0 0.0
        %866 = vmatpush.xpose.msra.mxu0 0.0
        %867 = vmatpush.xpose.msra.mxu0 0.0
        %868 = vmatpush.xpose.msra.mxu0 0.0
        %869 = vmatpush.xpose.msra.mxu0 0.0
        %870 = vmatpush.xpose.msra.mxu0 0.0
        %871 = vmatpush.xpose.msra.mxu0 0.0
        %872 = vmatpush.xpose.msra.mxu0 0.0
        %873 = vmatpush.xpose.msra.mxu0 0.0
        %874 = vmatpush.xpose.msra.mxu0 0.0
        %875 = vmatpush.xpose.msra.mxu0 0.0
        %876 = vmatpush.xpose.msra.mxu0 0.0
        %877 = vmatpush.xpose.msra.mxu0 0.0
        %878 = vmatpush.xpose.msra.mxu0 %v862
        %879 = vmatpush.xpose.msra.mxu0 %v860
        %880 = vmatmul.f32.gmra.mxu0 %v856
        %v881 = vpop.f32.mrf.mxu0
        %v882 = vadd.f32 0.0, %v881
        %883 = vmatmul.f32.gmra.mxu0 %v858
        %v884 = vpop.f32.mrf.mxu0
        %v885 = vadd.f32 0.0, %v884
        %886 = vdwg.mxu0
        %v887 = vmul.f32 %v882, 0.35355338
        %v888 = vmul.f32 %v885, 0.35355338
        %v889 = vadd.f32 %v887, %v786
        %v890 = vadd.f32 %v888, %v786
        %v891 = vsel %vm790, %v889, -inf
        %892 = vmax.xlane.f32.xlu0 %v891
        %v893 = vpop.xlane.xlu0 %892
        %v894 = vsel %vm790, %v890, -inf
        %895 = vmax.xlane.f32.xlu0 %v894
        %v896 = vpop.xlane.xlu0 %895
        %v897 = vsub.f32 %v889, %v893
        %v898 = vsub.f32 %v890, %v896
        %v899 = vmul.f32 %v897, 1.442695
        %v900 = vpow.pop %v899
        %v901 = vmul.f32 %v898, 1.442695
        %v902 = vpow.pop %v901
        %v903 = vsel %vm790, %v900, 0.0
        %904 = vadd.xlane.f32.xlu0 %v903
        %v905 = vpop.xlane.xlu0 %904
        %v906 = vsel %vm790, %v902, 0.0
        %907 = vadd.xlane.f32.xlu0 %v906
        %v908 = vpop.xlane.xlu0 %907
        %v909 = vrcp.pop %v905
        %v910 = vrcp.pop %v908
        %v911 = vmul.f32 %v900, %v909
        %v912 = vmul.f32 %v902, %v910
        %913 = vrot.lane.b32.xlu0 %v740, 56
        %v914 = vpop.permute.xlu0 %913
        %915 = vrot.lane.b32.xlu0 %v743, 56
        %v916 = vpop.permute.xlu0 %915
        %v920 = vsel %vm790, %v911, 0
        %v923 = vsel %vm790, %v912, 0
        %925 = vmatpush.msra.mxu0 0.0
        %926 = vmatpush.msra.mxu0 0.0
        %927 = vmatpush.msra.mxu0 0.0
        %928 = vmatpush.msra.mxu0 0.0
        %929 = vmatpush.msra.mxu0 0.0
        %930 = vmatpush.msra.mxu0 0.0
        %931 = vmatpush.msra.mxu0 0.0
        %932 = vmatpush.msra.mxu0 0.0
        %933 = vmatpush.msra.mxu0 0.0
        %934 = vmatpush.msra.mxu0 0.0
        %935 = vmatpush.msra.mxu0 0.0
        %936 = vmatpush.msra.mxu0 0.0
        %937 = vmatpush.msra.mxu0 0.0
        %938 = vmatpush.msra.mxu0 0.0
        %939 = vmatpush.msra.mxu0 %v916
        %940 = vmatpush.msra.mxu0 %v914
        %941 = vmatmul.f32.gmra.mxu0 %v920
        %v942 = vpop.f32.mrf.mxu0
        %v943 = vadd.f32 0.0, %v942
        %944 = vmatmul.f32.gmra.mxu0 %v923
        %v945 = vpop.f32.mrf.mxu0
        %v946 = vadd.f32 0.0, %v945
        %947 = vdwg.mxu0
        %948 = vrot.lane.b32.xlu0 %v740, 112
        %v949 = vpop.permute.xlu0 %948
        %950 = vrot.lane.b32.xlu0 %v743, 112
        %v951 = vpop.permute.xlu0 %950
        %952 = vrot.lane.b32.xlu0 %v740, 80
        %v953 = vpop.permute.xlu0 %952
        %954 = vrot.lane.b32.xlu0 %v743, 80
        %v955 = vpop.permute.xlu0 %954
        %v956 = vsel %vm751, %v949, 0
        %v958 = vsel %vm751, %v951, 0
        %v960 = vsel %vm751, %v953, 0
        %v962 = vsel %vm751, %v955, 0
        %964 = vmatpush.xpose.msra.mxu0 0.0
        %965 = vmatpush.xpose.msra.mxu0 0.0
        %966 = vmatpush.xpose.msra.mxu0 0.0
        %967 = vmatpush.xpose.msra.mxu0 0.0
        %968 = vmatpush.xpose.msra.mxu0 0.0
        %969 = vmatpush.xpose.msra.mxu0 0.0
        %970 = vmatpush.xpose.msra.mxu0 0.0
        %971 = vmatpush.xpose.msra.mxu0 0.0
        %972 = vmatpush.xpose.msra.mxu0 0.0
        %973 = vmatpush.xpose.msra.mxu0 0.0
        %974 = vmatpush.xpose.msra.mxu0 0.0
        %975 = vmatpush.xpose.msra.mxu0 0.0
        %976 = vmatpush.xpose.msra.mxu0 0.0
        %977 = vmatpush.xpose.msra.mxu0 0.0
        %978 = vmatpush.xpose.msra.mxu0 %v962
        %979 = vmatpush.xpose.msra.mxu0 %v960
        %980 = vmatmul.f32.gmra.mxu0 %v956
        %v981 = vpop.f32.mrf.mxu0
        %v982 = vadd.f32 0.0, %v981
        %983 = vmatmul.f32.gmra.mxu0 %v958
        %v984 = vpop.f32.mrf.mxu0
        %v985 = vadd.f32 0.0, %v984
        %986 = vdwg.mxu0
        %v987 = vmul.f32 %v982, 0.35355338
        %v988 = vmul.f32 %v985, 0.35355338
        %v989 = vadd.f32 %v987, %v786
        %v990 = vadd.f32 %v988, %v786
        %v991 = vsel %vm790, %v989, -inf
        %992 = vmax.xlane.f32.xlu0 %v991
        %v993 = vpop.xlane.xlu0 %992
        %v994 = vsel %vm790, %v990, -inf
        %995 = vmax.xlane.f32.xlu0 %v994
        %v996 = vpop.xlane.xlu0 %995
        %v997 = vsub.f32 %v989, %v993
        %v998 = vsub.f32 %v990, %v996
        %v999 = vmul.f32 %v997, 1.442695
        %v1000 = vpow.pop %v999
        %v1001 = vmul.f32 %v998, 1.442695
        %v1002 = vpow.pop %v1001
        %v1003 = vsel %vm790, %v1000, 0.0
        %1004 = vadd.xlane.f32.xlu0 %v1003
        %v1005 = vpop.xlane.xlu0 %1004
        %v1006 = vsel %vm790, %v1002, 0.0
        %1007 = vadd.xlane.f32.xlu0 %v1006
        %v1008 = vpop.xlane.xlu0 %1007
        %v1009 = vrcp.pop %v1005
        %v1010 = vrcp.pop %v1008
        %v1011 = vmul.f32 %v1000, %v1009
        %v1012 = vmul.f32 %v1002, %v1010
        %1013 = vrot.lane.b32.xlu0 %v740, 48
        %v1014 = vpop.permute.xlu0 %1013
        %1015 = vrot.lane.b32.xlu0 %v743, 48
        %v1016 = vpop.permute.xlu0 %1015
        %v1020 = vsel %vm790, %v1011, 0
        %v1023 = vsel %vm790, %v1012, 0
        %1025 = vmatpush.msra.mxu0 0.0
        %1026 = vmatpush.msra.mxu0 0.0
        %1027 = vmatpush.msra.mxu0 0.0
        %1028 = vmatpush.msra.mxu0 0.0
        %1029 = vmatpush.msra.mxu0 0.0
        %1030 = vmatpush.msra.mxu0 0.0
        %1031 = vmatpush.msra.mxu0 0.0
        %1032 = vmatpush.msra.mxu0 0.0
        %1033 = vmatpush.msra.mxu0 0.0
        %1034 = vmatpush.msra.mxu0 0.0
        %1035 = vmatpush.msra.mxu0 0.0
        %1036 = vmatpush.msra.mxu0 0.0
        %1037 = vmatpush.msra.mxu0 0.0
        %1038 = vmatpush.msra.mxu0 0.0
        %1039 = vmatpush.msra.mxu0 %v1016
        %1040 = vmatpush.msra.mxu0 %v1014
        %1041 = vmatmul.f32.gmra.mxu0 %v1020
        %v1042 = vpop.f32.mrf.mxu0
        %v1043 = vadd.f32 0.0, %v1042
        %1044 = vmatmul.f32.gmra.mxu0 %v1023
        %v1045 = vpop.f32.mrf.mxu0
        %v1046 = vadd.f32 0.0, %v1045
        %1047 = vdwg.mxu0
        %1048 = vrot.lane.b32.xlu0 %v740, 104
        %v1049 = vpop.permute.xlu0 %1048
        %1050 = vrot.lane.b32.xlu0 %v743, 104
        %v1051 = vpop.permute.xlu0 %1050
        %1052 = vrot.lane.b32.xlu0 %v740, 72
        %v1053 = vpop.permute.xlu0 %1052
        %1054 = vrot.lane.b32.xlu0 %v743, 72
        %v1055 = vpop.permute.xlu0 %1054
        %v1056 = vsel %vm751, %v1049, 0
        %v1058 = vsel %vm751, %v1051, 0
        %v1060 = vsel %vm751, %v1053, 0
        %v1062 = vsel %vm751, %v1055, 0
        %1064 = vmatpush.xpose.msra.mxu0 0.0
        %1065 = vmatpush.xpose.msra.mxu0 0.0
        %1066 = vmatpush.xpose.msra.mxu0 0.0
        %1067 = vmatpush.xpose.msra.mxu0 0.0
        %1068 = vmatpush.xpose.msra.mxu0 0.0
        %1069 = vmatpush.xpose.msra.mxu0 0.0
        %1070 = vmatpush.xpose.msra.mxu0 0.0
        %1071 = vmatpush.xpose.msra.mxu0 0.0
        %1072 = vmatpush.xpose.msra.mxu0 0.0
        %1073 = vmatpush.xpose.msra.mxu0 0.0
        %1074 = vmatpush.xpose.msra.mxu0 0.0
        %1075 = vmatpush.xpose.msra.mxu0 0.0
        %1076 = vmatpush.xpose.msra.mxu0 0.0
        %1077 = vmatpush.xpose.msra.mxu0 0.0
        %1078 = vmatpush.xpose.msra.mxu0 %v1062
        %1079 = vmatpush.xpose.msra.mxu0 %v1060
        %1080 = vmatmul.f32.gmra.mxu0 %v1056
        %v1081 = vpop.f32.mrf.mxu0
        %v1082 = vadd.f32 0.0, %v1081
        %1083 = vmatmul.f32.gmra.mxu0 %v1058
        %v1084 = vpop.f32.mrf.mxu0
        %v1085 = vadd.f32 0.0, %v1084
        %1086 = vdwg.mxu0
        %v1087 = vmul.f32 %v1082, 0.35355338
        %v1088 = vmul.f32 %v1085, 0.35355338
        %v1089 = vadd.f32 %v1087, %v786
        %v1090 = vadd.f32 %v1088, %v786
        %v1091 = vsel %vm790, %v1089, -inf
        %1092 = vmax.xlane.f32.xlu0 %v1091
        %v1093 = vpop.xlane.xlu0 %1092
        %v1094 = vsel %vm790, %v1090, -inf
        %1095 = vmax.xlane.f32.xlu0 %v1094
        %v1096 = vpop.xlane.xlu0 %1095
        %v1097 = vsub.f32 %v1089, %v1093
        %v1098 = vsub.f32 %v1090, %v1096
        %v1099 = vmul.f32 %v1097, 1.442695
        %v1100 = vpow.pop %v1099
        %v1101 = vmul.f32 %v1098, 1.442695
        %v1102 = vpow.pop %v1101
        %v1103 = vsel %vm790, %v1100, 0.0
        %1104 = vadd.xlane.f32.xlu0 %v1103
        %v1105 = vpop.xlane.xlu0 %1104
        %v1106 = vsel %vm790, %v1102, 0.0
        %1107 = vadd.xlane.f32.xlu0 %v1106
        %v1108 = vpop.xlane.xlu0 %1107
        %v1109 = vrcp.pop %v1105
        %v1110 = vrcp.pop %v1108
        %v1111 = vmul.f32 %v1100, %v1109
        %v1112 = vmul.f32 %v1102, %v1110
        %1113 = vrot.lane.b32.xlu0 %v740, 40
        %v1114 = vpop.permute.xlu0 %1113
        %1115 = vrot.lane.b32.xlu0 %v743, 40
        %v1116 = vpop.permute.xlu0 %1115
        %v1120 = vsel %vm790, %v1111, 0
        %v1123 = vsel %vm790, %v1112, 0
        %1125 = vmatpush.msra.mxu0 0.0
        %1126 = vmatpush.msra.mxu0 0.0
        %1127 = vmatpush.msra.mxu0 0.0
        %1128 = vmatpush.msra.mxu0 0.0
        %1129 = vmatpush.msra.mxu0 0.0
        %1130 = vmatpush.msra.mxu0 0.0
        %1131 = vmatpush.msra.mxu0 0.0
        %1132 = vmatpush.msra.mxu0 0.0
        %1133 = vmatpush.msra.mxu0 0.0
        %1134 = vmatpush.msra.mxu0 0.0
        %1135 = vmatpush.msra.mxu0 0.0
        %1136 = vmatpush.msra.mxu0 0.0
        %1137 = vmatpush.msra.mxu0 0.0
        %1138 = vmatpush.msra.mxu0 0.0
        %1139 = vmatpush.msra.mxu0 %v1116
        %1140 = vmatpush.msra.mxu0 %v1114
        %1141 = vmatmul.f32.gmra.mxu0 %v1120
        %v1142 = vpop.f32.mrf.mxu0
        %v1143 = vadd.f32 0.0, %v1142
        %1144 = vmatmul.f32.gmra.mxu0 %v1123
        %v1145 = vpop.f32.mrf.mxu0
        %v1146 = vadd.f32 0.0, %v1145
        %1147 = vdwg.mxu0
        %1150 = vrot.lane.b32.xlu0 %v943, 8
        %v1151 = vpop.permute.xlu0 %1150
        %1152 = vrot.lane.b32.xlu0 %v946, 8
        %v1153 = vpop.permute.xlu0 %1152
        %1158 = vrot.lane.b32.xlu0 %v1043, 16
        %v1159 = vpop.permute.xlu0 %1158
        %1160 = vrot.lane.b32.xlu0 %v1046, 16
        %v1161 = vpop.permute.xlu0 %1160
        %1166 = vrot.lane.b32.xlu0 %v1143, 24
        %v1167 = vpop.permute.xlu0 %1166
        %1168 = vrot.lane.b32.xlu0 %v1146, 24
        %v1169 = vpop.permute.xlu0 %1168
        %v1172 = vsel %vm751, %v843, %v1151
        %v1173 = vsel %vm751, %v846, %v1153
        %v1174 = vsel %vm790, %v1172, %v1159
        %v1175 = vsel %vm790, %v1173, %v1161
        %vm1176 = vcmask 195584
        %v1177 = vsel %vm1176, %v1174, %v1167
        %v1178 = vsel %vm1176, %v1175, %v1169
        %v1179 = vld [vmem:[%s6] sm:$0xff]
        %v1180 = vld [vmem:[%s6 + $0x8] sm:$0xff]
        %v1181 = vld [vmem:[%s6 + $0x10] sm:$0xff]
        %v1182 = vld [vmem:[%s6 + $0x18] sm:$0xff]
        %v1183 = vld [vmem:[%s7] sm:$0x1]
        %v1185 = vperm.slane %v1183, 0
        %v1188 = vsel %vm643, %v1177, 0
        %v1191 = vsel %vm643, %v1178, 0
        %1193 = vmatpush.msra.mxu0 0.0
        %1194 = vmatpush.msra.mxu0 0.0
        %1195 = vmatpush.msra.mxu0 0.0
        %1196 = vmatpush.msra.mxu0 0.0
        %1197 = vmatpush.msra.mxu0 0.0
        %1198 = vmatpush.msra.mxu0 0.0
        %1199 = vmatpush.msra.mxu0 0.0
        %1200 = vmatpush.msra.mxu0 0.0
        %1201 = vmatpush.msra.mxu0 0.0
        %1202 = vmatpush.msra.mxu0 0.0
        %1203 = vmatpush.msra.mxu0 0.0
        %1204 = vmatpush.msra.mxu0 0.0
        %1205 = vmatpush.msra.mxu0 %v1182
        %1206 = vmatpush.msra.mxu0 %v1181
        %1207 = vmatpush.msra.mxu0 %v1180
        %1208 = vmatpush.msra.mxu0 %v1179
        %1209 = vmatmul.f32.gmra.mxu0 %v1188
        %v1210 = vpop.f32.mrf.mxu0
        %v1211 = vadd.f32 %v1185, %v1210
        %1212 = vmatmul.f32.gmra.mxu0 %v1191
        %v1213 = vpop.f32.mrf.mxu0
        %v1214 = vadd.f32 %v1185, %v1213
        %1215 = vdwg.mxu0
        %v1216 = vadd.f32 %v703, %v1211
        %v1217 = vadd.f32 %v704, %v1214
        %v1218 = vld [vmem:[#allocation10] sm:$0x1]
        %v1219 = vld [vmem:[%s9] sm:$0x1]
        %v1220 = vsel %vm643, %v1216, 0.0
        %1221 = vadd.xlane.f32.xlu0 %v1220
        %v1222 = vpop.xlane.xlu0 %1221
        %v1223 = vsel %vm643, %v1217, 0.0
        %1224 = vadd.xlane.f32.xlu0 %v1223
        %v1225 = vpop.xlane.xlu0 %1224
        %v1226 = vmul.f32 %v1222, %v656
        %v1227 = vmul.f32 %v1225, %v656
        %v1228 = vsub.f32 %v1216, %v1226
        %v1229 = vsub.f32 %v1217, %v1227
        %v1230 = vmul.f32 %v1228, %v1228
        %v1231 = vmul.f32 %v1229, %v1229
        %v1232 = vsel %vm643, %v1230, 0.0
        %1233 = vadd.xlane.f32.xlu0 %v1232
        %v1234 = vpop.xlane.xlu0 %1233
        %v1235 = vsel %vm643, %v1231, 0.0
        %1236 = vadd.xlane.f32.xlu0 %v1235
        %v1237 = vpop.xlane.xlu0 %1236
        %v1238 = vmul.f32 %v1234, %v656
        %v1239 = vmul.f32 %v1237, %v656
        %v1240 = vadd.f32 %v1238, 1e-12
        %v1241 = vadd.f32 %v1239, 1e-12
        %v1242 = vrsqrt.pop %v1240
        %v1243 = vmul.f32 %v1242, %v1240
        %v1244 = vmul.f32 %v1243, %v1242
        %v1245 = vmul.f32 0.5, %v1244
        %v1246 = vsub.f32 1.5, %v1245
        %v1247 = vmul.f32 %v1242, %v1246
        %vm1248 = vweird.f32 %v1240
        %vm1249 = vweird.f32 %v1242
        %vm1250 = vmor %vm1248, %vm1249
        %v1251 = vsel %vm1250, %v1242, %v1247
        %v1252 = vrsqrt.pop %v1241
        %v1253 = vmul.f32 %v1252, %v1241
        %v1254 = vmul.f32 %v1253, %v1252
        %v1255 = vmul.f32 0.5, %v1254
        %v1256 = vsub.f32 1.5, %v1255
        %v1257 = vmul.f32 %v1252, %v1256
        %vm1258 = vweird.f32 %v1241
        %vm1259 = vweird.f32 %v1252
        %vm1260 = vmor %vm1258, %vm1259
        %v1261 = vsel %vm1260, %v1252, %v1257
        %v1262 = vmul.f32 %v1228, %v1251
        %v1263 = vmul.f32 %v1229, %v1261
        %v1265 = vperm.slane %v1218, 0
        %v1267 = vmul.f32 %v1262, %v1265
        %v1268 = vmul.f32 %v1263, %v1265
        %v1270 = vperm.slane %v1219, 0
        %v1272 = vadd.f32 %v1267, %v1270
        %v1273 = vadd.f32 %v1268, %v1270
        %v1274 = vld [vmem:[%s10] sm:$0xff]
        %v1275 = vld [vmem:[%s10 + $0x8] sm:$0xff]
        %v1276 = vld [vmem:[%s10 + $0x10] sm:$0xff]
        %v1277 = vld [vmem:[%s10 + $0x18] sm:$0xff]
        %v1278 = vld [vmem:[%s11] sm:$0x1]
        %v1280 = vperm.slane %v1278, 0
        %v1283 = vsel %vm643, %v1272, 0
        %v1286 = vsel %vm643, %v1273, 0
        %1288 = vmatpush.msra.mxu0 0.0
        %1289 = vmatpush.msra.mxu0 0.0
        %1290 = vmatpush.msra.mxu0 0.0
        %1291 = vmatpush.msra.mxu0 0.0
        %1292 = vmatpush.msra.mxu0 0.0
        %1293 = vmatpush.msra.mxu0 0.0
        %1294 = vmatpush.msra.mxu0 0.0
        %1295 = vmatpush.msra.mxu0 0.0
        %1296 = vmatpush.msra.mxu0 0.0
        %1297 = vmatpush.msra.mxu0 0.0
        %1298 = vmatpush.msra.mxu0 0.0
        %1299 = vmatpush.msra.mxu0 0.0
        %1300 = vmatpush.msra.mxu0 %v1277
        %1301 = vmatpush.msra.mxu0 %v1276
        %1302 = vmatpush.msra.mxu0 %v1275
        %1303 = vmatpush.msra.mxu0 %v1274
        %1304 = vmatmul.f32.gmra.mxu0 %v1283
        %v1305 = vpop.f32.mrf.mxu0
        %v1306 = vadd.f32 %v1280, %v1305
        %1307 = vmatmul.f32.gmra.mxu0 %v1286
        %v1308 = vpop.f32.mrf.mxu0
        %v1309 = vadd.f32 %v1280, %v1308
        %1310 = vdwg.mxu0
        %v1311 = vmul.f32 %v1306, 0.5
        %v1312 = vmul.f32 %v1309, 0.5
        %v1313 = vmul.f32 %v1306, 0.70710677
        %v1314 = vmul.f32 %v1309, 0.70710677
        %v1315 = vmul.f32 %v1313, %v1313
        %v1316 = vmin.f32 16.0, %v1315
        %v1317 = vmul.f32 %v1316, 2.1237322e-06
        %v1318 = vadd.f32 %v1317, 0.00028619796
        %v1319 = vmul.f32 %v1316, %v1318
        %v1320 = vadd.f32 %v1319, 0.0036580483
        %v1321 = vmul.f32 %v1316, %v1320
        %v1322 = vadd.f32 %v1321, 0.05243302
        %v1323 = vmul.f32 %v1316, %v1322
        %v1324 = vadd.f32 %v1323, 0.18741608
        %v1325 = vmul.f32 %v1316, %v1324
        %v1326 = vadd.f32 %v1325, 1.1283791
        %v1327 = vmul.f32 %v1313, %v1326
        %v1328 = vmul.f32 %v1316, 3.8918573e-05
        %v1329 = vadd.f32 %v1328, 0.001143296
        %v1330 = vmul.f32 %v1316, %v1329
        %v1331 = vadd.f32 %v1330, 0.014752088
        %v1332 = vmul.f32 %v1316, %v1331
        %v1333 = vadd.f32 %v1332, 0.112945676
        %v1334 = vmul.f32 %v1316, %v1333
        %v1335 = vadd.f32 %v1334, 0.4994258
        %v1336 = vmul.f32 %v1316, %v1335
        %v1337 = vadd.f32 %v1336, 1.0
        %v1338 = vrcp.pop %v1337
        %v1339 = vmul.f32 %v1337, %v1338
        %v1340 = vsub.f32 1.0, %v1339
        %v1341 = vmul.f32 %v1338, %v1340
        %v1342 = vadd.f32 %v1338, %v1341
        %vm1343 = vweird.f32 %v1337
        %vm1344 = vweird.f32 %v1338
        %vm1345 = vmor %vm1343, %vm1344
        %v1346 = vsel %vm1345, %v1338, %v1342
        %v1347 = vand.u32 2147483647, %v1337
        %vm1348 = vcmp.eq.f32.partialorder %v1347, 8.507059e+37
        %v1349 = vand.u32 %v1337, 2147483648
        %v1350 = vor.u32 1.1754944e-38, %v1349
        %v1351 = vsel %vm1348, %v1350, %v1346
        %v1352 = vmul.f32 %v1327, %v1351
        %v1353 = vmin.f32 %v1352, 1.0
        %v1354 = vmax.f32 %v1353, -1.0
        %v1355 = vmul.f32 %v1314, %v1314
        %v1356 = vmin.f32 16.0, %v1355
        %v1357 = vmul.f32 %v1356, 2.1237322e-06
        %v1358 = vadd.f32 %v1357, 0.00028619796
        %v1359 = vmul.f32 %v1356, %v1358
        %v1360 = vadd.f32 %v1359, 0.0036580483
        %v1361 = vmul.f32 %v1356, %v1360
        %v1362 = vadd.f32 %v1361, 0.05243302
        %v1363 = vmul.f32 %v1356, %v1362
        %v1364 = vadd.f32 %v1363, 0.18741608
        %v1365 = vmul.f32 %v1356, %v1364
        %v1366 = vadd.f32 %v1365, 1.1283791
        %v1367 = vmul.f32 %v1314, %v1366
        %v1368 = vmul.f32 %v1356, 3.8918573e-05
        %v1369 = vadd.f32 %v1368, 0.001143296
        %v1370 = vmul.f32 %v1356, %v1369
        %v1371 = vadd.f32 %v1370, 0.014752088
        %v1372 = vmul.f32 %v1356, %v1371
        %v1373 = vadd.f32 %v1372, 0.112945676
        %v1374 = vmul.f32 %v1356, %v1373
        %v1375 = vadd.f32 %v1374, 0.4994258
        %v1376 = vmul.f32 %v1356, %v1375
        %v1377 = vadd.f32 %v1376, 1.0
        %v1378 = vrcp.pop %v1377
        %v1379 = vmul.f32 %v1377, %v1378
        %v1380 = vsub.f32 1.0, %v1379
        %v1381 = vmul.f32 %v1378, %v1380
        %v1382 = vadd.f32 %v1378, %v1381
        %vm1383 = vweird.f32 %v1377
        %vm1384 = vweird.f32 %v1378
        %vm1385 = vmor %vm1383, %vm1384
        %v1386 = vsel %vm1385, %v1378, %v1382
        %v1387 = vand.u32 2147483647, %v1377
        %vm1388 = vcmp.eq.f32.partialorder %v1387, 8.507059e+37
        %v1389 = vand.u32 %v1377, 2147483648
        %v1390 = vor.u32 1.1754944e-38, %v1389
        %v1391 = vsel %vm1388, %v1390, %v1386
        %v1392 = vmul.f32 %v1367, %v1391
        %v1393 = vmin.f32 %v1392, 1.0
        %v1394 = vmax.f32 %v1393, -1.0
        %v1395 = vadd.f32 %v1354, 1.0
        %v1396 = vadd.f32 %v1394, 1.0
        %v1397 = vmul.f32 %v1311, %v1395
        %v1398 = vmul.f32 %v1312, %v1396
        %v1399 = vld [vmem:[%s12] sm:$0xff]
        %v1400 = vld [vmem:[%s12 + $0x8] sm:$0xff]
        %v1401 = vld [vmem:[%s12 + $0x10] sm:$0xff]
        %v1402 = vld [vmem:[%s12 + $0x18] sm:$0xff]
        %v1403 = vld [vmem:[%s12 + $0x20] sm:$0xff]
        %v1404 = vld [vmem:[%s12 + $0x28] sm:$0xff]
        %v1405 = vld [vmem:[%s12 + $0x30] sm:$0xff]
        %v1406 = vld [vmem:[%s12 + $0x38] sm:$0xff]
        %v1407 = vld [vmem:[%s13] sm:$0x1]
        %v1409 = vperm.slane %v1407, 0
        %vm1411 = vcmask 523264
        %v1413 = vsel %vm1411, %v1397, 0
        %v1416 = vsel %vm1411, %v1398, 0
        %1418 = vmatpush.msra.mxu0 0.0
        %1419 = vmatpush.msra.mxu0 0.0
        %1420 = vmatpush.msra.mxu0 0.0
        %1421 = vmatpush.msra.mxu0 0.0
        %1422 = vmatpush.msra.mxu0 0.0
        %1423 = vmatpush.msra.mxu0 0.0
        %1424 = vmatpush.msra.mxu0 0.0
        %1425 = vmatpush.msra.mxu0 0.0
        %1426 = vmatpush.msra.mxu0 %v1406
        %1427 = vmatpush.msra.mxu0 %v1405
        %1428 = vmatpush.msra.mxu0 %v1404
        %1429 = vmatpush.msra.mxu0 %v1403
        %1430 = vmatpush.msra.mxu0 %v1402
        %1431 = vmatpush.msra.mxu0 %v1401
        %1432 = vmatpush.msra.mxu0 %v1400
        %1433 = vmatpush.msra.mxu0 %v1399
        %1434 = vmatmul.f32.gmra.mxu0 %v1413
        %v1435 = vpop.f32.mrf.mxu0
        %v1436 = vadd.f32 %v1409, %v1435
        %1437 = vmatmul.f32.gmra.mxu0 %v1416
        %v1438 = vpop.f32.mrf.mxu0
        %v1439 = vadd.f32 %v1409, %v1438
        %1440 = vdwg.mxu0
        %v1441 = vadd.f32 %v1272, %v1436
        %v1442 = vadd.f32 %v1273, %v1439
        %v1443 = vld [vmem:[#allocation11] sm:$0x1]
        %v1444 = vld [vmem:[%s15] sm:$0x1]
        %v1445 = vsel %vm643, %v1441, 0.0
        %1446 = vadd.xlane.f32.xlu0 %v1445
        %v1447 = vpop.xlane.xlu0 %1446
        %v1448 = vsel %vm643, %v1442, 0.0
        %1449 = vadd.xlane.f32.xlu0 %v1448
        %v1450 = vpop.xlane.xlu0 %1449
        %v1451 = vmul.f32 %v1447, %v656
        %v1452 = vmul.f32 %v1450, %v656
        %v1453 = vsub.f32 %v1441, %v1451
        %v1454 = vsub.f32 %v1442, %v1452
        %v1455 = vmul.f32 %v1453, %v1453
        %v1456 = vmul.f32 %v1454, %v1454
        %v1457 = vsel %vm643, %v1455, 0.0
        %1458 = vadd.xlane.f32.xlu0 %v1457
        %v1459 = vpop.xlane.xlu0 %1458
        %v1460 = vsel %vm643, %v1456, 0.0
        %1461 = vadd.xlane.f32.xlu0 %v1460
        %v1462 = vpop.xlane.xlu0 %1461
        %v1463 = vmul.f32 %v1459, %v656
        %v1464 = vmul.f32 %v1462, %v656
        %v1465 = vadd.f32 %v1463, 1e-12
        %v1466 = vadd.f32 %v1464, 1e-12
        %v1467 = vrsqrt.pop %v1465
        %v1468 = vmul.f32 %v1467, %v1465
        %v1469 = vmul.f32 %v1468, %v1467
        %v1470 = vmul.f32 0.5, %v1469
        %v1471 = vsub.f32 1.5, %v1470
        %v1472 = vmul.f32 %v1467, %v1471
        %vm1473 = vweird.f32 %v1465
        %vm1474 = vweird.f32 %v1467
        %vm1475 = vmor %vm1473, %vm1474
        %v1476 = vsel %vm1475, %v1467, %v1472
        %v1477 = vrsqrt.pop %v1466
        %v1478 = vmul.f32 %v1477, %v1466
        %v1479 = vmul.f32 %v1478, %v1477
        %v1480 = vmul.f32 0.5, %v1479
        %v1481 = vsub.f32 1.5, %v1480
        %v1482 = vmul.f32 %v1477, %v1481
        %vm1483 = vweird.f32 %v1466
        %vm1484 = vweird.f32 %v1477
        %vm1485 = vmor %vm1483, %vm1484
        %v1486 = vsel %vm1485, %v1477, %v1482
        %v1487 = vmul.f32 %v1453, %v1476
        %v1488 = vmul.f32 %v1454, %v1486
        %v1490 = vperm.slane %v1443, 0
        %v1492 = vmul.f32 %v1487, %v1490
        %v1493 = vmul.f32 %v1488, %v1490
        %v1495 = vperm.slane %v1444, 0
        %v1497 = vadd.f32 %v1492, %v1495
        %v1498 = vadd.f32 %v1493, %v1495
        %s1499 = scalar_lea.vmem %s4, 32
        %v1500 = vld [vmem:[%s1499] sm:$0xff]
        %v1501 = vld [vmem:[%s1499 + $0x8] sm:$0xff]
        %v1502 = vld [vmem:[%s1499 + $0x10] sm:$0xff]
        %v1503 = vld [vmem:[%s1499 + $0x18] sm:$0xff]
        %s1504 = scalar_lea.vmem %s5, 1
        %v1505 = vld [vmem:[%s1504] sm:$0x1]
        %v1507 = vperm.slane %v1505, 0
        %v1510 = vsel %vm643, %v1497, 0
        %v1513 = vsel %vm643, %v1498, 0
        %1515 = vmatpush.msra.mxu0 0.0
        %1516 = vmatpush.msra.mxu0 0.0
        %1517 = vmatpush.msra.mxu0 0.0
        %1518 = vmatpush.msra.mxu0 0.0
        %1519 = vmatpush.msra.mxu0 0.0
        %1520 = vmatpush.msra.mxu0 0.0
        %1521 = vmatpush.msra.mxu0 0.0
        %1522 = vmatpush.msra.mxu0 0.0
        %1523 = vmatpush.msra.mxu0 0.0
        %1524 = vmatpush.msra.mxu0 0.0
        %1525 = vmatpush.msra.mxu0 0.0
        %1526 = vmatpush.msra.mxu0 0.0
        %1527 = vmatpush.msra.mxu0 %v1503
        %1528 = vmatpush.msra.mxu0 %v1502
        %1529 = vmatpush.msra.mxu0 %v1501
        %1530 = vmatpush.msra.mxu0 %v1500
        %1531 = vmatmul.f32.gmra.mxu0 %v1510
        %v1532 = vpop.f32.mrf.mxu0
        %v1533 = vadd.f32 %v1507, %v1532
        %1534 = vmatmul.f32.gmra.mxu0 %v1513
        %v1535 = vpop.f32.mrf.mxu0
        %v1536 = vadd.f32 %v1507, %v1535
        %1537 = vdwg.mxu0
        %1540 = vrot.lane.b32.xlu0 %v1533, 96
        %v1541 = vpop.permute.xlu0 %1540
        %1542 = vrot.lane.b32.xlu0 %v1536, 96
        %v1543 = vpop.permute.xlu0 %1542
        %v1544 = vsel %vm751, %v1533, 0
        %v1546 = vsel %vm751, %v1536, 0
        %v1548 = vsel %vm751, %v1541, 0
        %v1550 = vsel %vm751, %v1543, 0
        %1552 = vmatpush.xpose.msra.mxu0 0.0
        %1553 = vmatpush.xpose.msra.mxu0 0.0
        %1554 = vmatpush.xpose.msra.mxu0 0.0
        %1555 = vmatpush.xpose.msra.mxu0 0.0
        %1556 = vmatpush.xpose.msra.mxu0 0.0
        %1557 = vmatpush.xpose.msra.mxu0 0.0
        %1558 = vmatpush.xpose.msra.mxu0 0.0
        %1559 = vmatpush.xpose.msra.mxu0 0.0
        %1560 = vmatpush.xpose.msra.mxu0 0.0
        %1561 = vmatpush.xpose.msra.mxu0 0.0
        %1562 = vmatpush.xpose.msra.mxu0 0.0
        %1563 = vmatpush.xpose.msra.mxu0 0.0
        %1564 = vmatpush.xpose.msra.mxu0 0.0
        %1565 = vmatpush.xpose.msra.mxu0 0.0
        %1566 = vmatpush.xpose.msra.mxu0 %v1550
        %1567 = vmatpush.xpose.msra.mxu0 %v1548
        %1568 = vmatmul.f32.gmra.mxu0 %v1544
        %v1569 = vpop.f32.mrf.mxu0
        %v1570 = vadd.f32 0.0, %v1569
        %1571 = vmatmul.f32.gmra.mxu0 %v1546
        %v1572 = vpop.f32.mrf.mxu0
        %v1573 = vadd.f32 0.0, %v1572
        %1574 = vdwg.mxu0
        %v1575 = vmul.f32 %v1570, 0.35355338
        %v1576 = vmul.f32 %v1573, 0.35355338
        %v1577 = vadd.f32 %v1575, %v786
        %v1578 = vadd.f32 %v1576, %v786
        %v1579 = vsel %vm790, %v1577, -inf
        %1580 = vmax.xlane.f32.xlu0 %v1579
        %v1581 = vpop.xlane.xlu0 %1580
        %v1582 = vsel %vm790, %v1578, -inf
        %1583 = vmax.xlane.f32.xlu0 %v1582
        %v1584 = vpop.xlane.xlu0 %1583
        %v1585 = vsub.f32 %v1577, %v1581
        %v1586 = vsub.f32 %v1578, %v1584
        %v1587 = vmul.f32 %v1585, 1.442695
        %v1588 = vpow.pop %v1587
        %v1589 = vmul.f32 %v1586, 1.442695
        %v1590 = vpow.pop %v1589
        %v1591 = vsel %vm790, %v1588, 0.0
        %1592 = vadd.xlane.f32.xlu0 %v1591
        %v1593 = vpop.xlane.xlu0 %1592
        %v1594 = vsel %vm790, %v1590, 0.0
        %1595 = vadd.xlane.f32.xlu0 %v1594
        %v1596 = vpop.xlane.xlu0 %1595
        %v1597 = vrcp.pop %v1593
        %v1598 = vrcp.pop %v1596
        %v1599 = vmul.f32 %v1588, %v1597
        %v1600 = vmul.f32 %v1590, %v1598
        %1601 = vrot.lane.b32.xlu0 %v1533, 64
        %v1602 = vpop.permute.xlu0 %1601
        %1603 = vrot.lane.b32.xlu0 %v1536, 64
        %v1604 = vpop.permute.xlu0 %1603
        %v1608 = vsel %vm790, %v1599, 0
        %v1611 = vsel %vm790, %v1600, 0
        %1613 = vmatpush.msra.mxu0 0.0
        %1614 = vmatpush.msra.mxu0 0.0
        %1615 = vmatpush.msra.mxu0 0.0
        %1616 = vmatpush.msra.mxu0 0.0
        %1617 = vmatpush.msra.mxu0 0.0
        %1618 = vmatpush.msra.mxu0 0.0
        %1619 = vmatpush.msra.mxu0 0.0
        %1620 = vmatpush.msra.mxu0 0.0
        %1621 = vmatpush.msra.mxu0 0.0
        %1622 = vmatpush.msra.mxu0 0.0
        %1623 = vmatpush.msra.mxu0 0.0
        %1624 = vmatpush.msra.mxu0 0.0
        %1625 = vmatpush.msra.mxu0 0.0
        %1626 = vmatpush.msra.mxu0 0.0
        %1627 = vmatpush.msra.mxu0 %v1604
        %1628 = vmatpush.msra.mxu0 %v1602
        %1629 = vmatmul.f32.gmra.mxu0 %v1608
        %v1630 = vpop.f32.mrf.mxu0
        %v1631 = vadd.f32 0.0, %v1630
        %1632 = vmatmul.f32.gmra.mxu0 %v1611
        %v1633 = vpop.f32.mrf.mxu0
        %v1634 = vadd.f32 0.0, %v1633
        %1635 = vdwg.mxu0
        %1636 = vrot.lane.b32.xlu0 %v1533, 120
        %v1637 = vpop.permute.xlu0 %1636
        %1638 = vrot.lane.b32.xlu0 %v1536, 120
        %v1639 = vpop.permute.xlu0 %1638
        %1640 = vrot.lane.b32.xlu0 %v1533, 88
        %v1641 = vpop.permute.xlu0 %1640
        %1642 = vrot.lane.b32.xlu0 %v1536, 88
        %v1643 = vpop.permute.xlu0 %1642
        %v1644 = vsel %vm751, %v1637, 0
        %v1646 = vsel %vm751, %v1639, 0
        %v1648 = vsel %vm751, %v1641, 0
        %v1650 = vsel %vm751, %v1643, 0
        %1652 = vmatpush.xpose.msra.mxu0 0.0
        %1653 = vmatpush.xpose.msra.mxu0 0.0
        %1654 = vmatpush.xpose.msra.mxu0 0.0
        %1655 = vmatpush.xpose.msra.mxu0 0.0
        %1656 = vmatpush.xpose.msra.mxu0 0.0
        %1657 = vmatpush.xpose.msra.mxu0 0.0
        %1658 = vmatpush.xpose.msra.mxu0 0.0
        %1659 = vmatpush.xpose.msra.mxu0 0.0
        %1660 = vmatpush.xpose.msra.mxu0 0.0
        %1661 = vmatpush.xpose.msra.mxu0 0.0
        %1662 = vmatpush.xpose.msra.mxu0 0.0
        %1663 = vmatpush.xpose.msra.mxu0 0.0
        %1664 = vmatpush.xpose.msra.mxu0 0.0
        %1665 = vmatpush.xpose.msra.mxu0 0.0
        %1666 = vmatpush.xpose.msra.mxu0 %v1650
        %1667 = vmatpush.xpose.msra.mxu0 %v1648
        %1668 = vmatmul.f32.gmra.mxu0 %v1644
        %v1669 = vpop.f32.mrf.mxu0
        %v1670 = vadd.f32 0.0, %v1669
        %1671 = vmatmul.f32.gmra.mxu0 %v1646
        %v1672 = vpop.f32.mrf.mxu0
        %v1673 = vadd.f32 0.0, %v1672
        %1674 = vdwg.mxu0
        %v1675 = vmul.f32 %v1670, 0.35355338
        %v1676 = vmul.f32 %v1673, 0.35355338
        %v1677 = vadd.f32 %v1675, %v786
        %v1678 = vadd.f32 %v1676, %v786
        %v1679 = vsel %vm790, %v1677, -inf
        %1680 = vmax.xlane.f32.xlu0 %v1679
        %v1681 = vpop.xlane.xlu0 %1680
        %v1682 = vsel %vm790, %v1678, -inf
        %1683 = vmax.xlane.f32.xlu0 %v1682
        %v1684 = vpop.xlane.xlu0 %1683
        %v1685 = vsub.f32 %v1677, %v1681
        %v1686 = vsub.f32 %v1678, %v1684
        %v1687 = vmul.f32 %v1685, 1.442695
        %v1688 = vpow.pop %v1687
        %v1689 = vmul.f32 %v1686, 1.442695
        %v1690 = vpow.pop %v1689
        %v1691 = vsel %vm790, %v1688, 0.0
        %1692 = vadd.xlane.f32.xlu0 %v1691
        %v1693 = vpop.xlane.xlu0 %1692
        %v1694 = vsel %vm790, %v1690, 0.0
        %1695 = vadd.xlane.f32.xlu0 %v1694
        %v1696 = vpop.xlane.xlu0 %1695
        %v1697 = vrcp.pop %v1693
        %v1698 = vrcp.pop %v1696
        %v1699 = vmul.f32 %v1688, %v1697
        %v1700 = vmul.f32 %v1690, %v1698
        %1701 = vrot.lane.b32.xlu0 %v1533, 56
        %v1702 = vpop.permute.xlu0 %1701
        %1703 = vrot.lane.b32.xlu0 %v1536, 56
        %v1704 = vpop.permute.xlu0 %1703
        %v1708 = vsel %vm790, %v1699, 0
        %v1711 = vsel %vm790, %v1700, 0
        %1713 = vmatpush.msra.mxu0 0.0
        %1714 = vmatpush.msra.mxu0 0.0
        %1715 = vmatpush.msra.mxu0 0.0
        %1716 = vmatpush.msra.mxu0 0.0
        %1717 = vmatpush.msra.mxu0 0.0
        %1718 = vmatpush.msra.mxu0 0.0
        %1719 = vmatpush.msra.mxu0 0.0
        %1720 = vmatpush.msra.mxu0 0.0
        %1721 = vmatpush.msra.mxu0 0.0
        %1722 = vmatpush.msra.mxu0 0.0
        %1723 = vmatpush.msra.mxu0 0.0
        %1724 = vmatpush.msra.mxu0 0.0
        %1725 = vmatpush.msra.mxu0 0.0
        %1726 = vmatpush.msra.mxu0 0.0
        %1727 = vmatpush.msra.mxu0 %v1704
        %1728 = vmatpush.msra.mxu0 %v1702
        %1729 = vmatmul.f32.gmra.mxu0 %v1708
        %v1730 = vpop.f32.mrf.mxu0
        %v1731 = vadd.f32 0.0, %v1730
        %1732 = vmatmul.f32.gmra.mxu0 %v1711
        %v1733 = vpop.f32.mrf.mxu0
        %v1734 = vadd.f32 0.0, %v1733
        %1735 = vdwg.mxu0
        %1736 = vrot.lane.b32.xlu0 %v1533, 112
        %v1737 = vpop.permute.xlu0 %1736
        %1738 = vrot.lane.b32.xlu0 %v1536, 112
        %v1739 = vpop.permute.xlu0 %1738
        %1740 = vrot.lane.b32.xlu0 %v1533, 80
        %v1741 = vpop.permute.xlu0 %1740
        %1742 = vrot.lane.b32.xlu0 %v1536, 80
        %v1743 = vpop.permute.xlu0 %1742
        %v1744 = vsel %vm751, %v1737, 0
        %v1746 = vsel %vm751, %v1739, 0
        %v1748 = vsel %vm751, %v1741, 0
        %v1750 = vsel %vm751, %v1743, 0
        %1752 = vmatpush.xpose.msra.mxu0 0.0
        %1753 = vmatpush.xpose.msra.mxu0 0.0
        %1754 = vmatpush.xpose.msra.mxu0 0.0
        %1755 = vmatpush.xpose.msra.mxu0 0.0
        %1756 = vmatpush.xpose.msra.mxu0 0.0
        %1757 = vmatpush.xpose.msra.mxu0 0.0
        %1758 = vmatpush.xpose.msra.mxu0 0.0
        %1759 = vmatpush.xpose.msra.mxu0 0.0
        %1760 = vmatpush.xpose.msra.mxu0 0.0
        %1761 = vmatpush.xpose.msra.mxu0 0.0
        %1762 = vmatpush.xpose.msra.mxu0 0.0
        %1763 = vmatpush.xpose.msra.mxu0 0.0
        %1764 = vmatpush.xpose.msra.mxu0 0.0
        %1765 = vmatpush.xpose.msra.mxu0 0.0
        %1766 = vmatpush.xpose.msra.mxu0 %v1750
        %1767 = vmatpush.xpose.msra.mxu0 %v1748
        %1768 = vmatmul.f32.gmra.mxu0 %v1744
        %v1769 = vpop.f32.mrf.mxu0
        %v1770 = vadd.f32 0.0, %v1769
        %1771 = vmatmul.f32.gmra.mxu0 %v1746
        %v1772 = vpop.f32.mrf.mxu0
        %v1773 = vadd.f32 0.0, %v1772
        %1774 = vdwg.mxu0
        %v1775 = vmul.f32 %v1770, 0.35355338
        %v1776 = vmul.f32 %v1773, 0.35355338
        %v1777 = vadd.f32 %v1775, %v786
        %v1778 = vadd.f32 %v1776, %v786
        %v1779 = vsel %vm790, %v1777, -inf
        %1780 = vmax.xlane.f32.xlu0 %v1779
        %v1781 = vpop.xlane.xlu0 %1780
        %v1782 = vsel %vm790, %v1778, -inf
        %1783 = vmax.xlane.f32.xlu0 %v1782
        %v1784 = vpop.xlane.xlu0 %1783
        %v1785 = vsub.f32 %v1777, %v1781
        %v1786 = vsub.f32 %v1778, %v1784
        %v1787 = vmul.f32 %v1785, 1.442695
        %v1788 = vpow.pop %v1787
        %v1789 = vmul.f32 %v1786, 1.442695
        %v1790 = vpow.pop %v1789
        %v1791 = vsel %vm790, %v1788, 0.0
        %1792 = vadd.xlane.f32.xlu0 %v1791
        %v1793 = vpop.xlane.xlu0 %1792
        %v1794 = vsel %vm790, %v1790, 0.0
        %1795 = vadd.xlane.f32.xlu0 %v1794
        %v1796 = vpop.xlane.xlu0 %1795
        %v1797 = vrcp.pop %v1793
        %v1798 = vrcp.pop %v1796
        %v1799 = vmul.f32 %v1788, %v1797
        %v1800 = vmul.f32 %v1790, %v1798
        %1801 = vrot.lane.b32.xlu0 %v1533, 48
        %v1802 = vpop.permute.xlu0 %1801
        %1803 = vrot.lane.b32.xlu0 %v1536, 48
        %v1804 = vpop.permute.xlu0 %1803
        %v1808 = vsel %vm790, %v1799, 0
        %v1811 = vsel %vm790, %v1800, 0
        %1813 = vmatpush.msra.mxu0 0.0
        %1814 = vmatpush.msra.mxu0 0.0
        %1815 = vmatpush.msra.mxu0 0.0
        %1816 = vmatpush.msra.mxu0 0.0
        %1817 = vmatpush.msra.mxu0 0.0
        %1818 = vmatpush.msra.mxu0 0.0
        %1819 = vmatpush.msra.mxu0 0.0
        %1820 = vmatpush.msra.mxu0 0.0
        %1821 = vmatpush.msra.mxu0 0.0
        %1822 = vmatpush.msra.mxu0 0.0
        %1823 = vmatpush.msra.mxu0 0.0
        %1824 = vmatpush.msra.mxu0 0.0
        %1825 = vmatpush.msra.mxu0 0.0
        %1826 = vmatpush.msra.mxu0 0.0
        %1827 = vmatpush.msra.mxu0 %v1804
        %1828 = vmatpush.msra.mxu0 %v1802
        %1829 = vmatmul.f32.gmra.mxu0 %v1808
        %v1830 = vpop.f32.mrf.mxu0
        %v1831 = vadd.f32 0.0, %v1830
        %1832 = vmatmul.f32.gmra.mxu0 %v1811
        %v1833 = vpop.f32.mrf.mxu0
        %v1834 = vadd.f32 0.0, %v1833
        %1835 = vdwg.mxu0
        %1836 = vrot.lane.b32.xlu0 %v1533, 104
        %v1837 = vpop.permute.xlu0 %1836
        %1838 = vrot.lane.b32.xlu0 %v1536, 104
        %v1839 = vpop.permute.xlu0 %1838
        %1840 = vrot.lane.b32.xlu0 %v1533, 72
        %v1841 = vpop.permute.xlu0 %1840
        %1842 = vrot.lane.b32.xlu0 %v1536, 72
        %v1843 = vpop.permute.xlu0 %1842
        %v1844 = vsel %vm751, %v1837, 0
        %v1846 = vsel %vm751, %v1839, 0
        %v1848 = vsel %vm751, %v1841, 0
        %v1850 = vsel %vm751, %v1843, 0
        %1852 = vmatpush.xpose.msra.mxu0 0.0
        %1853 = vmatpush.xpose.msra.mxu0 0.0
        %1854 = vmatpush.xpose.msra.mxu0 0.0
        %1855 = vmatpush.xpose.msra.mxu0 0.0
        %1856 = vmatpush.xpose.msra.mxu0 0.0
        %1857 = vmatpush.xpose.msra.mxu0 0.0
        %1858 = vmatpush.xpose.msra.mxu0 0.0
        %1859 = vmatpush.xpose.msra.mxu0 0.0
        %1860 = vmatpush.xpose.msra.mxu0 0.0
        %1861 = vmatpush.xpose.msra.mxu0 0.0
        %1862 = vmatpush.xpose.msra.mxu0 0.0
        %1863 = vmatpush.xpose.msra.mxu0 0.0
        %1864 = vmatpush.xpose.msra.mxu0 0.0
        %1865 = vmatpush.xpose.msra.mxu0 0.0
        %1866 = vmatpush.xpose.msra.mxu0 %v1850
        %1867 = vmatpush.xpose.msra.mxu0 %v1848
        %1868 = vmatmul.f32.gmra.mxu0 %v1844
        %v1869 = vpop.f32.mrf.mxu0
        %v1870 = vadd.f32 0.0, %v1869
        %1871 = vmatmul.f32.gmra.mxu0 %v1846
        %v1872 = vpop.f32.mrf.mxu0
        %v1873 = vadd.f32 0.0, %v1872
        %1874 = vdwg.mxu0
        %v1875 = vmul.f32 %v1870, 0.35355338
        %v1876 = vmul.f32 %v1873, 0.35355338
        %v1877 = vadd.f32 %v1875, %v786
        %v1878 = vadd.f32 %v1876, %v786
        %v1879 = vsel %vm790, %v1877, -inf
        %1880 = vmax.xlane.f32.xlu0 %v1879
        %v1881 = vpop.xlane.xlu0 %1880
        %v1882 = vsel %vm790, %v1878, -inf
        %1883 = vmax.xlane.f32.xlu0 %v1882
        %v1884 = vpop.xlane.xlu0 %1883
        %v1885 = vsub.f32 %v1877, %v1881
        %v1886 = vsub.f32 %v1878, %v1884
        %v1887 = vmul.f32 %v1885, 1.442695
        %v1888 = vpow.pop %v1887
        %v1889 = vmul.f32 %v1886, 1.442695
        %v1890 = vpow.pop %v1889
        %v1891 = vsel %vm790, %v1888, 0.0
        %1892 = vadd.xlane.f32.xlu0 %v1891
        %v1893 = vpop.xlane.xlu0 %1892
        %v1894 = vsel %vm790, %v1890, 0.0
        %1895 = vadd.xlane.f32.xlu0 %v1894
        %v1896 = vpop.xlane.xlu0 %1895
        %v1897 = vrcp.pop %v1893
        %v1898 = vrcp.pop %v1896
        %v1899 = vmul.f32 %v1888, %v1897
        %v1900 = vmul.f32 %v1890, %v1898
        %1901 = vrot.lane.b32.xlu0 %v1533, 40
        %v1902 = vpop.permute.xlu0 %1901
        %1903 = vrot.lane.b32.xlu0 %v1536, 40
        %v1904 = vpop.permute.xlu0 %1903
        %v1908 = vsel %vm790, %v1899, 0
        %v1911 = vsel %vm790, %v1900, 0
        %1913 = vmatpush.msra.mxu0 0.0
        %1914 = vmatpush.msra.mxu0 0.0
        %1915 = vmatpush.msra.mxu0 0.0
        %1916 = vmatpush.msra.mxu0 0.0
        %1917 = vmatpush.msra.mxu0 0.0
        %1918 = vmatpush.msra.mxu0 0.0
        %1919 = vmatpush.msra.mxu0 0.0
        %1920 = vmatpush.msra.mxu0 0.0
        %1921 = vmatpush.msra.mxu0 0.0
        %1922 = vmatpush.msra.mxu0 0.0
        %1923 = vmatpush.msra.mxu0 0.0
        %1924 = vmatpush.msra.mxu0 0.0
        %1925 = vmatpush.msra.mxu0 0.0
        %1926 = vmatpush.msra.mxu0 0.0
        %1927 = vmatpush.msra.mxu0 %v1904
        %1928 = vmatpush.msra.mxu0 %v1902
        %1929 = vmatmul.f32.gmra.mxu0 %v1908
        %v1930 = vpop.f32.mrf.mxu0
        %v1931 = vadd.f32 0.0, %v1930
        %1932 = vmatmul.f32.gmra.mxu0 %v1911
        %v1933 = vpop.f32.mrf.mxu0
        %v1934 = vadd.f32 0.0, %v1933
        %1935 = vdwg.mxu0
        %1938 = vrot.lane.b32.xlu0 %v1731, 8
        %v1939 = vpop.permute.xlu0 %1938
        %1940 = vrot.lane.b32.xlu0 %v1734, 8
        %v1941 = vpop.permute.xlu0 %1940
        %1946 = vrot.lane.b32.xlu0 %v1831, 16
        %v1947 = vpop.permute.xlu0 %1946
        %1948 = vrot.lane.b32.xlu0 %v1834, 16
        %v1949 = vpop.permute.xlu0 %1948
        %1954 = vrot.lane.b32.xlu0 %v1931, 24
        %v1955 = vpop.permute.xlu0 %1954
        %1956 = vrot.lane.b32.xlu0 %v1934, 24
        %v1957 = vpop.permute.xlu0 %1956
        %v1960 = vsel %vm751, %v1631, %v1939
        %v1961 = vsel %vm751, %v1634, %v1941
        %v1962 = vsel %vm790, %v1960, %v1947
        %v1963 = vsel %vm790, %v1961, %v1949
        %v1964 = vsel %vm1176, %v1962, %v1955
        %v1965 = vsel %vm1176, %v1963, %v1957
        %s1966 = scalar_lea.vmem %s6, 32
        %v1967 = vld [vmem:[%s1966] sm:$0xff]
        %v1968 = vld [vmem:[%s1966 + $0x8] sm:$0xff]
        %v1969 = vld [vmem:[%s1966 + $0x10] sm:$0xff]
        %v1970 = vld [vmem:[%s1966 + $0x18] sm:$0xff]
        %s1971 = scalar_lea.vmem %s7, 1
        %v1972 = vld [vmem:[%s1971] sm:$0x1]
        %v1974 = vperm.slane %v1972, 0
        %v1977 = vsel %vm643, %v1964, 0
        %v1980 = vsel %vm643, %v1965, 0
        %1982 = vmatpush.msra.mxu0 0.0
        %1983 = vmatpush.msra.mxu0 0.0
        %1984 = vmatpush.msra.mxu0 0.0
        %1985 = vmatpush.msra.mxu0 0.0
        %1986 = vmatpush.msra.mxu0 0.0
        %1987 = vmatpush.msra.mxu0 0.0
        %1988 = vmatpush.msra.mxu0 0.0
        %1989 = vmatpush.msra.mxu0 0.0
        %1990 = vmatpush.msra.mxu0 0.0
        %1991 = vmatpush.msra.mxu0 0.0
        %1992 = vmatpush.msra.mxu0 0.0
        %1993 = vmatpush.msra.mxu0 0.0
        %1994 = vmatpush.msra.mxu0 %v1970
        %1995 = vmatpush.msra.mxu0 %v1969
        %1996 = vmatpush.msra.mxu0 %v1968
        %1997 = vmatpush.msra.mxu0 %v1967
        %1998 = vmatmul.f32.gmra.mxu0 %v1977
        %v1999 = vpop.f32.mrf.mxu0
        %v2000 = vadd.f32 %v1974, %v1999
        %2001 = vmatmul.f32.gmra.mxu0 %v1980
        %v2002 = vpop.f32.mrf.mxu0
        %v2003 = vadd.f32 %v1974, %v2002
        %2004 = vdwg.mxu0
        %v2005 = vadd.f32 %v1497, %v2000
        %v2006 = vadd.f32 %v1498, %v2003
        %s2007 = scalar_lea.vmem [#allocation10], 1
        %v2008 = vld [vmem:[%s2007] sm:$0x1]
        %s2009 = scalar_lea.vmem %s9, 1
        %v2010 = vld [vmem:[%s2009] sm:$0x1]
        %v2011 = vsel %vm643, %v2005, 0.0
        %2012 = vadd.xlane.f32.xlu0 %v2011
        %v2013 = vpop.xlane.xlu0 %2012
        %v2014 = vsel %vm643, %v2006, 0.0
        %2015 = vadd.xlane.f32.xlu0 %v2014
        %v2016 = vpop.xlane.xlu0 %2015
        %v2017 = vmul.f32 %v2013, %v656
        %v2018 = vmul.f32 %v2016, %v656
        %v2019 = vsub.f32 %v2005, %v2017
        %v2020 = vsub.f32 %v2006, %v2018
        %v2021 = vmul.f32 %v2019, %v2019
        %v2022 = vmul.f32 %v2020, %v2020
        %v2023 = vsel %vm643, %v2021, 0.0
        %2024 = vadd.xlane.f32.xlu0 %v2023
        %v2025 = vpop.xlane.xlu0 %2024
        %v2026 = vsel %vm643, %v2022, 0.0
        %2027 = vadd.xlane.f32.xlu0 %v2026
        %v2028 = vpop.xlane.xlu0 %2027
        %v2029 = vmul.f32 %v2025, %v656
        %v2030 = vmul.f32 %v2028, %v656
        %v2031 = vadd.f32 %v2029, 1e-12
        %v2032 = vadd.f32 %v2030, 1e-12
        %v2033 = vrsqrt.pop %v2031
        %v2034 = vmul.f32 %v2033, %v2031
        %v2035 = vmul.f32 %v2034, %v2033
        %v2036 = vmul.f32 0.5, %v2035
        %v2037 = vsub.f32 1.5, %v2036
        %v2038 = vmul.f32 %v2033, %v2037
        %vm2039 = vweird.f32 %v2031
        %vm2040 = vweird.f32 %v2033
        %vm2041 = vmor %vm2039, %vm2040
        %v2042 = vsel %vm2041, %v2033, %v2038
        %v2043 = vrsqrt.pop %v2032
        %v2044 = vmul.f32 %v2043, %v2032
        %v2045 = vmul.f32 %v2044, %v2043
        %v2046 = vmul.f32 0.5, %v2045
        %v2047 = vsub.f32 1.5, %v2046
        %v2048 = vmul.f32 %v2043, %v2047
        %vm2049 = vweird.f32 %v2032
        %vm2050 = vweird.f32 %v2043
        %vm2051 = vmor %vm2049, %vm2050
        %v2052 = vsel %vm2051, %v2043, %v2048
        %v2053 = vmul.f32 %v2019, %v2042
        %v2054 = vmul.f32 %v2020, %v2052
        %v2056 = vperm.slane %v2008, 0
        %v2058 = vmul.f32 %v2053, %v2056
        %v2059 = vmul.f32 %v2054, %v2056
        %v2061 = vperm.slane %v2010, 0
        %v2063 = vadd.f32 %v2058, %v2061
        %v2064 = vadd.f32 %v2059, %v2061
        %s2065 = scalar_lea.vmem %s10, 32
        %v2066 = vld [vmem:[%s2065] sm:$0xff]
        %v2067 = vld [vmem:[%s2065 + $0x8] sm:$0xff]
        %v2068 = vld [vmem:[%s2065 + $0x10] sm:$0xff]
        %v2069 = vld [vmem:[%s2065 + $0x18] sm:$0xff]
        %s2070 = scalar_lea.vmem %s11, 1
        %v2071 = vld [vmem:[%s2070] sm:$0x1]
        %v2073 = vperm.slane %v2071, 0
        %v2076 = vsel %vm643, %v2063, 0
        %v2079 = vsel %vm643, %v2064, 0
        %2081 = vmatpush.msra.mxu0 0.0
        %2082 = vmatpush.msra.mxu0 0.0
        %2083 = vmatpush.msra.mxu0 0.0
        %2084 = vmatpush.msra.mxu0 0.0
        %2085 = vmatpush.msra.mxu0 0.0
        %2086 = vmatpush.msra.mxu0 0.0
        %2087 = vmatpush.msra.mxu0 0.0
        %2088 = vmatpush.msra.mxu0 0.0
        %2089 = vmatpush.msra.mxu0 0.0
        %2090 = vmatpush.msra.mxu0 0.0
        %2091 = vmatpush.msra.mxu0 0.0
        %2092 = vmatpush.msra.mxu0 0.0
        %2093 = vmatpush.msra.mxu0 %v2069
        %2094 = vmatpush.msra.mxu0 %v2068
        %2095 = vmatpush.msra.mxu0 %v2067
        %2096 = vmatpush.msra.mxu0 %v2066
        %2097 = vmatmul.f32.gmra.mxu0 %v2076
        %v2098 = vpop.f32.mrf.mxu0
        %v2099 = vadd.f32 %v2073, %v2098
        %2100 = vmatmul.f32.gmra.mxu0 %v2079
        %v2101 = vpop.f32.mrf.mxu0
        %v2102 = vadd.f32 %v2073, %v2101
        %2103 = vdwg.mxu0
        %v2104 = vmul.f32 %v2099, 0.5
        %v2105 = vmul.f32 %v2102, 0.5
        %v2106 = vmul.f32 %v2099, 0.70710677
        %v2107 = vmul.f32 %v2102, 0.70710677
        %v2108 = vmul.f32 %v2106, %v2106
        %v2109 = vmin.f32 16.0, %v2108
        %v2110 = vmul.f32 %v2109, 2.1237322e-06
        %v2111 = vadd.f32 %v2110, 0.00028619796
        %v2112 = vmul.f32 %v2109, %v2111
        %v2113 = vadd.f32 %v2112, 0.0036580483
        %v2114 = vmul.f32 %v2109, %v2113
        %v2115 = vadd.f32 %v2114, 0.05243302
        %v2116 = vmul.f32 %v2109, %v2115
        %v2117 = vadd.f32 %v2116, 0.18741608
        %v2118 = vmul.f32 %v2109, %v2117
        %v2119 = vadd.f32 %v2118, 1.1283791
        %v2120 = vmul.f32 %v2106, %v2119
        %v2121 = vmul.f32 %v2109, 3.8918573e-05
        %v2122 = vadd.f32 %v2121, 0.001143296
        %v2123 = vmul.f32 %v2109, %v2122
        %v2124 = vadd.f32 %v2123, 0.014752088
        %v2125 = vmul.f32 %v2109, %v2124
        %v2126 = vadd.f32 %v2125, 0.112945676
        %v2127 = vmul.f32 %v2109, %v2126
        %v2128 = vadd.f32 %v2127, 0.4994258
        %v2129 = vmul.f32 %v2109, %v2128
        %v2130 = vadd.f32 %v2129, 1.0
        %v2131 = vrcp.pop %v2130
        %v2132 = vmul.f32 %v2130, %v2131
        %v2133 = vsub.f32 1.0, %v2132
        %v2134 = vmul.f32 %v2131, %v2133
        %v2135 = vadd.f32 %v2131, %v2134
        %vm2136 = vweird.f32 %v2130
        %vm2137 = vweird.f32 %v2131
        %vm2138 = vmor %vm2136, %vm2137
        %v2139 = vsel %vm2138, %v2131, %v2135
        %v2140 = vand.u32 2147483647, %v2130
        %vm2141 = vcmp.eq.f32.partialorder %v2140, 8.507059e+37
        %v2142 = vand.u32 %v2130, 2147483648
        %v2143 = vor.u32 1.1754944e-38, %v2142
        %v2144 = vsel %vm2141, %v2143, %v2139
        %v2145 = vmul.f32 %v2120, %v2144
        %v2146 = vmin.f32 %v2145, 1.0
        %v2147 = vmax.f32 %v2146, -1.0
        %v2148 = vmul.f32 %v2107, %v2107
        %v2149 = vmin.f32 16.0, %v2148
        %v2150 = vmul.f32 %v2149, 2.1237322e-06
        %v2151 = vadd.f32 %v2150, 0.00028619796
        %v2152 = vmul.f32 %v2149, %v2151
        %v2153 = vadd.f32 %v2152, 0.0036580483
        %v2154 = vmul.f32 %v2149, %v2153
        %v2155 = vadd.f32 %v2154, 0.05243302
        %v2156 = vmul.f32 %v2149, %v2155
        %v2157 = vadd.f32 %v2156, 0.18741608
        %v2158 = vmul.f32 %v2149, %v2157
        %v2159 = vadd.f32 %v2158, 1.1283791
        %v2160 = vmul.f32 %v2107, %v2159
        %v2161 = vmul.f32 %v2149, 3.8918573e-05
        %v2162 = vadd.f32 %v2161, 0.001143296
        %v2163 = vmul.f32 %v2149, %v2162
        %v2164 = vadd.f32 %v2163, 0.014752088
        %v2165 = vmul.f32 %v2149, %v2164
        %v2166 = vadd.f32 %v2165, 0.112945676
        %v2167 = vmul.f32 %v2149, %v2166
        %v2168 = vadd.f32 %v2167, 0.4994258
        %v2169 = vmul.f32 %v2149, %v2168
        %v2170 = vadd.f32 %v2169, 1.0
        %v2171 = vrcp.pop %v2170
        %v2172 = vmul.f32 %v2170, %v2171
        %v2173 = vsub.f32 1.0, %v2172
        %v2174 = vmul.f32 %v2171, %v2173
        %v2175 = vadd.f32 %v2171, %v2174
        %vm2176 = vweird.f32 %v2170
        %vm2177 = vweird.f32 %v2171
        %vm2178 = vmor %vm2176, %vm2177
        %v2179 = vsel %vm2178, %v2171, %v2175
        %v2180 = vand.u32 2147483647, %v2170
        %vm2181 = vcmp.eq.f32.partialorder %v2180, 8.507059e+37
        %v2182 = vand.u32 %v2170, 2147483648
        %v2183 = vor.u32 1.1754944e-38, %v2182
        %v2184 = vsel %vm2181, %v2183, %v2179
        %v2185 = vmul.f32 %v2160, %v2184
        %v2186 = vmin.f32 %v2185, 1.0
        %v2187 = vmax.f32 %v2186, -1.0
        %v2188 = vadd.f32 %v2147, 1.0
        %v2189 = vadd.f32 %v2187, 1.0
        %v2190 = vmul.f32 %v2104, %v2188
        %v2191 = vmul.f32 %v2105, %v2189
        %s2192 = scalar_lea.vmem %s12, 64
        %v2193 = vld [vmem:[%s2192] sm:$0xff]
        %v2194 = vld [vmem:[%s2192 + $0x8] sm:$0xff]
        %v2195 = vld [vmem:[%s2192 + $0x10] sm:$0xff]
        %v2196 = vld [vmem:[%s2192 + $0x18] sm:$0xff]
        %v2197 = vld [vmem:[%s2192 + $0x20] sm:$0xff]
        %v2198 = vld [vmem:[%s2192 + $0x28] sm:$0xff]
        %v2199 = vld [vmem:[%s2192 + $0x30] sm:$0xff]
        %v2200 = vld [vmem:[%s2192 + $0x38] sm:$0xff]
        %s2201 = scalar_lea.vmem %s13, 1
        %v2202 = vld [vmem:[%s2201] sm:$0x1]
        %v2204 = vperm.slane %v2202, 0
        %v2207 = vsel %vm1411, %v2190, 0
        %v2210 = vsel %vm1411, %v2191, 0
        %2212 = vmatpush.msra.mxu0 0.0
        %2213 = vmatpush.msra.mxu0 0.0
        %2214 = vmatpush.msra.mxu0 0.0
        %2215 = vmatpush.msra.mxu0 0.0
        %2216 = vmatpush.msra.mxu0 0.0
        %2217 = vmatpush.msra.mxu0 0.0
        %2218 = vmatpush.msra.mxu0 0.0
        %2219 = vmatpush.msra.mxu0 0.0
        %2220 = vmatpush.msra.mxu0 %v2200
        %2221 = vmatpush.msra.mxu0 %v2199
        %2222 = vmatpush.msra.mxu0 %v2198
        %2223 = vmatpush.msra.mxu0 %v2197
        %2224 = vmatpush.msra.mxu0 %v2196
        %2225 = vmatpush.msra.mxu0 %v2195
        %2226 = vmatpush.msra.mxu0 %v2194
        %2227 = vmatpush.msra.mxu0 %v2193
        %2228 = vmatmul.f32.gmra.mxu0 %v2207
        %v2229 = vpop.f32.mrf.mxu0
        %v2230 = vadd.f32 %v2204, %v2229
        %2231 = vmatmul.f32.gmra.mxu0 %v2210
        %v2232 = vpop.f32.mrf.mxu0
        %v2233 = vadd.f32 %v2204, %v2232
        %2234 = vdwg.mxu0
        %v2235 = vadd.f32 %v2063, %v2230
        %v2236 = vadd.f32 %v2064, %v2233
        %s2237 = scalar_lea.vmem [#allocation11], 1
        %v2238 = vld [vmem:[%s2237] sm:$0x1]
        %s2239 = scalar_lea.vmem %s15, 1
        %v2240 = vld [vmem:[%s2239] sm:$0x1]
        %v2241 = vsel %vm643, %v2235, 0.0
        %2242 = vadd.xlane.f32.xlu0 %v2241
        %v2243 = vpop.xlane.xlu0 %2242
        %v2244 = vsel %vm643, %v2236, 0.0
        %2245 = vadd.xlane.f32.xlu0 %v2244
        %v2246 = vpop.xlane.xlu0 %2245
        %v2247 = vmul.f32 %v2243, %v656
        %v2248 = vmul.f32 %v2246, %v656
        %v2249 = vsub.f32 %v2235, %v2247
        %v2250 = vsub.f32 %v2236, %v2248
        %v2251 = vmul.f32 %v2249, %v2249
        %v2252 = vmul.f32 %v2250, %v2250
        %v2253 = vsel %vm643, %v2251, 0.0
        %2254 = vadd.xlane.f32.xlu0 %v2253
        %v2255 = vpop.xlane.xlu0 %2254
        %v2256 = vsel %vm643, %v2252, 0.0
        %2257 = vadd.xlane.f32.xlu0 %v2256
        %v2258 = vpop.xlane.xlu0 %2257
        %v2259 = vmul.f32 %v2255, %v656
        %v2260 = vmul.f32 %v2258, %v656
        %v2261 = vadd.f32 %v2259, 1e-12
        %v2262 = vadd.f32 %v2260, 1e-12
        %v2263 = vrsqrt.pop %v2261
        %v2264 = vmul.f32 %v2263, %v2261
        %v2265 = vmul.f32 %v2264, %v2263
        %v2266 = vmul.f32 0.5, %v2265
        %v2267 = vsub.f32 1.5, %v2266
        %v2268 = vmul.f32 %v2263, %v2267
        %vm2269 = vweird.f32 %v2261
        %vm2270 = vweird.f32 %v2263
        %vm2271 = vmor %vm2269, %vm2270
        %v2272 = vsel %vm2271, %v2263, %v2268
        %v2273 = vrsqrt.pop %v2262
        %v2274 = vmul.f32 %v2273, %v2262
        %v2275 = vmul.f32 %v2274, %v2273
        %v2276 = vmul.f32 0.5, %v2275
        %v2277 = vsub.f32 1.5, %v2276
        %v2278 = vmul.f32 %v2273, %v2277
        %vm2279 = vweird.f32 %v2262
        %vm2280 = vweird.f32 %v2273
        %vm2281 = vmor %vm2279, %vm2280
        %v2282 = vsel %vm2281, %v2273, %v2278
        %v2283 = vmul.f32 %v2249, %v2272
        %v2284 = vmul.f32 %v2250, %v2282
        %v2286 = vperm.slane %v2238, 0
        %v2288 = vmul.f32 %v2283, %v2286
        %v2289 = vmul.f32 %v2284, %v2286
        %v2291 = vperm.slane %v2240, 0
        %v2293 = vadd.f32 %v2288, %v2291
        %v2294 = vadd.f32 %v2289, %v2291
        %2295 = vst.msk [vmem:[%s638] sm:$0xff] %vm643, %v2293
        %2296 = vst.msk [vmem:[%s638 + $0x8] sm:$0xff] %vm643, %v2294
        %s2297 = sand.u32 %s392, 1
        %s2298 = scalar_lea.sflag [#allocation4], %s2297
        %s2299 = sand.u32 %s392, 1
        %s2300 = smul.addr %s2299, 16
        %s2301 = scalar_lea.vmem [#allocation13], %s2300
        // Predicated region
        $region109: #{tpu_custom_call.1} parent=83 // pred_check
          %p2302 = pneg %p402
        $region110: #{tpu_custom_call.1} parent=83 // pred_check_branch
          %2304 = sbr.rel (%p2302) target = $region112
        $region111: #{tpu_custom_call.1} parent=83 // pred_region
          %2306 = vsyncadd %s2298, 0
          %s2307 = smul.addr %s38, 2
          %s2308 = smul.addr %s2307, 8
          %s2309 = scalar_lea.hbm %s16, %s2308
          %s2310 = sshll.u32 %s2301, 4
          %s2311 = int_to_ptr.vmem [resolvable:$true] %s2310
          %s2312 = sshll.u32 %s2309, 4
          %s2313 = int_to_ptr.hbm [resolvable:$true] %s2312
          %2318 = dma.vmem_to_hbm [thread:$0]  %s2311, 256, %s2313, %s2298, 128, 128, 8
        $region112: #{tpu_custom_call.1} parent=83 // pred_fallthru
          _
      $region84: #{tpu_custom_call.1} parent=5 // pred_fallthru
        _
      %p2319 = scmp.le.s32.totalorder 2, %s33
      // Predicated region
      $region113: #{tpu_custom_call.1} parent=5 // pred_check
        %p2320 = pneg %p2319
      $region114: #{tpu_custom_call.1} parent=5 // pred_check_branch
        %2322 = sbr.rel (%p2320) target = $region116
      $region115: #{tpu_custom_call.1} parent=5 // pred_region
        %s2323 = ssub.s32 %s33, 2
        // Predicated region
        $region117: #{tpu_custom_call.1} parent=115 // pred_check
          %p2324 = pneg %p408
        $region118: #{tpu_custom_call.1} parent=115 // pred_check_branch
          %2326 = sbr.rel (%p2324) target = $region120
        $region119: #{tpu_custom_call.1} parent=115 // pred_region
          %s2327 = sand.u32 %s393, 1
          %s2328 = scalar_lea.sflag [#allocation4], %s2327
          %s2329 = sand.u32 %s393, 1
          %s2330 = smul.addr %s2329, 16
          %s2331 = scalar_lea.vmem [#allocation13], %s2330
          %2333 = dma.done %s2328, 256
        $region120: #{tpu_custom_call.1} parent=115 // pred_fallthru
          _
      $region116: #{tpu_custom_call.1} parent=5 // pred_fallthru
        _
    $region6: #{tpu_custom_call.1} parent=1 // loop_footer
      %s37 = sadd.s32 1, %s33
    $region7: #{tpu_custom_call.1} parent=1 // loop_footer_branch
      %32 = sbr.rel target = $region3
    $region8: #{tpu_custom_call.1} parent=1 // loop_exit
      _
    %2334 = vsyncpa [#allocation3], 1
    %s2335 = scalar_lea.sflag [#allocation3], 1
    %2336 = vsyncpa %s2335, 1
    %2337 = vsyncpa [#allocation6], 1
    %s2338 = scalar_lea.sflag [#allocation6], 1
    %2339 = vsyncpa %s2338, 1
    %2340 = vsyncpa [#allocation9], 1
    %2341 = vsyncpa [#allocation12], 1
    %2342 = vsyncpa [#allocation4], 1
    %s2343 = scalar_lea.sflag [#allocation4], 1
    %2344 = vsyncpa %s2343, 1

</llo_original>
